<compile_context>
chip_gen: v7x
topology: tpu7x:2x2x1
jax: 0.10.0
libtpu: 0.0.40
codegen_flags: <defaults>
</compile_context>

<pallas_src>
import functools

import jax
import jax.numpy as jnp
from jax.experimental import pallas as pl
from jax.experimental.pallas import tpu as pltpu

_SUBLANES = {4: 8, 2: 16, 1: 32}


def maskconv2d_kernel(x_ref, m_ref, w_ref, o_ref, acc_ref, *, kh_size, kw_size):
    """One batch tile per grid step.

    x_ref:   (nb, hp, wp, cin)   spatially zero-padded input tile (NHWC, unmasked)
    m_ref:   (nb, hp, wp, cm)    mask tile, nonzero where the input must be zeroed
    w_ref:   (kh*kw, cin, cout)  conv weights, one (cin, cout) slab per tap
    o_ref:   (nb, ho, wo, cout)  output tile
    acc_ref: (nb*ho*wo, cout)    f32 accumulator scratch
    """
    nb, hp, wp, cin = x_ref.shape
    ho = hp - (kh_size - 1)
    wo = wp - (kw_size - 1)
    rows = nb * ho * wo

    # Fused masked_fill (exact torch semantics: masked positions -> 0, even for NaN/Inf).
    # The mask broadcasts over channels when cm == 1.
    xm = jnp.where(m_ref[...] != 0, jnp.zeros((), x_ref.dtype), x_ref[...])
    if xm.dtype != w_ref.dtype:          # static (trace-time) check; upcast once if needed
        xm = xm.astype(w_ref.dtype)

    # Per-tap matmul accumulation: no im2col scratch, one MXU pass per tap with K = cin
    # and f32 accumulation in VMEM.
    for ki in range(kh_size):
        for kj in range(kw_size):
            tap = ki * kw_size + kj
            win = xm[:, ki:ki + ho, kj:kj + wo, :].reshape(rows, cin)
            part = jnp.dot(win, w_ref[tap], preferred_element_type=jnp.float32)
            if tap == 0:
                acc_ref[...] = part
            else:
                acc_ref[...] += part

    o_ref[...] = acc_ref[...].reshape(o_ref.shape).astype(o_ref.dtype)


def _round_up(x, m):
    return ((x + m - 1) // m) * m


def _vmem_bytes(shape, dtype):
    """Approximate VMEM footprint of an (8,128)-tiled buffer of this shape/dtype."""
    itemsize = jnp.dtype(dtype).itemsize
    sub = _SUBLANES.get(itemsize, 8)
    dims = list(shape)
    dims[-1] = _round_up(dims[-1], 128)
    if len(dims) >= 2:
        dims[-2] = _round_up(dims[-2], sub)
    total = itemsize
    for d in dims:
        total *= d
    return total


def _step_vmem_bytes(nb, *, hp, wp, ho, wo, cin, cm, cout, ntaps, x_dt, w_dt, o_dt):
    """Per-grid-step VMEM footprint: pipelined blocks + accumulator + relayout temps."""
    rows = nb * ho * wo
    x_blk = _vmem_bytes((nb, hp, wp, cin), x_dt)
    m_blk = _vmem_bytes((nb, hp, wp, cm), x_dt)
    w_blk = _vmem_bytes((ntaps, cin, cout), w_dt)
    o_blk = _vmem_bytes((nb, ho, wo, cout), o_dt)
    acc = _vmem_bytes((rows, cout), jnp.float32)          # f32 accumulator scratch
    xm_tmp = _vmem_bytes((nb, hp, wp, cin), w_dt)         # masked (possibly upcast) copy
    win_tmp = 2 * _vmem_bytes((rows, cin), w_dt)          # live window slices / relayouts
    dot_tmp = _vmem_bytes((rows, cout), jnp.float32)      # matmul partial before accumulate
    # Input/mask/weight/output blocks are double-buffered by the pipeline.
    return 2 * (x_blk + m_blk + w_blk + o_blk) + acc + xm_tmp + win_tmp + dot_tmp


def _pick_batch_tile(n, step_bytes, budget):
    """Largest divisor of n, capped at n//2 (keep >=2 grid steps for megacore /
    pipelining whenever possible), whose per-step footprint fits the budget."""
    cap = max(1, n // 2)
    best = 1
    for nb in range(1, cap + 1):
        if n % nb == 0 and step_bytes(nb) <= budget:
            best = nb
    return best


@functools.lru_cache(maxsize=None)
def _vmem_capacity_bytes():
    try:
        cap = int(pltpu.get_tpu_info().vmem_capacity_bytes)
        if cap > 0:
            return cap
    except Exception:
        pass
    return 64 * 1024 * 1024   # conservative default (v7x per-core VMEM)


@functools.partial(jax.jit, static_argnames=("padding",))
def mask_conv2d(x_nchw, mask, weight_oihw, *, padding=1):
    """Equivalent of MaskConv2d.forward(x, mask): x.masked_fill(mask, 0) then a bias-free
    Conv2d (stride 1, zero padding `padding`, groups=1)."""
    n, cin, h, w = x_nchw.shape
    cout, cin_w, kh, kw = weight_oihw.shape
    if cin_w != cin:
        raise NotImplementedError("groups != 1 is not supported")  # TODO(synk): grouped conv
    ho = h + 2 * padding - kh + 1
    wo = w + 2 * padding - kw + 1
    assert ho >= 1 and wo >= 1, "kernel larger than the padded input"

    x_dt = x_nchw.dtype
    c_dt = jnp.promote_types(x_dt, weight_oihw.dtype)   # torch promotes; don't downcast W

    # Normalize the mask to (n, cm, h, w) with cm in {1, cin}; keep a singleton channel
    # when possible so the mask block stays tiny (numpy/torch broadcast rules).
    m = jnp.asarray(mask)
    if m.dtype != jnp.bool_:
        m = m != 0
    if m.ndim < 4:
        m = m.reshape((1,) * (4 - m.ndim) + m.shape)
    cm = m.shape[1]
    if cm not in (1, cin):
        raise ValueError(f"mask channel dim {cm} is not broadcastable to {cin}")
    m = jnp.broadcast_to(m, (n, cm, h, w))

    # One wrapper pass per tensor: NCHW->NHWC + spatial zero pad.  masked_fill itself is
    # applied inside the kernel, and channels are NOT lane-padded in HBM.
    xp = jnp.pad(jnp.transpose(x_nchw, (0, 2, 3, 1)),
                 ((0, 0), (padding, padding), (padding, padding), (0, 0)))
    mp = jnp.pad(jnp.transpose(m, (0, 2, 3, 1)).astype(x_dt),
                 ((0, 0), (padding, padding), (padding, padding), (0, 0)))

    # OIHW -> (KH*KW, Cin, Cout): one (Cin, Cout) contraction slab per tap.
    w3 = jnp.transpose(weight_oihw.astype(c_dt), (2, 3, 1, 0)).reshape(kh * kw, cin, cout)

    hp, wp = h + 2 * padding, w + 2 * padding
    ntaps = kh * kw

    cap = _vmem_capacity_bytes()
    budget = (3 * cap) // 4        # ~96 MiB on v5e/v6e (128 MiB/core), ~48 MiB on v7x (64 MiB)
    step_bytes = functools.partial(
        _step_vmem_bytes, hp=hp, wp=wp, ho=ho, wo=wo, cin=cin, cm=cm, cout=cout,
        ntaps=ntaps, x_dt=x_dt, w_dt=c_dt, o_dt=c_dt)
    nb = _pick_batch_tile(n, step_bytes, budget)
    fp = step_bytes(nb)
    # Limit tracks the real footprint (with margin); never exceeds reported capacity.
    vmem_limit = int(min(cap, max(fp + fp // 4, 48 * 1024 * 1024)))

    kernel = functools.partial(maskconv2d_kernel, kh_size=kh, kw_size=kw)
    out_nhwc = pl.pallas_call(
        kernel,
        out_shape=jax.ShapeDtypeStruct((n, ho, wo, cout), c_dt),
        grid_spec=pltpu.PrefetchScalarGridSpec(
            num_scalar_prefetch=0,
            grid=(n // nb,),
            in_specs=[
                pl.BlockSpec((nb, hp, wp, cin), lambda i: (i, 0, 0, 0)),
                pl.BlockSpec((nb, hp, wp, cm), lambda i: (i, 0, 0, 0)),
                # Constant index_map: the small weight block stays resident across steps.
                pl.BlockSpec((ntaps, cin, cout), lambda i: (0, 0, 0)),
            ],
            out_specs=pl.BlockSpec((nb, ho, wo, cout), lambda i: (i, 0, 0, 0)),
            scratch_shapes=[pltpu.VMEM((nb * ho * wo, cout), jnp.float32)],
        ),
        compiler_params=pltpu.CompilerParams(
            dimension_semantics=("parallel",),   # batch tiles are independent -> both TCs
            vmem_limit_bytes=vmem_limit,
        ),
    )(xp, mp, w3)

    return jnp.transpose(out_nhwc, (0, 3, 1, 2))


def _reference(x_nchw, mask, weight_oihw, *, padding=1):
    """Pure-JAX reference mirroring the torch forward."""
    xm = jnp.where(jnp.asarray(mask, jnp.bool_), 0.0, x_nchw.astype(jnp.float32))
    return jax.lax.conv_general_dilated(
        xm, weight_oihw.astype(jnp.float32),
        window_strides=(1, 1),
        padding=((padding, padding), (padding, padding)),
        dimension_numbers=("NCHW", "OIHW", "NCHW"))


if __name__ == "__main__":
    # Small shapes consistent with the module's forward: NCHW x, (N,1,H,W) bool mask.
    N, Cin, Cout, H, W, K = 2, 4, 4, 16, 16, 3

    key = jax.random.PRNGKey(0)
    kx, km, kwt = jax.random.split(key, 3)

    x = jax.random.normal(kx, (N, Cin, H, W), dtype=jnp.float32)
    mask = jax.random.bernoulli(km, p=0.3, shape=(N, 1, H, W))   # bool padding mask

    # Deterministic Conv2d weight init (Kaiming-uniform-like, bias=False), OIHW.
    fan_in = Cin * K * K
    bound = 1.0 / float(fan_in) ** 0.5
    weight = jax.random.uniform(
        kwt, (Cout, Cin, K, K), minval=-bound, maxval=bound, dtype=jnp.float32)

    out = jax.block_until_ready(mask_conv2d(x, mask, weight, padding=1))
    ref = jax.block_until_ready(_reference(x, mask, weight, padding=1))

    assert out.shape == (N, Cout, H, W), out.shape
    max_err = float(jnp.max(jnp.abs(out - ref)))
    assert jnp.allclose(out, ref, atol=1e-4, rtol=1e-4), max_err

    print("KERNEL_OK")
</pallas_src>

<mosaic_0001>
module attributes {stable_mosaic.version = 11 : i64} {
  func.func @maskconv2d_kernel(%arg0: i32, %arg1: memref<1x18x18x4xf32, #tpu.memory_space<vmem>>, %arg2: memref<1x18x18x1xf32, #tpu.memory_space<vmem>>, %arg3: memref<9x4x4xf32, #tpu.memory_space<vmem>>, %arg4: memref<1x16x16x4xf32, #tpu.memory_space<vmem>>, %arg5: memref<256x4xf32, #tpu.memory_space<vmem>>) attributes {dimension_semantics = [#tpu.dimension_semantics<parallel>], iteration_bounds = array<i64: 2>, scalar_prefetch = 0 : i64, scratch_operands = 1 : i64, tpu.core_type = #tpu.core_type<tc>, window_params = [{transform_indices = @transform_0, window_bounds = array<i64: 1, 18, 18, 4>}, {transform_indices = @transform_1, window_bounds = array<i64: 1, 18, 18, 1>}, {pipeline_mode = #tpu.pipeline_mode<synchronous>, transform_indices = @transform_2, window_bounds = array<i64: 9, 4, 4>}, {transform_indices = @transform_3, window_bounds = array<i64: 1, 16, 16, 4>}]} {
    %c0 = arith.constant 0 : index
    %c0_0 = arith.constant 0 : index
    %c0_1 = arith.constant 0 : index
    %c0_2 = arith.constant 0 : index
    %0 = vector.load %arg2[%c0, %c0_0, %c0_1, %c0_2] : memref<1x18x18x1xf32, #tpu.memory_space<vmem>>, vector<1x18x18x1xf32>
    %cst = arith.constant 0.000000e+00 : f32
    %1 = vector.broadcast %cst : f32 to vector<1x18x18x1xf32>
    %2 = arith.cmpf one, %0, %1 : vector<1x18x18x1xf32>
    %c0_3 = arith.constant 0 : index
    %c0_4 = arith.constant 0 : index
    %c0_5 = arith.constant 0 : index
    %c0_6 = arith.constant 0 : index
    %3 = vector.load %arg1[%c0_3, %c0_4, %c0_5, %c0_6] : memref<1x18x18x4xf32, #tpu.memory_space<vmem>>, vector<1x18x18x4xf32>
    %cst_7 = arith.constant 0.000000e+00 : f32
    %4 = vector.shape_cast %2 : vector<1x18x18x1xi1> to vector<1x18x18x1xi1>
    %5 = vector.broadcast %4 : vector<1x18x18x1xi1> to vector<1x18x18x4xi1>
    %6 = vector.broadcast %cst_7 : f32 to vector<1x18x18x4xf32>
    %7 = arith.select %5, %6, %3 : vector<1x18x18x4xi1>, vector<1x18x18x4xf32>
    %8 = vector.extract_strided_slice %7 {offsets = [0, 0, 0, 0], sizes = [1, 16, 16, 4], strides = [1, 1, 1, 1]} : vector<1x18x18x4xf32> to vector<1x16x16x4xf32>
    %9 = vector.shape_cast %8 : vector<1x16x16x4xf32> to vector<256x4xf32>
    %c0_8 = arith.constant 0 : index
    %c0_9 = arith.constant 0 : index
    %c0_10 = arith.constant 0 : index
    %10 = vector.load %arg3[%c0_8, %c0_9, %c0_10] : memref<9x4x4xf32, #tpu.memory_space<vmem>>, vector<1x4x4xf32>
    %11 = vector.shape_cast %10 : vector<1x4x4xf32> to vector<4x4xf32>
    %cst_11 = arith.constant dense<0.000000e+00> : vector<256x4xf32>
    %12 = tpu.matmul %9, %11, %cst_11 {dimension_numbers = #tpu.dot_dimension_numbers<[1], [0], [0], [1], [0, 0, 1, 1], [], []>} : vector<256x4xf32>, vector<4x4xf32>, vector<256x4xf32> -> vector<256x4xf32>
    %c0_12 = arith.constant 0 : index
    %c0_13 = arith.constant 0 : index
    %13 = vector.load %arg5[%c0_12, %c0_13] : memref<256x4xf32, #tpu.memory_space<vmem>>, vector<256x4xf32>
    tpu.vector_store %arg5[%c0_12, %c0_13], %12 {strides = array<i32>} : memref<256x4xf32, #tpu.memory_space<vmem>>, vector<256x4xf32>,
    %14 = vector.extract_strided_slice %7 {offsets = [0, 0, 1, 0], sizes = [1, 16, 16, 4], strides = [1, 1, 1, 1]} : vector<1x18x18x4xf32> to vector<1x16x16x4xf32>
    %15 = vector.shape_cast %14 : vector<1x16x16x4xf32> to vector<256x4xf32>
    %c1 = arith.constant 1 : index
    %c0_14 = arith.constant 0 : index
    %c0_15 = arith.constant 0 : index
    %16 = vector.load %arg3[%c1, %c0_14, %c0_15] : memref<9x4x4xf32, #tpu.memory_space<vmem>>, vector<1x4x4xf32>
    %17 = vector.shape_cast %16 : vector<1x4x4xf32> to vector<4x4xf32>
    %cst_16 = arith.constant dense<0.000000e+00> : vector<256x4xf32>
    %18 = tpu.matmul %15, %17, %cst_16 {dimension_numbers = #tpu.dot_dimension_numbers<[1], [0], [0], [1], [0, 0, 1, 1], [], []>} : vector<256x4xf32>, vector<4x4xf32>, vector<256x4xf32> -> vector<256x4xf32>
    %c0_17 = arith.constant 0 : index
    %c0_18 = arith.constant 0 : index
    %19 = vector.load %arg5[%c0_17, %c0_18] : memref<256x4xf32, #tpu.memory_space<vmem>>, vector<256x4xf32>
    %20 = arith.addf %19, %18 : vector<256x4xf32>
    %c0_19 = arith.constant 0 : index
    %c0_20 = arith.constant 0 : index
    %21 = vector.load %arg5[%c0_19, %c0_20] : memref<256x4xf32, #tpu.memory_space<vmem>>, vector<256x4xf32>
    tpu.vector_store %arg5[%c0_19, %c0_20], %20 {strides = array<i32>} : memref<256x4xf32, #tpu.memory_space<vmem>>, vector<256x4xf32>,
    %22 = vector.extract_strided_slice %7 {offsets = [0, 0, 2, 0], sizes = [1, 16, 16, 4], strides = [1, 1, 1, 1]} : vector<1x18x18x4xf32> to vector<1x16x16x4xf32>
    %23 = vector.shape_cast %22 : vector<1x16x16x4xf32> to vector<256x4xf32>
    %c2 = arith.constant 2 : index
    %c0_21 = arith.constant 0 : index
    %c0_22 = arith.constant 0 : index
    %24 = vector.load %arg3[%c2, %c0_21, %c0_22] : memref<9x4x4xf32, #tpu.memory_space<vmem>>, vector<1x4x4xf32>
    %25 = vector.shape_cast %24 : vector<1x4x4xf32> to vector<4x4xf32>
    %cst_23 = arith.constant dense<0.000000e+00> : vector<256x4xf32>
    %26 = tpu.matmul %23, %25, %cst_23 {dimension_numbers = #tpu.dot_dimension_numbers<[1], [0], [0], [1], [0, 0, 1, 1], [], []>} : vector<256x4xf32>, vector<4x4xf32>, vector<256x4xf32> -> vector<256x4xf32>
    %c0_24 = arith.constant 0 : index
    %c0_25 = arith.constant 0 : index
    %27 = vector.load %arg5[%c0_24, %c0_25] : memref<256x4xf32, #tpu.memory_space<vmem>>, vector<256x4xf32>
    %28 = arith.addf %27, %26 : vector<256x4xf32>
    %c0_26 = arith.constant 0 : index
    %c0_27 = arith.constant 0 : index
    %29 = vector.load %arg5[%c0_26, %c0_27] : memref<256x4xf32, #tpu.memory_space<vmem>>, vector<256x4xf32>
    tpu.vector_store %arg5[%c0_26, %c0_27], %28 {strides = array<i32>} : memref<256x4xf32, #tpu.memory_space<vmem>>, vector<256x4xf32>,
    %30 = vector.extract_strided_slice %7 {offsets = [0, 1, 0, 0], sizes = [1, 16, 16, 4], strides = [1, 1, 1, 1]} : vector<1x18x18x4xf32> to vector<1x16x16x4xf32>
    %31 = vector.shape_cast %30 : vector<1x16x16x4xf32> to vector<256x4xf32>
    %c3 = arith.constant 3 : index
    %c0_28 = arith.constant 0 : index
    %c0_29 = arith.constant 0 : index
    %32 = vector.load %arg3[%c3, %c0_28, %c0_29] : memref<9x4x4xf32, #tpu.memory_space<vmem>>, vector<1x4x4xf32>
    %33 = vector.shape_cast %32 : vector<1x4x4xf32> to vector<4x4xf32>
    %cst_30 = arith.constant dense<0.000000e+00> : vector<256x4xf32>
    %34 = tpu.matmul %31, %33, %cst_30 {dimension_numbers = #tpu.dot_dimension_numbers<[1], [0], [0], [1], [0, 0, 1, 1], [], []>} : vector<256x4xf32>, vector<4x4xf32>, vector<256x4xf32> -> vector<256x4xf32>
    %c0_31 = arith.constant 0 : index
    %c0_32 = arith.constant 0 : index
    %35 = vector.load %arg5[%c0_31, %c0_32] : memref<256x4xf32, #tpu.memory_space<vmem>>, vector<256x4xf32>
    %36 = arith.addf %35, %34 : vector<256x4xf32>
    %c0_33 = arith.constant 0 : index
    %c0_34 = arith.constant 0 : index
    %37 = vector.load %arg5[%c0_33, %c0_34] : memref<256x4xf32, #tpu.memory_space<vmem>>, vector<256x4xf32>
    tpu.vector_store %arg5[%c0_33, %c0_34], %36 {strides = array<i32>} : memref<256x4xf32, #tpu.memory_space<vmem>>, vector<256x4xf32>,
    %38 = vector.extract_strided_slice %7 {offsets = [0, 1, 1, 0], sizes = [1, 16, 16, 4], strides = [1, 1, 1, 1]} : vector<1x18x18x4xf32> to vector<1x16x16x4xf32>
    %39 = vector.shape_cast %38 : vector<1x16x16x4xf32> to vector<256x4xf32>
    %c4 = arith.constant 4 : index
    %c0_35 = arith.constant 0 : index
    %c0_36 = arith.constant 0 : index
    %40 = vector.load %arg3[%c4, %c0_35, %c0_36] : memref<9x4x4xf32, #tpu.memory_space<vmem>>, vector<1x4x4xf32>
    %41 = vector.shape_cast %40 : vector<1x4x4xf32> to vector<4x4xf32>
    %cst_37 = arith.constant dense<0.000000e+00> : vector<256x4xf32>
    %42 = tpu.matmul %39, %41, %cst_37 {dimension_numbers = #tpu.dot_dimension_numbers<[1], [0], [0], [1], [0, 0, 1, 1], [], []>} : vector<256x4xf32>, vector<4x4xf32>, vector<256x4xf32> -> vector<256x4xf32>
    %c0_38 = arith.constant 0 : index
    %c0_39 = arith.constant 0 : index
    %43 = vector.load %arg5[%c0_38, %c0_39] : memref<256x4xf32, #tpu.memory_space<vmem>>, vector<256x4xf32>
    %44 = arith.addf %43, %42 : vector<256x4xf32>
    %c0_40 = arith.constant 0 : index
    %c0_41 = arith.constant 0 : index
    %45 = vector.load %arg5[%c0_40, %c0_41] : memref<256x4xf32, #tpu.memory_space<vmem>>, vector<256x4xf32>
    tpu.vector_store %arg5[%c0_40, %c0_41], %44 {strides = array<i32>} : memref<256x4xf32, #tpu.memory_space<vmem>>, vector<256x4xf32>,
    %46 = vector.extract_strided_slice %7 {offsets = [0, 1, 2, 0], sizes = [1, 16, 16, 4], strides = [1, 1, 1, 1]} : vector<1x18x18x4xf32> to vector<1x16x16x4xf32>
    %47 = vector.shape_cast %46 : vector<1x16x16x4xf32> to vector<256x4xf32>
    %c5 = arith.constant 5 : index
    %c0_42 = arith.constant 0 : index
    %c0_43 = arith.constant 0 : index
    %48 = vector.load %arg3[%c5, %c0_42, %c0_43] : memref<9x4x4xf32, #tpu.memory_space<vmem>>, vector<1x4x4xf32>
    %49 = vector.shape_cast %48 : vector<1x4x4xf32> to vector<4x4xf32>
    %cst_44 = arith.constant dense<0.000000e+00> : vector<256x4xf32>
    %50 = tpu.matmul %47, %49, %cst_44 {dimension_numbers = #tpu.dot_dimension_numbers<[1], [0], [0], [1], [0, 0, 1, 1], [], []>} : vector<256x4xf32>, vector<4x4xf32>, vector<256x4xf32> -> vector<256x4xf32>
    %c0_45 = arith.constant 0 : index
    %c0_46 = arith.constant 0 : index
    %51 = vector.load %arg5[%c0_45, %c0_46] : memref<256x4xf32, #tpu.memory_space<vmem>>, vector<256x4xf32>
    %52 = arith.addf %51, %50 : vector<256x4xf32>
    %c0_47 = arith.constant 0 : index
    %c0_48 = arith.constant 0 : index
    %53 = vector.load %arg5[%c0_47, %c0_48] : memref<256x4xf32, #tpu.memory_space<vmem>>, vector<256x4xf32>
    tpu.vector_store %arg5[%c0_47, %c0_48], %52 {strides = array<i32>} : memref<256x4xf32, #tpu.memory_space<vmem>>, vector<256x4xf32>,
    %54 = vector.extract_strided_slice %7 {offsets = [0, 2, 0, 0], sizes = [1, 16, 16, 4], strides = [1, 1, 1, 1]} : vector<1x18x18x4xf32> to vector<1x16x16x4xf32>
    %55 = vector.shape_cast %54 : vector<1x16x16x4xf32> to vector<256x4xf32>
    %c6 = arith.constant 6 : index
    %c0_49 = arith.constant 0 : index
    %c0_50 = arith.constant 0 : index
    %56 = vector.load %arg3[%c6, %c0_49, %c0_50] : memref<9x4x4xf32, #tpu.memory_space<vmem>>, vector<1x4x4xf32>
    %57 = vector.shape_cast %56 : vector<1x4x4xf32> to vector<4x4xf32>
    %cst_51 = arith.constant dense<0.000000e+00> : vector<256x4xf32>
    %58 = tpu.matmul %55, %57, %cst_51 {dimension_numbers = #tpu.dot_dimension_numbers<[1], [0], [0], [1], [0, 0, 1, 1], [], []>} : vector<256x4xf32>, vector<4x4xf32>, vector<256x4xf32> -> vector<256x4xf32>
    %c0_52 = arith.constant 0 : index
    %c0_53 = arith.constant 0 : index
    %59 = vector.load %arg5[%c0_52, %c0_53] : memref<256x4xf32, #tpu.memory_space<vmem>>, vector<256x4xf32>
    %60 = arith.addf %59, %58 : vector<256x4xf32>
    %c0_54 = arith.constant 0 : index
    %c0_55 = arith.constant 0 : index
    %61 = vector.load %arg5[%c0_54, %c0_55] : memref<256x4xf32, #tpu.memory_space<vmem>>, vector<256x4xf32>
    tpu.vector_store %arg5[%c0_54, %c0_55], %60 {strides = array<i32>} : memref<256x4xf32, #tpu.memory_space<vmem>>, vector<256x4xf32>,
    %62 = vector.extract_strided_slice %7 {offsets = [0, 2, 1, 0], sizes = [1, 16, 16, 4], strides = [1, 1, 1, 1]} : vector<1x18x18x4xf32> to vector<1x16x16x4xf32>
    %63 = vector.shape_cast %62 : vector<1x16x16x4xf32> to vector<256x4xf32>
    %c7 = arith.constant 7 : index
    %c0_56 = arith.constant 0 : index
    %c0_57 = arith.constant 0 : index
    %64 = vector.load %arg3[%c7, %c0_56, %c0_57] : memref<9x4x4xf32, #tpu.memory_space<vmem>>, vector<1x4x4xf32>
    %65 = vector.shape_cast %64 : vector<1x4x4xf32> to vector<4x4xf32>
    %cst_58 = arith.constant dense<0.000000e+00> : vector<256x4xf32>
    %66 = tpu.matmul %63, %65, %cst_58 {dimension_numbers = #tpu.dot_dimension_numbers<[1], [0], [0], [1], [0, 0, 1, 1], [], []>} : vector<256x4xf32>, vector<4x4xf32>, vector<256x4xf32> -> vector<256x4xf32>
    %c0_59 = arith.constant 0 : index
    %c0_60 = arith.constant 0 : index
    %67 = vector.load %arg5[%c0_59, %c0_60] : memref<256x4xf32, #tpu.memory_space<vmem>>, vector<256x4xf32>
    %68 = arith.addf %67, %66 : vector<256x4xf32>
    %c0_61 = arith.constant 0 : index
    %c0_62 = arith.constant 0 : index
    %69 = vector.load %arg5[%c0_61, %c0_62] : memref<256x4xf32, #tpu.memory_space<vmem>>, vector<256x4xf32>
    tpu.vector_store %arg5[%c0_61, %c0_62], %68 {strides = array<i32>} : memref<256x4xf32, #tpu.memory_space<vmem>>, vector<256x4xf32>,
    %70 = vector.extract_strided_slice %7 {offsets = [0, 2, 2, 0], sizes = [1, 16, 16, 4], strides = [1, 1, 1, 1]} : vector<1x18x18x4xf32> to vector<1x16x16x4xf32>
    %71 = vector.shape_cast %70 : vector<1x16x16x4xf32> to vector<256x4xf32>
    %c8 = arith.constant 8 : index
    %c0_63 = arith.constant 0 : index
    %c0_64 = arith.constant 0 : index
    %72 = vector.load %arg3[%c8, %c0_63, %c0_64] : memref<9x4x4xf32, #tpu.memory_space<vmem>>, vector<1x4x4xf32>
    %73 = vector.shape_cast %72 : vector<1x4x4xf32> to vector<4x4xf32>
    %cst_65 = arith.constant dense<0.000000e+00> : vector<256x4xf32>
    %74 = tpu.matmul %71, %73, %cst_65 {dimension_numbers = #tpu.dot_dimension_numbers<[1], [0], [0], [1], [0, 0, 1, 1], [], []>} : vector<256x4xf32>, vector<4x4xf32>, vector<256x4xf32> -> vector<256x4xf32>
    %c0_66 = arith.constant 0 : index
    %c0_67 = arith.constant 0 : index
    %75 = vector.load %arg5[%c0_66, %c0_67] : memref<256x4xf32, #tpu.memory_space<vmem>>, vector<256x4xf32>
    %76 = arith.addf %75, %74 : vector<256x4xf32>
    %c0_68 = arith.constant 0 : index
    %c0_69 = arith.constant 0 : index
    %77 = vector.load %arg5[%c0_68, %c0_69] : memref<256x4xf32, #tpu.memory_space<vmem>>, vector<256x4xf32>
    tpu.vector_store %arg5[%c0_68, %c0_69], %76 {strides = array<i32>} : memref<256x4xf32, #tpu.memory_space<vmem>>, vector<256x4xf32>,
    %c0_70 = arith.constant 0 : index
    %c0_71 = arith.constant 0 : index
    %78 = vector.load %arg5[%c0_70, %c0_71] : memref<256x4xf32, #tpu.memory_space<vmem>>, vector<256x4xf32>
    %79 = vector.shape_cast %78 : vector<256x4xf32> to vector<1x16x16x4xf32>
    %c0_72 = arith.constant 0 : index
    %c0_73 = arith.constant 0 : index
    %c0_74 = arith.constant 0 : index
    %c0_75 = arith.constant 0 : index
    %80 = vector.load %arg4[%c0_72, %c0_73, %c0_74, %c0_75] : memref<1x16x16x4xf32, #tpu.memory_space<vmem>>, vector<1x16x16x4xf32>
    tpu.vector_store %arg4[%c0_72, %c0_73, %c0_74, %c0_75], %79 {strides = array<i32>} : memref<1x16x16x4xf32, #tpu.memory_space<vmem>>, vector<1x16x16x4xf32>,
    return
  }
  func.func @transform_0(%arg0: i32) -> (i32, i32, i32, i32) {
    %c0_i32 = arith.constant 0 : i32
    %c0_i32_0 = arith.constant 0 : i32
    %c0_i32_1 = arith.constant 0 : i32
    %c0_i32_2 = arith.constant 0 : i32
    return %arg0, %c0_i32, %c0_i32_0, %c0_i32_1 : i32, i32, i32, i32
  }
  func.func @transform_1(%arg0: i32) -> (i32, i32, i32, i32) {
    %c0_i32 = arith.constant 0 : i32
    %c0_i32_0 = arith.constant 0 : i32
    %c0_i32_1 = arith.constant 0 : i32
    %c0_i32_2 = arith.constant 0 : i32
    return %arg0, %c0_i32, %c0_i32_0, %c0_i32_1 : i32, i32, i32, i32
  }
  func.func @transform_2(%arg0: i32) -> (i32, i32, i32) {
    %c0_i32 = arith.constant 0 : i32
    %c0_i32_0 = arith.constant 0 : i32
    %c0_i32_1 = arith.constant 0 : i32
    %c0_i32_2 = arith.constant 0 : i32
    return %c0_i32, %c0_i32_0, %c0_i32_1 : i32, i32, i32
  }
  func.func @transform_3(%arg0: i32) -> (i32, i32, i32, i32) {
    %c0_i32 = arith.constant 0 : i32
    %c0_i32_0 = arith.constant 0 : i32
    %c0_i32_1 = arith.constant 0 : i32
    %c0_i32_2 = arith.constant 0 : i32
    return %arg0, %c0_i32, %c0_i32_0, %c0_i32_1 : i32, i32, i32, i32
  }
}

</mosaic_0001>

<llo_original>
// kernel: mask_conv2d.1
$region0: #{mask_conv2d.1}
  #allocation0 [shape = 'u32[]', space=smem, size = 0x4, offset = 0x4, fixed_abs, tag = 'smem constant byte address 0x4 - core index']
  #allocation1 [shape = 'u32[144,128]{1,0:T(1,128)}', space=vmem, size = 0x12000, scoped, tag = 'internal scratch']
  #allocation2 [shape = 'f32[256,4]{1,0:T(8,128)}', space=vmem, size = 0x20000, scoped, tag = 'scratch operand']
  %s0 = inlined_call_operand.vmem [shape: f32[2,18,18,4], index: 0, kind: input, shape index: {}]
  %s1 = inlined_call_operand.vmem [shape: f32[2,18,18,1], index: 1, kind: input, shape index: {}]
  %s2 = inlined_call_operand.vmem [shape: f32[9,4,4], index: 2, kind: input, shape index: {}]
  %s3 = inlined_call_operand.vmem [shape: f32[2,16,16,4], index: 3, kind: output, shape index: {}]
  %s4 = sld [smem:[#allocation0]]
  $region45: #{mask_conv2d.1} parent=0
    _
  %s6 = ssub.s32 1, %s4
  %s7 = scalar_select 0, %s6, %s4
  loop: start=0, step=1, limit=4
  $region2: #{mask_conv2d.1} parent=0 // loop_pre_header
    _
  $region3: #{mask_conv2d.1} parent=0 // loop_header
    %s9 = sphi 0, %s13
    %p10 = scmp.ge.s32.totalorder %s9, 4
    %s19 = sphi 0, %s21
    %s22 = sphi 0, %s19
    %s23 = sphi 0, %s22
    %s39 = sphi 0, %s23
    %s45 = sphi 0, %s47
    %s48 = sphi 0, %s45
    %s49 = sphi 0, %s48
    %s65 = sphi 0, %s49
    %s69 = sphi 0, %s69
    %s71 = sphi 0, %s69
    %s72 = sphi 0, %s71
    %s86 = sphi 0, %s72
    %s92 = sphi 0, %s94
    %s95 = sphi 0, %s92
    %s96 = sphi 0, %s95
    %s112 = sphi 0, %s96
  $region4: #{mask_conv2d.1} parent=0 // loop_header_branch
    %12 = sbr.rel (%p10) target = $region8
  $region5: #{mask_conv2d.1} parent=0 // loop_body
    %s14 = ssub.s32 %s9, 1
    %s15 = ssub.s32 %s9, 2
    %s16 = sadd.s32 %s9, 1
    %s17 = ssub.s32 %s9, %s16
    %p18 = scmp.eq.s32.totalorder %s17, 0
    %s20 = sadd.s32 %s19, 1
    %s21 = scalar_select %p18, %s19, %s20
    %p24 = pneg %p18
    %p25 = scmp.eq.s32.totalorder %s9, 1
    %p26 = por %p24, %p25
    %p27 = scmp.ne.s32.totalorder %s19, %s22
    %p28 = scmp.eq.s32.totalorder %s9, 0
    %p29 = por %p27, %p28
    %p30 = scmp.ne.s32.totalorder %s19, %s22
    %p31 = scmp.eq.s32.totalorder %s14, 1
    %p32 = por %p30, %p31
    %p33 = scmp.ne.s32.totalorder %s22, %s23
    %p34 = scmp.eq.s32.totalorder %s14, 0
    %p35 = por %p33, %p34
    %p36 = scmp.ne.s32.totalorder %s22, %s23
    %p37 = scmp.eq.s32.totalorder %s15, 1
    %p38 = por %p36, %p37
    %p40 = scmp.ne.s32.totalorder %s23, %s39
    %p41 = scmp.eq.s32.totalorder %s15, 0
    %p42 = por %p40, %p41
    %s43 = ssub.s32 %s9, %s16
    %p44 = scmp.eq.s32.totalorder %s43, 0
    %s46 = sadd.s32 %s45, 1
    %s47 = scalar_select %p44, %s45, %s46
    %p50 = pneg %p44
    %p51 = scmp.eq.s32.totalorder %s9, 1
    %p52 = por %p50, %p51
    %p53 = scmp.ne.s32.totalorder %s45, %s48
    %p54 = scmp.eq.s32.totalorder %s9, 0
    %p55 = por %p53, %p54
    %p56 = scmp.ne.s32.totalorder %s45, %s48
    %p57 = scmp.eq.s32.totalorder %s14, 1
    %p58 = por %p56, %p57
    %p59 = scmp.ne.s32.totalorder %s48, %s49
    %p60 = scmp.eq.s32.totalorder %s14, 0
    %p61 = por %p59, %p60
    %p62 = scmp.ne.s32.totalorder %s48, %s49
    %p63 = scmp.eq.s32.totalorder %s15, 1
    %p64 = por %p62, %p63
    %p66 = scmp.ne.s32.totalorder %s49, %s65
    %p67 = scmp.eq.s32.totalorder %s15, 0
    %p68 = por %p66, %p67
    %s70 = sadd.s32 %s69, 1
    %p73 = scmp.eq.s32.totalorder %s9, 1
    %p74 = scmp.ne.s32.totalorder %s69, %s71
    %p75 = scmp.eq.s32.totalorder %s9, 0
    %p76 = por %p74, %p75
    %p77 = scmp.ne.s32.totalorder %s69, %s71
    %p78 = scmp.eq.s32.totalorder %s14, 1
    %p79 = por %p77, %p78
    %p80 = scmp.ne.s32.totalorder %s71, %s72
    %p81 = scmp.eq.s32.totalorder %s14, 0
    %p82 = por %p80, %p81
    %p83 = scmp.ne.s32.totalorder %s71, %s72
    %p84 = scmp.eq.s32.totalorder %s15, 1
    %p85 = por %p83, %p84
    %p87 = scmp.ne.s32.totalorder %s72, %s86
    %p88 = scmp.eq.s32.totalorder %s15, 0
    %p89 = por %p87, %p88
    %s90 = ssub.s32 %s9, %s16
    %p91 = scmp.eq.s32.totalorder %s90, 0
    %s93 = sadd.s32 %s92, 1
    %s94 = scalar_select %p91, %s92, %s93
    %p97 = pneg %p91
    %p98 = scmp.eq.s32.totalorder %s9, 1
    %p99 = por %p97, %p98
    %p100 = scmp.ne.s32.totalorder %s92, %s95
    %p101 = scmp.eq.s32.totalorder %s9, 0
    %p102 = por %p100, %p101
    %p103 = scmp.ne.s32.totalorder %s92, %s95
    %p104 = scmp.eq.s32.totalorder %s14, 1
    %p105 = por %p103, %p104
    %p106 = scmp.ne.s32.totalorder %s95, %s96
    %p107 = scmp.eq.s32.totalorder %s14, 0
    %p108 = por %p106, %p107
    %p109 = scmp.ne.s32.totalorder %s95, %s96
    %p110 = scmp.eq.s32.totalorder %s15, 1
    %p111 = por %p109, %p110
    %p113 = scmp.ne.s32.totalorder %s96, %s112
    %p114 = scmp.eq.s32.totalorder %s15, 0
    %p115 = por %p113, %p114
    %p116 = scmp.le.s32.totalorder 1, %s9
    %p117 = scmp.lt.s32.totalorder %s9, 3
    %p118 = pnand %p116, %p117
    %p119 = pneg %p118
    // Predicated region
    $region9: #{mask_conv2d.1} parent=5 // pred_check
      _
    $region10: #{mask_conv2d.1} parent=5 // pred_check_branch
      %121 = sbr.rel (%p118) target = $region12
    $region11: #{mask_conv2d.1} parent=5 // pred_region
      %s122 = ssub.s32 %s9, 1
      // Predicated region
      $region13: #{mask_conv2d.1} parent=11 // pred_check
        %p123 = pneg %p82
      $region14: #{mask_conv2d.1} parent=11 // pred_check_branch
        %125 = sbr.rel (%p123) target = $region16
      $region15: #{mask_conv2d.1} parent=11 // pred_region
        _
      $region16: #{mask_conv2d.1} parent=11 // pred_fallthru
        _
    $region12: #{mask_conv2d.1} parent=5 // pred_fallthru
      _
    %p126 = scmp.lt.s32.totalorder %s9, 2
    // Predicated region
    $region17: #{mask_conv2d.1} parent=5 // pred_check
      %p127 = pneg %p126
    $region18: #{mask_conv2d.1} parent=5 // pred_check_branch
      %129 = sbr.rel (%p127) target = $region20
    $region19: #{mask_conv2d.1} parent=5 // pred_region
      // Predicated region
      $region21: #{mask_conv2d.1} parent=19 // pred_check
        %p130 = pneg %p29
      $region22: #{mask_conv2d.1} parent=19 // pred_check_branch
        %132 = sbr.rel (%p130) target = $region24
      $region23: #{mask_conv2d.1} parent=19 // pred_region
        %p133 = scmp.lt.s32.totalorder %s9, 1
        %s134 = scalar_select %p133, %s9, 1
        %s135 = smul.addr %s134, 54
        %s136 = smul.addr %s135, 8
        %s137 = scalar_lea.vmem %s0, %s136
      $region24: #{mask_conv2d.1} parent=19 // pred_fallthru
        _
      // Predicated region
      $region25: #{mask_conv2d.1} parent=19 // pred_check
        %p138 = pneg %p55
      $region26: #{mask_conv2d.1} parent=19 // pred_check_branch
        %140 = sbr.rel (%p138) target = $region28
      $region27: #{mask_conv2d.1} parent=19 // pred_region
        %p141 = scmp.lt.s32.totalorder %s9, 1
        %s142 = scalar_select %p141, %s9, 1
        %s143 = smul.addr %s142, 54
        %s144 = smul.addr %s143, 8
        %s145 = scalar_lea.vmem %s1, %s144
      $region28: #{mask_conv2d.1} parent=19 // pred_fallthru
        _
    $region20: #{mask_conv2d.1} parent=5 // pred_fallthru
      _
    %p146 = scmp.le.s32.totalorder 1, %s9
    %p147 = scmp.lt.s32.totalorder %s9, 3
    %p148 = pnand %p146, %p147
    %p149 = pneg %p148
    // Predicated region
    $region29: #{mask_conv2d.1} parent=5 // pred_check
      _
    $region30: #{mask_conv2d.1} parent=5 // pred_check_branch
      %151 = sbr.rel (%p148) target = $region32
    $region31: #{mask_conv2d.1} parent=5 // pred_region
      %s152 = ssub.s32 %s9, 1
      %p153 = scmp.lt.s32.totalorder %s14, 1
      %s154 = scalar_select %p153, %s14, 1
      %s155 = smul.addr %s154, 54
      %s156 = smul.addr %s155, 8
      %s157 = scalar_lea.vmem %s0, %s156
      %p158 = pneg %p35
      %p159 = pneg %p32
      %p160 = scmp.lt.s32.totalorder %s14, 1
      %s161 = scalar_select %p160, %s14, 1
      %s162 = smul.addr %s161, 54
      %s163 = smul.addr %s162, 8
      %s164 = scalar_lea.vmem %s1, %s163
      %p165 = pneg %p61
      %p166 = pneg %p58
      %p167 = pneg %p82
      %p168 = pneg %p79
      %p169 = pneg %p108
      %p170 = pneg %p105
      %p171 = scmp.lt.s32.totalorder %s14, 1
      %s172 = scalar_select %p171, %s14, 1
      %s173 = smul.addr %s172, 32
      %s174 = smul.addr %s173, 8
      %s175 = scalar_lea.vmem %s3, %s174
      %p176 = scmp.lt.s32.totalorder %s14, 1
      %s177 = scalar_select %p176, %s14, 1
      %s178 = smul.addr %s177, 54
      %s179 = smul.addr %s178, 8
      %s180 = scalar_lea.vmem %s0, %s179
      %p181 = scmp.lt.s32.totalorder %s14, 1
      %s182 = scalar_select %p181, %s14, 1
      %s183 = smul.addr %s182, 54
      %s184 = smul.addr %s183, 8
      %s185 = scalar_lea.vmem %s1, %s184
      %p186 = scmp.lt.s32.totalorder %s14, 1
      %s187 = scalar_select %p186, %s14, 1
      %s188 = smul.addr %s187, 32
      %s189 = smul.addr %s188, 8
      %s190 = scalar_lea.vmem %s3, %s189
      %v191 = vld [vmem:[%s185] sm:$0xff]
      %v192 = vld [vmem:[%s185 + $0x8] sm:$0xff]
      %v193 = vld [vmem:[%s185 + $0x10] sm:$0x3]
      %v194 = vld [vmem:[%s185 + $0x18] sm:$0xff]
      %v195 = vld [vmem:[%s185 + $0x20] sm:$0xff]
      %v196 = vld [vmem:[%s185 + $0x28] sm:$0x3]
      %v197 = vld [vmem:[%s185 + $0x30] sm:$0xff]
      %v198 = vld [vmem:[%s185 + $0x38] sm:$0xff]
      %v199 = vld [vmem:[%s185 + $0x40] sm:$0x3]
      %v200 = vld [vmem:[%s185 + $0x48] sm:$0xff]
      %v201 = vld [vmem:[%s185 + $0x50] sm:$0xff]
      %v202 = vld [vmem:[%s185 + $0x58] sm:$0x3]
      %v203 = vld [vmem:[%s185 + $0x60] sm:$0xff]
      %v204 = vld [vmem:[%s185 + $0x68] sm:$0xff]
      %v205 = vld [vmem:[%s185 + $0x70] sm:$0x3]
      %v206 = vld [vmem:[%s185 + $0x78] sm:$0xff]
      %v207 = vld [vmem:[%s185 + $0x80] sm:$0xff]
      %v208 = vld [vmem:[%s185 + $0x88] sm:$0x3]
      %v209 = vld [vmem:[%s185 + $0x90] sm:$0xff]
      %v210 = vld [vmem:[%s185 + $0x98] sm:$0xff]
      %v211 = vld [vmem:[%s185 + $0xa0] sm:$0x3]
      %v212 = vld [vmem:[%s185 + $0xa8] sm:$0xff]
      %v213 = vld [vmem:[%s185 + $0xb0] sm:$0xff]
      %v214 = vld [vmem:[%s185 + $0xb8] sm:$0x3]
      %v215 = vld [vmem:[%s185 + $0xc0] sm:$0xff]
      %v216 = vld [vmem:[%s185 + $0xc8] sm:$0xff]
      %v217 = vld [vmem:[%s185 + $0xd0] sm:$0x3]
      %v218 = vld [vmem:[%s185 + $0xd8] sm:$0xff]
      %v219 = vld [vmem:[%s185 + $0xe0] sm:$0xff]
      %v220 = vld [vmem:[%s185 + $0xe8] sm:$0x3]
      %v221 = vld [vmem:[%s185 + $0xf0] sm:$0xff]
      %v222 = vld [vmem:[%s185 + $0xf8] sm:$0xff]
      %v223 = vld [vmem:[%s185 + $0x100] sm:$0x3]
      %v224 = vld [vmem:[%s185 + $0x108] sm:$0xff]
      %v225 = vld [vmem:[%s185 + $0x110] sm:$0xff]
      %v226 = vld [vmem:[%s185 + $0x118] sm:$0x3]
      %v227 = vld [vmem:[%s185 + $0x120] sm:$0xff]
      %v228 = vld [vmem:[%s185 + $0x128] sm:$0xff]
      %v229 = vld [vmem:[%s185 + $0x130] sm:$0x3]
      %v230 = vld [vmem:[%s185 + $0x138] sm:$0xff]
      %v231 = vld [vmem:[%s185 + $0x140] sm:$0xff]
      %v232 = vld [vmem:[%s185 + $0x148] sm:$0x3]
      %v233 = vld [vmem:[%s185 + $0x150] sm:$0xff]
      %v234 = vld [vmem:[%s185 + $0x158] sm:$0xff]
      %v235 = vld [vmem:[%s185 + $0x160] sm:$0x3]
      %v236 = vld [vmem:[%s185 + $0x168] sm:$0xff]
      %v237 = vld [vmem:[%s185 + $0x170] sm:$0xff]
      %v238 = vld [vmem:[%s185 + $0x178] sm:$0x3]
      %v239 = vld [vmem:[%s185 + $0x180] sm:$0xff]
      %v240 = vld [vmem:[%s185 + $0x188] sm:$0xff]
      %v241 = vld [vmem:[%s185 + $0x190] sm:$0x3]
      %v242 = vld [vmem:[%s185 + $0x198] sm:$0xff]
      %v243 = vld [vmem:[%s185 + $0x1a0] sm:$0xff]
      %v244 = vld [vmem:[%s185 + $0x1a8] sm:$0x3]
      %vm245 = vcmp.ne.f32.partialorder %v191, 0.0
      %vm246 = vcmp.ne.f32.partialorder %v192, 0.0
      %vm247 = vcmp.ne.f32.partialorder %v193, 0.0
      %vm248 = vcmp.ne.f32.partialorder %v194, 0.0
      %vm249 = vcmp.ne.f32.partialorder %v195, 0.0
      %vm250 = vcmp.ne.f32.partialorder %v196, 0.0
      %vm251 = vcmp.ne.f32.partialorder %v197, 0.0
      %vm252 = vcmp.ne.f32.partialorder %v198, 0.0
      %vm253 = vcmp.ne.f32.partialorder %v199, 0.0
      %vm254 = vcmp.ne.f32.partialorder %v200, 0.0
      %vm255 = vcmp.ne.f32.partialorder %v201, 0.0
      %vm256 = vcmp.ne.f32.partialorder %v202, 0.0
      %vm257 = vcmp.ne.f32.partialorder %v203, 0.0
      %vm258 = vcmp.ne.f32.partialorder %v204, 0.0
      %vm259 = vcmp.ne.f32.partialorder %v205, 0.0
      %vm260 = vcmp.ne.f32.partialorder %v206, 0.0
      %vm261 = vcmp.ne.f32.partialorder %v207, 0.0
      %vm262 = vcmp.ne.f32.partialorder %v208, 0.0
      %vm263 = vcmp.ne.f32.partialorder %v209, 0.0
      %vm264 = vcmp.ne.f32.partialorder %v210, 0.0
      %vm265 = vcmp.ne.f32.partialorder %v211, 0.0
      %vm266 = vcmp.ne.f32.partialorder %v212, 0.0
      %vm267 = vcmp.ne.f32.partialorder %v213, 0.0
      %vm268 = vcmp.ne.f32.partialorder %v214, 0.0
      %vm269 = vcmp.ne.f32.partialorder %v215, 0.0
      %vm270 = vcmp.ne.f32.partialorder %v216, 0.0
      %vm271 = vcmp.ne.f32.partialorder %v217, 0.0
      %vm272 = vcmp.ne.f32.partialorder %v218, 0.0
      %vm273 = vcmp.ne.f32.partialorder %v219, 0.0
      %vm274 = vcmp.ne.f32.partialorder %v220, 0.0
      %vm275 = vcmp.ne.f32.partialorder %v221, 0.0
      %vm276 = vcmp.ne.f32.partialorder %v222, 0.0
      %vm277 = vcmp.ne.f32.partialorder %v223, 0.0
      %vm278 = vcmp.ne.f32.partialorder %v224, 0.0
      %vm279 = vcmp.ne.f32.partialorder %v225, 0.0
      %vm280 = vcmp.ne.f32.partialorder %v226, 0.0
      %vm281 = vcmp.ne.f32.partialorder %v227, 0.0
      %vm282 = vcmp.ne.f32.partialorder %v228, 0.0
      %vm283 = vcmp.ne.f32.partialorder %v229, 0.0
      %vm284 = vcmp.ne.f32.partialorder %v230, 0.0
      %vm285 = vcmp.ne.f32.partialorder %v231, 0.0
      %vm286 = vcmp.ne.f32.partialorder %v232, 0.0
      %vm287 = vcmp.ne.f32.partialorder %v233, 0.0
      %vm288 = vcmp.ne.f32.partialorder %v234, 0.0
      %vm289 = vcmp.ne.f32.partialorder %v235, 0.0
      %vm290 = vcmp.ne.f32.partialorder %v236, 0.0
      %vm291 = vcmp.ne.f32.partialorder %v237, 0.0
      %vm292 = vcmp.ne.f32.partialorder %v238, 0.0
      %vm293 = vcmp.ne.f32.partialorder %v239, 0.0
      %vm294 = vcmp.ne.f32.partialorder %v240, 0.0
      %vm295 = vcmp.ne.f32.partialorder %v241, 0.0
      %vm296 = vcmp.ne.f32.partialorder %v242, 0.0
      %vm297 = vcmp.ne.f32.partialorder %v243, 0.0
      %vm298 = vcmp.ne.f32.partialorder %v244, 0.0
      %v299 = vld [vmem:[%s180] sm:$0xff]
      %v300 = vld [vmem:[%s180 + $0x8] sm:$0xff]
      %v301 = vld [vmem:[%s180 + $0x10] sm:$0x3]
      %v302 = vld [vmem:[%s180 + $0x18] sm:$0xff]
      %v303 = vld [vmem:[%s180 + $0x20] sm:$0xff]
      %v304 = vld [vmem:[%s180 + $0x28] sm:$0x3]
      %v305 = vld [vmem:[%s180 + $0x30] sm:$0xff]
      %v306 = vld [vmem:[%s180 + $0x38] sm:$0xff]
      %v307 = vld [vmem:[%s180 + $0x40] sm:$0x3]
      %v308 = vld [vmem:[%s180 + $0x48] sm:$0xff]
      %v309 = vld [vmem:[%s180 + $0x50] sm:$0xff]
      %v310 = vld [vmem:[%s180 + $0x58] sm:$0x3]
      %v311 = vld [vmem:[%s180 + $0x60] sm:$0xff]
      %v312 = vld [vmem:[%s180 + $0x68] sm:$0xff]
      %v313 = vld [vmem:[%s180 + $0x70] sm:$0x3]
      %v314 = vld [vmem:[%s180 + $0x78] sm:$0xff]
      %v315 = vld [vmem:[%s180 + $0x80] sm:$0xff]
      %v316 = vld [vmem:[%s180 + $0x88] sm:$0x3]
      %v317 = vld [vmem:[%s180 + $0x90] sm:$0xff]
      %v318 = vld [vmem:[%s180 + $0x98] sm:$0xff]
      %v319 = vld [vmem:[%s180 + $0xa0] sm:$0x3]
      %v320 = vld [vmem:[%s180 + $0xa8] sm:$0xff]
      %v321 = vld [vmem:[%s180 + $0xb0] sm:$0xff]
      %v322 = vld [vmem:[%s180 + $0xb8] sm:$0x3]
      %v323 = vld [vmem:[%s180 + $0xc0] sm:$0xff]
      %v324 = vld [vmem:[%s180 + $0xc8] sm:$0xff]
      %v325 = vld [vmem:[%s180 + $0xd0] sm:$0x3]
      %v326 = vld [vmem:[%s180 + $0xd8] sm:$0xff]
      %v327 = vld [vmem:[%s180 + $0xe0] sm:$0xff]
      %v328 = vld [vmem:[%s180 + $0xe8] sm:$0x3]
      %v329 = vld [vmem:[%s180 + $0xf0] sm:$0xff]
      %v330 = vld [vmem:[%s180 + $0xf8] sm:$0xff]
      %v331 = vld [vmem:[%s180 + $0x100] sm:$0x3]
      %v332 = vld [vmem:[%s180 + $0x108] sm:$0xff]
      %v333 = vld [vmem:[%s180 + $0x110] sm:$0xff]
      %v334 = vld [vmem:[%s180 + $0x118] sm:$0x3]
      %v335 = vld [vmem:[%s180 + $0x120] sm:$0xff]
      %v336 = vld [vmem:[%s180 + $0x128] sm:$0xff]
      %v337 = vld [vmem:[%s180 + $0x130] sm:$0x3]
      %v338 = vld [vmem:[%s180 + $0x138] sm:$0xff]
      %v339 = vld [vmem:[%s180 + $0x140] sm:$0xff]
      %v340 = vld [vmem:[%s180 + $0x148] sm:$0x3]
      %v341 = vld [vmem:[%s180 + $0x150] sm:$0xff]
      %v342 = vld [vmem:[%s180 + $0x158] sm:$0xff]
      %v343 = vld [vmem:[%s180 + $0x160] sm:$0x3]
      %v344 = vld [vmem:[%s180 + $0x168] sm:$0xff]
      %v345 = vld [vmem:[%s180 + $0x170] sm:$0xff]
      %v346 = vld [vmem:[%s180 + $0x178] sm:$0x3]
      %v347 = vld [vmem:[%s180 + $0x180] sm:$0xff]
      %v348 = vld [vmem:[%s180 + $0x188] sm:$0xff]
      %v349 = vld [vmem:[%s180 + $0x190] sm:$0x3]
      %v350 = vld [vmem:[%s180 + $0x198] sm:$0xff]
      %v351 = vld [vmem:[%s180 + $0x1a0] sm:$0xff]
      %v352 = vld [vmem:[%s180 + $0x1a8] sm:$0x3]
      %v353 = vsel %vm245, 1, 0
      %v354 = vsel %vm246, 1, 0
      %v355 = vsel %vm247, 1, 0
      %v356 = vsel %vm248, 1, 0
      %v357 = vsel %vm249, 1, 0
      %v358 = vsel %vm250, 1, 0
      %v359 = vsel %vm251, 1, 0
      %v360 = vsel %vm252, 1, 0
      %v361 = vsel %vm253, 1, 0
      %v362 = vsel %vm254, 1, 0
      %v363 = vsel %vm255, 1, 0
      %v364 = vsel %vm256, 1, 0
      %v365 = vsel %vm257, 1, 0
      %v366 = vsel %vm258, 1, 0
      %v367 = vsel %vm259, 1, 0
      %v368 = vsel %vm260, 1, 0
      %v369 = vsel %vm261, 1, 0
      %v370 = vsel %vm262, 1, 0
      %v371 = vsel %vm263, 1, 0
      %v372 = vsel %vm264, 1, 0
      %v373 = vsel %vm265, 1, 0
      %v374 = vsel %vm266, 1, 0
      %v375 = vsel %vm267, 1, 0
      %v376 = vsel %vm268, 1, 0
      %v377 = vsel %vm269, 1, 0
      %v378 = vsel %vm270, 1, 0
      %v379 = vsel %vm271, 1, 0
      %v380 = vsel %vm272, 1, 0
      %v381 = vsel %vm273, 1, 0
      %v382 = vsel %vm274, 1, 0
      %v383 = vsel %vm275, 1, 0
      %v384 = vsel %vm276, 1, 0
      %v385 = vsel %vm277, 1, 0
      %v386 = vsel %vm278, 1, 0
      %v387 = vsel %vm279, 1, 0
      %v388 = vsel %vm280, 1, 0
      %v389 = vsel %vm281, 1, 0
      %v390 = vsel %vm282, 1, 0
      %v391 = vsel %vm283, 1, 0
      %v392 = vsel %vm284, 1, 0
      %v393 = vsel %vm285, 1, 0
      %v394 = vsel %vm286, 1, 0
      %v395 = vsel %vm287, 1, 0
      %v396 = vsel %vm288, 1, 0
      %v397 = vsel %vm289, 1, 0
      %v398 = vsel %vm290, 1, 0
      %v399 = vsel %vm291, 1, 0
      %v400 = vsel %vm292, 1, 0
      %v401 = vsel %vm293, 1, 0
      %v402 = vsel %vm294, 1, 0
      %v403 = vsel %vm295, 1, 0
      %v404 = vsel %vm296, 1, 0
      %v405 = vsel %vm297, 1, 0
      %v406 = vsel %vm298, 1, 0
      %407 = vset.pattern.permute.xlu0 0
      %408 = vperm.xlu0 %407, %v353
      %v409 = vpop.permute.xlu0 %408
      %410 = vset.pattern.permute.xlu0 0
      %411 = vperm.xlu0 %410, %v354
      %v412 = vpop.permute.xlu0 %411
      %413 = vset.pattern.permute.xlu0 0
      %414 = vperm.xlu0 %413, %v355
      %v415 = vpop.permute.xlu0 %414
      %416 = vset.pattern.permute.xlu0 0
      %417 = vperm.xlu0 %416, %v356
      %v418 = vpop.permute.xlu0 %417
      %419 = vset.pattern.permute.xlu0 0
      %420 = vperm.xlu0 %419, %v357
      %v421 = vpop.permute.xlu0 %420
      %422 = vset.pattern.permute.xlu0 0
      %423 = vperm.xlu0 %422, %v358
      %v424 = vpop.permute.xlu0 %423
      %425 = vset.pattern.permute.xlu0 0
      %426 = vperm.xlu0 %425, %v359
      %v427 = vpop.permute.xlu0 %426
      %428 = vset.pattern.permute.xlu0 0
      %429 = vperm.xlu0 %428, %v360
      %v430 = vpop.permute.xlu0 %429
      %431 = vset.pattern.permute.xlu0 0
      %432 = vperm.xlu0 %431, %v361
      %v433 = vpop.permute.xlu0 %432
      %434 = vset.pattern.permute.xlu0 0
      %435 = vperm.xlu0 %434, %v362
      %v436 = vpop.permute.xlu0 %435
      %437 = vset.pattern.permute.xlu0 0
      %438 = vperm.xlu0 %437, %v363
      %v439 = vpop.permute.xlu0 %438
      %440 = vset.pattern.permute.xlu0 0
      %441 = vperm.xlu0 %440, %v364
      %v442 = vpop.permute.xlu0 %441
      %443 = vset.pattern.permute.xlu0 0
      %444 = vperm.xlu0 %443, %v365
      %v445 = vpop.permute.xlu0 %444
      %446 = vset.pattern.permute.xlu0 0
      %447 = vperm.xlu0 %446, %v366
      %v448 = vpop.permute.xlu0 %447
      %449 = vset.pattern.permute.xlu0 0
      %450 = vperm.xlu0 %449, %v367
      %v451 = vpop.permute.xlu0 %450
      %452 = vset.pattern.permute.xlu0 0
      %453 = vperm.xlu0 %452, %v368
      %v454 = vpop.permute.xlu0 %453
      %455 = vset.pattern.permute.xlu0 0
      %456 = vperm.xlu0 %455, %v369
      %v457 = vpop.permute.xlu0 %456
      %458 = vset.pattern.permute.xlu0 0
      %459 = vperm.xlu0 %458, %v370
      %v460 = vpop.permute.xlu0 %459
      %461 = vset.pattern.permute.xlu0 0
      %462 = vperm.xlu0 %461, %v371
      %v463 = vpop.permute.xlu0 %462
      %464 = vset.pattern.permute.xlu0 0
      %465 = vperm.xlu0 %464, %v372
      %v466 = vpop.permute.xlu0 %465
      %467 = vset.pattern.permute.xlu0 0
      %468 = vperm.xlu0 %467, %v373
      %v469 = vpop.permute.xlu0 %468
      %470 = vset.pattern.permute.xlu0 0
      %471 = vperm.xlu0 %470, %v374
      %v472 = vpop.permute.xlu0 %471
      %473 = vset.pattern.permute.xlu0 0
      %474 = vperm.xlu0 %473, %v375
      %v475 = vpop.permute.xlu0 %474
      %476 = vset.pattern.permute.xlu0 0
      %477 = vperm.xlu0 %476, %v376
      %v478 = vpop.permute.xlu0 %477
      %479 = vset.pattern.permute.xlu0 0
      %480 = vperm.xlu0 %479, %v377
      %v481 = vpop.permute.xlu0 %480
      %482 = vset.pattern.permute.xlu0 0
      %483 = vperm.xlu0 %482, %v378
      %v484 = vpop.permute.xlu0 %483
      %485 = vset.pattern.permute.xlu0 0
      %486 = vperm.xlu0 %485, %v379
      %v487 = vpop.permute.xlu0 %486
      %488 = vset.pattern.permute.xlu0 0
      %489 = vperm.xlu0 %488, %v380
      %v490 = vpop.permute.xlu0 %489
      %491 = vset.pattern.permute.xlu0 0
      %492 = vperm.xlu0 %491, %v381
      %v493 = vpop.permute.xlu0 %492
      %494 = vset.pattern.permute.xlu0 0
      %495 = vperm.xlu0 %494, %v382
      %v496 = vpop.permute.xlu0 %495
      %497 = vset.pattern.permute.xlu0 0
      %498 = vperm.xlu0 %497, %v383
      %v499 = vpop.permute.xlu0 %498
      %500 = vset.pattern.permute.xlu0 0
      %501 = vperm.xlu0 %500, %v384
      %v502 = vpop.permute.xlu0 %501
      %503 = vset.pattern.permute.xlu0 0
      %504 = vperm.xlu0 %503, %v385
      %v505 = vpop.permute.xlu0 %504
      %506 = vset.pattern.permute.xlu0 0
      %507 = vperm.xlu0 %506, %v386
      %v508 = vpop.permute.xlu0 %507
      %509 = vset.pattern.permute.xlu0 0
      %510 = vperm.xlu0 %509, %v387
      %v511 = vpop.permute.xlu0 %510
      %512 = vset.pattern.permute.xlu0 0
      %513 = vperm.xlu0 %512, %v388
      %v514 = vpop.permute.xlu0 %513
      %515 = vset.pattern.permute.xlu0 0
      %516 = vperm.xlu0 %515, %v389
      %v517 = vpop.permute.xlu0 %516
      %518 = vset.pattern.permute.xlu0 0
      %519 = vperm.xlu0 %518, %v390
      %v520 = vpop.permute.xlu0 %519
      %521 = vset.pattern.permute.xlu0 0
      %522 = vperm.xlu0 %521, %v391
      %v523 = vpop.permute.xlu0 %522
      %524 = vset.pattern.permute.xlu0 0
      %525 = vperm.xlu0 %524, %v392
      %v526 = vpop.permute.xlu0 %525
      %527 = vset.pattern.permute.xlu0 0
      %528 = vperm.xlu0 %527, %v393
      %v529 = vpop.permute.xlu0 %528
      %530 = vset.pattern.permute.xlu0 0
      %531 = vperm.xlu0 %530, %v394
      %v532 = vpop.permute.xlu0 %531
      %533 = vset.pattern.permute.xlu0 0
      %534 = vperm.xlu0 %533, %v395
      %v535 = vpop.permute.xlu0 %534
      %536 = vset.pattern.permute.xlu0 0
      %537 = vperm.xlu0 %536, %v396
      %v538 = vpop.permute.xlu0 %537
      %539 = vset.pattern.permute.xlu0 0
      %540 = vperm.xlu0 %539, %v397
      %v541 = vpop.permute.xlu0 %540
      %542 = vset.pattern.permute.xlu0 0
      %543 = vperm.xlu0 %542, %v398
      %v544 = vpop.permute.xlu0 %543
      %545 = vset.pattern.permute.xlu0 0
      %546 = vperm.xlu0 %545, %v399
      %v547 = vpop.permute.xlu0 %546
      %548 = vset.pattern.permute.xlu0 0
      %549 = vperm.xlu0 %548, %v400
      %v550 = vpop.permute.xlu0 %549
      %551 = vset.pattern.permute.xlu0 0
      %552 = vperm.xlu0 %551, %v401
      %v553 = vpop.permute.xlu0 %552
      %554 = vset.pattern.permute.xlu0 0
      %555 = vperm.xlu0 %554, %v402
      %v556 = vpop.permute.xlu0 %555
      %557 = vset.pattern.permute.xlu0 0
      %558 = vperm.xlu0 %557, %v403
      %v559 = vpop.permute.xlu0 %558
      %560 = vset.pattern.permute.xlu0 0
      %561 = vperm.xlu0 %560, %v404
      %v562 = vpop.permute.xlu0 %561
      %563 = vset.pattern.permute.xlu0 0
      %564 = vperm.xlu0 %563, %v405
      %v565 = vpop.permute.xlu0 %564
      %566 = vset.pattern.permute.xlu0 0
      %567 = vperm.xlu0 %566, %v406
      %v568 = vpop.permute.xlu0 %567
      %vm569 = vcmp.eq.s32.totalorder %v409, 1
      %vm570 = vcmp.eq.s32.totalorder %v412, 1
      %vm571 = vcmp.eq.s32.totalorder %v415, 1
      %vm572 = vcmp.eq.s32.totalorder %v418, 1
      %vm573 = vcmp.eq.s32.totalorder %v421, 1
      %vm574 = vcmp.eq.s32.totalorder %v424, 1
      %vm575 = vcmp.eq.s32.totalorder %v427, 1
      %vm576 = vcmp.eq.s32.totalorder %v430, 1
      %vm577 = vcmp.eq.s32.totalorder %v433, 1
      %vm578 = vcmp.eq.s32.totalorder %v436, 1
      %vm579 = vcmp.eq.s32.totalorder %v439, 1
      %vm580 = vcmp.eq.s32.totalorder %v442, 1
      %vm581 = vcmp.eq.s32.totalorder %v445, 1
      %vm582 = vcmp.eq.s32.totalorder %v448, 1
      %vm583 = vcmp.eq.s32.totalorder %v451, 1
      %vm584 = vcmp.eq.s32.totalorder %v454, 1
      %vm585 = vcmp.eq.s32.totalorder %v457, 1
      %vm586 = vcmp.eq.s32.totalorder %v460, 1
      %vm587 = vcmp.eq.s32.totalorder %v463, 1
      %vm588 = vcmp.eq.s32.totalorder %v466, 1
      %vm589 = vcmp.eq.s32.totalorder %v469, 1
      %vm590 = vcmp.eq.s32.totalorder %v472, 1
      %vm591 = vcmp.eq.s32.totalorder %v475, 1
      %vm592 = vcmp.eq.s32.totalorder %v478, 1
      %vm593 = vcmp.eq.s32.totalorder %v481, 1
      %vm594 = vcmp.eq.s32.totalorder %v484, 1
      %vm595 = vcmp.eq.s32.totalorder %v487, 1
      %vm596 = vcmp.eq.s32.totalorder %v490, 1
      %vm597 = vcmp.eq.s32.totalorder %v493, 1
      %vm598 = vcmp.eq.s32.totalorder %v496, 1
      %vm599 = vcmp.eq.s32.totalorder %v499, 1
      %vm600 = vcmp.eq.s32.totalorder %v502, 1
      %vm601 = vcmp.eq.s32.totalorder %v505, 1
      %vm602 = vcmp.eq.s32.totalorder %v508, 1
      %vm603 = vcmp.eq.s32.totalorder %v511, 1
      %vm604 = vcmp.eq.s32.totalorder %v514, 1
      %vm605 = vcmp.eq.s32.totalorder %v517, 1
      %vm606 = vcmp.eq.s32.totalorder %v520, 1
      %vm607 = vcmp.eq.s32.totalorder %v523, 1
      %vm608 = vcmp.eq.s32.totalorder %v526, 1
      %vm609 = vcmp.eq.s32.totalorder %v529, 1
      %vm610 = vcmp.eq.s32.totalorder %v532, 1
      %vm611 = vcmp.eq.s32.totalorder %v535, 1
      %vm612 = vcmp.eq.s32.totalorder %v538, 1
      %vm613 = vcmp.eq.s32.totalorder %v541, 1
      %vm614 = vcmp.eq.s32.totalorder %v544, 1
      %vm615 = vcmp.eq.s32.totalorder %v547, 1
      %vm616 = vcmp.eq.s32.totalorder %v550, 1
      %vm617 = vcmp.eq.s32.totalorder %v553, 1
      %vm618 = vcmp.eq.s32.totalorder %v556, 1
      %vm619 = vcmp.eq.s32.totalorder %v559, 1
      %vm620 = vcmp.eq.s32.totalorder %v562, 1
      %vm621 = vcmp.eq.s32.totalorder %v565, 1
      %vm622 = vcmp.eq.s32.totalorder %v568, 1
      %v623 = vsel %vm569, 0.0, %v299
      %v624 = vsel %vm570, 0.0, %v300
      %v625 = vsel %vm571, 0.0, %v301
      %v626 = vsel %vm572, 0.0, %v302
      %v627 = vsel %vm573, 0.0, %v303
      %v628 = vsel %vm574, 0.0, %v304
      %v629 = vsel %vm575, 0.0, %v305
      %v630 = vsel %vm576, 0.0, %v306
      %v631 = vsel %vm577, 0.0, %v307
      %v632 = vsel %vm578, 0.0, %v308
      %v633 = vsel %vm579, 0.0, %v309
      %v634 = vsel %vm580, 0.0, %v310
      %v635 = vsel %vm581, 0.0, %v311
      %v636 = vsel %vm582, 0.0, %v312
      %v637 = vsel %vm583, 0.0, %v313
      %v638 = vsel %vm584, 0.0, %v314
      %v639 = vsel %vm585, 0.0, %v315
      %v640 = vsel %vm586, 0.0, %v316
      %v641 = vsel %vm587, 0.0, %v317
      %v642 = vsel %vm588, 0.0, %v318
      %v643 = vsel %vm589, 0.0, %v319
      %v644 = vsel %vm590, 0.0, %v320
      %v645 = vsel %vm591, 0.0, %v321
      %v646 = vsel %vm592, 0.0, %v322
      %v647 = vsel %vm593, 0.0, %v323
      %v648 = vsel %vm594, 0.0, %v324
      %v649 = vsel %vm595, 0.0, %v325
      %v650 = vsel %vm596, 0.0, %v326
      %v651 = vsel %vm597, 0.0, %v327
      %v652 = vsel %vm598, 0.0, %v328
      %v653 = vsel %vm599, 0.0, %v329
      %v654 = vsel %vm600, 0.0, %v330
      %v655 = vsel %vm601, 0.0, %v331
      %v656 = vsel %vm602, 0.0, %v332
      %v657 = vsel %vm603, 0.0, %v333
      %v658 = vsel %vm604, 0.0, %v334
      %v659 = vsel %vm605, 0.0, %v335
      %v660 = vsel %vm606, 0.0, %v336
      %v661 = vsel %vm607, 0.0, %v337
      %v662 = vsel %vm608, 0.0, %v338
      %v663 = vsel %vm609, 0.0, %v339
      %v664 = vsel %vm610, 0.0, %v340
      %v665 = vsel %vm611, 0.0, %v341
      %v666 = vsel %vm612, 0.0, %v342
      %v667 = vsel %vm613, 0.0, %v343
      %v668 = vsel %vm614, 0.0, %v344
      %v669 = vsel %vm615, 0.0, %v345
      %v670 = vsel %vm616, 0.0, %v346
      %v671 = vsel %vm617, 0.0, %v347
      %v672 = vsel %vm618, 0.0, %v348
      %v673 = vsel %vm619, 0.0, %v349
      %v674 = vsel %vm620, 0.0, %v350
      %v675 = vsel %vm621, 0.0, %v351
      %v676 = vsel %vm622, 0.0, %v352
      %v677 = vld [vmem:[%s2] sm:$0xf]
      %vm678 = vcmask 31744
      %v680 = vsel %vm678, %v623, 0
      %v683 = vsel %vm678, %v624, 0
      %v686 = vsel %vm678, %v626, 0
      %v689 = vsel %vm678, %v627, 0
      %v692 = vsel %vm678, %v629, 0
      %v695 = vsel %vm678, %v630, 0
      %v698 = vsel %vm678, %v632, 0
      %v701 = vsel %vm678, %v633, 0
      %v704 = vsel %vm678, %v635, 0
      %v707 = vsel %vm678, %v636, 0
      %v710 = vsel %vm678, %v638, 0
      %v713 = vsel %vm678, %v639, 0
      %v716 = vsel %vm678, %v641, 0
      %v719 = vsel %vm678, %v642, 0
      %v722 = vsel %vm678, %v644, 0
      %v725 = vsel %vm678, %v645, 0
      %v728 = vsel %vm678, %v647, 0
      %v731 = vsel %vm678, %v648, 0
      %v734 = vsel %vm678, %v650, 0
      %v737 = vsel %vm678, %v651, 0
      %v740 = vsel %vm678, %v653, 0
      %v743 = vsel %vm678, %v654, 0
      %v746 = vsel %vm678, %v656, 0
      %v749 = vsel %vm678, %v657, 0
      %v752 = vsel %vm678, %v659, 0
      %v755 = vsel %vm678, %v660, 0
      %v758 = vsel %vm678, %v662, 0
      %v761 = vsel %vm678, %v663, 0
      %v764 = vsel %vm678, %v665, 0
      %v767 = vsel %vm678, %v666, 0
      %v770 = vsel %vm678, %v668, 0
      %v773 = vsel %vm678, %v669, 0
      %vm775 = vcmask 1043456
      %v777 = vsel %vm775, %v677, 0
      %779 = vmatprep.subr.mxu0 0.0
      %780 = vmatpush1.msra.mxu0 %v777
      %781 = vmatprep.subr.mxu0 0.0
      %782 = vmatpush1.msra.mxu0 0.0
      %783 = vmatprep.subr.mxu0 0.0
      %784 = vmatpush1.msra.mxu0 0.0
      %785 = vmatprep.subr.mxu0 0.0
      %786 = vmatpush1.msra.mxu0 0.0
      %787 = vmatprep.subr.mxu0 0.0
      %788 = vmatpush1.msra.mxu0 0.0
      %789 = vmatprep.subr.mxu0 0.0
      %790 = vmatpush1.msra.mxu0 0.0
      %791 = vmatprep.subr.mxu0 0.0
      %792 = vmatpush1.msra.mxu0 0.0
      %793 = vmatprep.subr.mxu0 0.0
      %794 = vmatpush1.msra.mxu0 0.0
      %795 = vmatprep.subr.mxu0 0.0
      %796 = vmatpush1.msra.mxu0 0.0
      %797 = vmatprep.subr.mxu0 0.0
      %798 = vmatpush1.msra.mxu0 0.0
      %799 = vmatprep.subr.mxu0 0.0
      %800 = vmatpush1.msra.mxu0 0.0
      %801 = vmatprep.subr.mxu0 0.0
      %802 = vmatpush1.msra.mxu0 0.0
      %803 = vmatprep.subr.mxu0 0.0
      %804 = vmatpush1.msra.mxu0 0.0
      %805 = vmatprep.subr.mxu0 0.0
      %806 = vmatpush1.msra.mxu0 0.0
      %807 = vmatprep.subr.mxu0 0.0
      %808 = vmatpush1.msra.mxu0 0.0
      %809 = vmatprep.subr.mxu0 0.0
      %810 = vmatpush1.msra.mxu0 0.0
      %811 = vmatprep.subr.mxu0 0.0
      %812 = vmatpush1.msra.mxu0 0.0
      %813 = vmatprep.subr.mxu0 0.0
      %814 = vmatpush1.msra.mxu0 0.0
      %815 = vmatprep.subr.mxu0 0.0
      %816 = vmatpush1.msra.mxu0 0.0
      %817 = vmatprep.subr.mxu0 0.0
      %818 = vmatpush1.msra.mxu0 0.0
      %819 = vmatprep.subr.mxu0 0.0
      %820 = vmatpush1.msra.mxu0 0.0
      %821 = vmatprep.subr.mxu0 0.0
      %822 = vmatpush1.msra.mxu0 0.0
      %823 = vmatprep.subr.mxu0 0.0
      %824 = vmatpush1.msra.mxu0 0.0
      %825 = vmatprep.subr.mxu0 0.0
      %826 = vmatpush1.msra.mxu0 0.0
      %827 = vmatprep.subr.mxu0 0.0
      %828 = vmatpush1.msra.mxu0 0.0
      %829 = vmatprep.subr.mxu0 0.0
      %830 = vmatpush1.msra.mxu0 0.0
      %831 = vmatprep.subr.mxu0 0.0
      %832 = vmatpush1.msra.mxu0 0.0
      %833 = vmatprep.subr.mxu0 0.0
      %834 = vmatpush1.msra.mxu0 0.0
      %835 = vmatprep.subr.mxu0 0.0
      %836 = vmatpush1.msra.mxu0 0.0
      %837 = vmatprep.subr.mxu0 0.0
      %838 = vmatpush1.msra.mxu0 0.0
      %839 = vmatprep.subr.mxu0 0.0
      %840 = vmatpush1.msra.mxu0 0.0
      %841 = vmatprep.subr.mxu0 0.0
      %842 = vmatpush1.msra.mxu0 0.0
      %843 = vmatprep.mubr.f32.mxu0 0.0
      %844 = vmatmul.mubr.f32.gmra.mrb[0].mxu0 %v680
      %v845 = vpop.f32.mrb[0].mxu0
      %v846 = vadd.f32 0.0, %v845
      %v847 = vpop.f32.mrb[0].mxu0
      %848 = vmatprep.mubr.f32.mxu0 0.0
      %849 = vmatmul.mubr.f32.gmra.mrb[0].mxu0 %v683
      %v850 = vpop.f32.mrb[0].mxu0
      %v851 = vadd.f32 0.0, %v850
      %v852 = vpop.f32.mrb[0].mxu0
      %853 = vmatprep.mubr.f32.mxu0 0.0
      %854 = vmatmul.mubr.f32.gmra.mrb[0].mxu0 %v686
      %v855 = vpop.f32.mrb[0].mxu0
      %v856 = vadd.f32 0.0, %v855
      %v857 = vpop.f32.mrb[0].mxu0
      %858 = vmatprep.mubr.f32.mxu0 0.0
      %859 = vmatmul.mubr.f32.gmra.mrb[0].mxu0 %v689
      %v860 = vpop.f32.mrb[0].mxu0
      %v861 = vadd.f32 0.0, %v860
      %v862 = vpop.f32.mrb[0].mxu0
      %863 = vmatprep.mubr.f32.mxu0 0.0
      %864 = vmatmul.mubr.f32.gmra.mrb[0].mxu0 %v692
      %v865 = vpop.f32.mrb[0].mxu0
      %v866 = vadd.f32 0.0, %v865
      %v867 = vpop.f32.mrb[0].mxu0
      %868 = vmatprep.mubr.f32.mxu0 0.0
      %869 = vmatmul.mubr.f32.gmra.mrb[0].mxu0 %v695
      %v870 = vpop.f32.mrb[0].mxu0
      %v871 = vadd.f32 0.0, %v870
      %v872 = vpop.f32.mrb[0].mxu0
      %873 = vmatprep.mubr.f32.mxu0 0.0
      %874 = vmatmul.mubr.f32.gmra.mrb[0].mxu0 %v698
      %v875 = vpop.f32.mrb[0].mxu0
      %v876 = vadd.f32 0.0, %v875
      %v877 = vpop.f32.mrb[0].mxu0
      %878 = vmatprep.mubr.f32.mxu0 0.0
      %879 = vmatmul.mubr.f32.gmra.mrb[0].mxu0 %v701
      %v880 = vpop.f32.mrb[0].mxu0
      %v881 = vadd.f32 0.0, %v880
      %v882 = vpop.f32.mrb[0].mxu0
      %883 = vmatprep.mubr.f32.mxu0 0.0
      %884 = vmatmul.mubr.f32.gmra.mrb[0].mxu0 %v704
      %v885 = vpop.f32.mrb[0].mxu0
      %v886 = vadd.f32 0.0, %v885
      %v887 = vpop.f32.mrb[0].mxu0
      %888 = vmatprep.mubr.f32.mxu0 0.0
      %889 = vmatmul.mubr.f32.gmra.mrb[0].mxu0 %v707
      %v890 = vpop.f32.mrb[0].mxu0
      %v891 = vadd.f32 0.0, %v890
      %v892 = vpop.f32.mrb[0].mxu0
      %893 = vmatprep.mubr.f32.mxu0 0.0
      %894 = vmatmul.mubr.f32.gmra.mrb[0].mxu0 %v710
      %v895 = vpop.f32.mrb[0].mxu0
      %v896 = vadd.f32 0.0, %v895
      %v897 = vpop.f32.mrb[0].mxu0
      %898 = vmatprep.mubr.f32.mxu0 0.0
      %899 = vmatmul.mubr.f32.gmra.mrb[0].mxu0 %v713
      %v900 = vpop.f32.mrb[0].mxu0
      %v901 = vadd.f32 0.0, %v900
      %v902 = vpop.f32.mrb[0].mxu0
      %903 = vmatprep.mubr.f32.mxu0 0.0
      %904 = vmatmul.mubr.f32.gmra.mrb[0].mxu0 %v716
      %v905 = vpop.f32.mrb[0].mxu0
      %v906 = vadd.f32 0.0, %v905
      %v907 = vpop.f32.mrb[0].mxu0
      %908 = vmatprep.mubr.f32.mxu0 0.0
      %909 = vmatmul.mubr.f32.gmra.mrb[0].mxu0 %v719
      %v910 = vpop.f32.mrb[0].mxu0
      %v911 = vadd.f32 0.0, %v910
      %v912 = vpop.f32.mrb[0].mxu0
      %913 = vmatprep.mubr.f32.mxu0 0.0
      %914 = vmatmul.mubr.f32.gmra.mrb[0].mxu0 %v722
      %v915 = vpop.f32.mrb[0].mxu0
      %v916 = vadd.f32 0.0, %v915
      %v917 = vpop.f32.mrb[0].mxu0
      %918 = vmatprep.mubr.f32.mxu0 0.0
      %919 = vmatmul.mubr.f32.gmra.mrb[0].mxu0 %v725
      %v920 = vpop.f32.mrb[0].mxu0
      %v921 = vadd.f32 0.0, %v920
      %v922 = vpop.f32.mrb[0].mxu0
      %923 = vmatprep.mubr.f32.mxu0 0.0
      %924 = vmatmul.mubr.f32.gmra.mrb[0].mxu0 %v728
      %v925 = vpop.f32.mrb[0].mxu0
      %v926 = vadd.f32 0.0, %v925
      %v927 = vpop.f32.mrb[0].mxu0
      %928 = vmatprep.mubr.f32.mxu0 0.0
      %929 = vmatmul.mubr.f32.gmra.mrb[0].mxu0 %v731
      %v930 = vpop.f32.mrb[0].mxu0
      %v931 = vadd.f32 0.0, %v930
      %v932 = vpop.f32.mrb[0].mxu0
      %933 = vmatprep.mubr.f32.mxu0 0.0
      %934 = vmatmul.mubr.f32.gmra.mrb[0].mxu0 %v734
      %v935 = vpop.f32.mrb[0].mxu0
      %v936 = vadd.f32 0.0, %v935
      %v937 = vpop.f32.mrb[0].mxu0
      %938 = vmatprep.mubr.f32.mxu0 0.0
      %939 = vmatmul.mubr.f32.gmra.mrb[0].mxu0 %v737
      %v940 = vpop.f32.mrb[0].mxu0
      %v941 = vadd.f32 0.0, %v940
      %v942 = vpop.f32.mrb[0].mxu0
      %943 = vmatprep.mubr.f32.mxu0 0.0
      %944 = vmatmul.mubr.f32.gmra.mrb[0].mxu0 %v740
      %v945 = vpop.f32.mrb[0].mxu0
      %v946 = vadd.f32 0.0, %v945
      %v947 = vpop.f32.mrb[0].mxu0
      %948 = vmatprep.mubr.f32.mxu0 0.0
      %949 = vmatmul.mubr.f32.gmra.mrb[0].mxu0 %v743
      %v950 = vpop.f32.mrb[0].mxu0
      %v951 = vadd.f32 0.0, %v950
      %v952 = vpop.f32.mrb[0].mxu0
      %953 = vmatprep.mubr.f32.mxu0 0.0
      %954 = vmatmul.mubr.f32.gmra.mrb[0].mxu0 %v746
      %v955 = vpop.f32.mrb[0].mxu0
      %v956 = vadd.f32 0.0, %v955
      %v957 = vpop.f32.mrb[0].mxu0
      %958 = vmatprep.mubr.f32.mxu0 0.0
      %959 = vmatmul.mubr.f32.gmra.mrb[0].mxu0 %v749
      %v960 = vpop.f32.mrb[0].mxu0
      %v961 = vadd.f32 0.0, %v960
      %v962 = vpop.f32.mrb[0].mxu0
      %963 = vmatprep.mubr.f32.mxu0 0.0
      %964 = vmatmul.mubr.f32.gmra.mrb[0].mxu0 %v752
      %v965 = vpop.f32.mrb[0].mxu0
      %v966 = vadd.f32 0.0, %v965
      %v967 = vpop.f32.mrb[0].mxu0
      %968 = vmatprep.mubr.f32.mxu0 0.0
      %969 = vmatmul.mubr.f32.gmra.mrb[0].mxu0 %v755
      %v970 = vpop.f32.mrb[0].mxu0
      %v971 = vadd.f32 0.0, %v970
      %v972 = vpop.f32.mrb[0].mxu0
      %973 = vmatprep.mubr.f32.mxu0 0.0
      %974 = vmatmul.mubr.f32.gmra.mrb[0].mxu0 %v758
      %v975 = vpop.f32.mrb[0].mxu0
      %v976 = vadd.f32 0.0, %v975
      %v977 = vpop.f32.mrb[0].mxu0
      %978 = vmatprep.mubr.f32.mxu0 0.0
      %979 = vmatmul.mubr.f32.gmra.mrb[0].mxu0 %v761
      %v980 = vpop.f32.mrb[0].mxu0
      %v981 = vadd.f32 0.0, %v980
      %v982 = vpop.f32.mrb[0].mxu0
      %983 = vmatprep.mubr.f32.mxu0 0.0
      %984 = vmatmul.mubr.f32.gmra.mrb[0].mxu0 %v764
      %v985 = vpop.f32.mrb[0].mxu0
      %v986 = vadd.f32 0.0, %v985
      %v987 = vpop.f32.mrb[0].mxu0
      %988 = vmatprep.mubr.f32.mxu0 0.0
      %989 = vmatmul.mubr.f32.gmra.mrb[0].mxu0 %v767
      %v990 = vpop.f32.mrb[0].mxu0
      %v991 = vadd.f32 0.0, %v990
      %v992 = vpop.f32.mrb[0].mxu0
      %993 = vmatprep.mubr.f32.mxu0 0.0
      %994 = vmatmul.mubr.f32.gmra.mrb[0].mxu0 %v770
      %v995 = vpop.f32.mrb[0].mxu0
      %v996 = vadd.f32 0.0, %v995
      %v997 = vpop.f32.mrb[0].mxu0
      %998 = vmatprep.mubr.f32.mxu0 0.0
      %999 = vmatmul.mubr.f32.gmra.mrb[0].mxu0 %v773
      %v1000 = vpop.f32.mrb[0].mxu0
      %v1001 = vadd.f32 0.0, %v1000
      %v1002 = vpop.f32.mrb[0].mxu0
      %1003 = vdwg.mxu0
      %1004 = vst.msk [vmem:[#allocation2] sm:$0xff] %vm678, %v846
      %1005 = vst.msk [vmem:[#allocation2 + $0x8] sm:$0xff] %vm678, %v851
      %1006 = vst.msk [vmem:[#allocation2 + $0x10] sm:$0xff] %vm678, %v856
      %1007 = vst.msk [vmem:[#allocation2 + $0x18] sm:$0xff] %vm678, %v861
      %1008 = vst.msk [vmem:[#allocation2 + $0x20] sm:$0xff] %vm678, %v866
      %1009 = vst.msk [vmem:[#allocation2 + $0x28] sm:$0xff] %vm678, %v871
      %1010 = vst.msk [vmem:[#allocation2 + $0x30] sm:$0xff] %vm678, %v876
      %1011 = vst.msk [vmem:[#allocation2 + $0x38] sm:$0xff] %vm678, %v881
      %1012 = vst.msk [vmem:[#allocation2 + $0x40] sm:$0xff] %vm678, %v886
      %1013 = vst.msk [vmem:[#allocation2 + $0x48] sm:$0xff] %vm678, %v891
      %1014 = vst.msk [vmem:[#allocation2 + $0x50] sm:$0xff] %vm678, %v896
      %1015 = vst.msk [vmem:[#allocation2 + $0x58] sm:$0xff] %vm678, %v901
      %1016 = vst.msk [vmem:[#allocation2 + $0x60] sm:$0xff] %vm678, %v906
      %1017 = vst.msk [vmem:[#allocation2 + $0x68] sm:$0xff] %vm678, %v911
      %1018 = vst.msk [vmem:[#allocation2 + $0x70] sm:$0xff] %vm678, %v916
      %1019 = vst.msk [vmem:[#allocation2 + $0x78] sm:$0xff] %vm678, %v921
      %1020 = vst.msk [vmem:[#allocation2 + $0x80] sm:$0xff] %vm678, %v926
      %1021 = vst.msk [vmem:[#allocation2 + $0x88] sm:$0xff] %vm678, %v931
      %1022 = vst.msk [vmem:[#allocation2 + $0x90] sm:$0xff] %vm678, %v936
      %1023 = vst.msk [vmem:[#allocation2 + $0x98] sm:$0xff] %vm678, %v941
      %1024 = vst.msk [vmem:[#allocation2 + $0xa0] sm:$0xff] %vm678, %v946
      %1025 = vst.msk [vmem:[#allocation2 + $0xa8] sm:$0xff] %vm678, %v951
      %1026 = vst.msk [vmem:[#allocation2 + $0xb0] sm:$0xff] %vm678, %v956
      %1027 = vst.msk [vmem:[#allocation2 + $0xb8] sm:$0xff] %vm678, %v961
      %1028 = vst.msk [vmem:[#allocation2 + $0xc0] sm:$0xff] %vm678, %v966
      %1029 = vst.msk [vmem:[#allocation2 + $0xc8] sm:$0xff] %vm678, %v971
      %1030 = vst.msk [vmem:[#allocation2 + $0xd0] sm:$0xff] %vm678, %v976
      %1031 = vst.msk [vmem:[#allocation2 + $0xd8] sm:$0xff] %vm678, %v981
      %1032 = vst.msk [vmem:[#allocation2 + $0xe0] sm:$0xff] %vm678, %v986
      %1033 = vst.msk [vmem:[#allocation2 + $0xe8] sm:$0xff] %vm678, %v991
      %1034 = vst.msk [vmem:[#allocation2 + $0xf0] sm:$0xff] %vm678, %v996
      %1035 = vst.msk [vmem:[#allocation2 + $0xf8] sm:$0xff] %vm678, %v1001
      %vm1052 = vcmask 1046528
      %v1053 = vrot.slane %v623, 1
      %v1054 = vrot.slane %v624, 1
      %v1055 = vsel %vm1052, %v1053, %v1054
      %v1056 = vrot.slane %v625, 1
      %v1057 = vsel %vm1052, %v1054, %v1056
      %v1058 = vrot.slane %v626, 1
      %v1059 = vrot.slane %v627, 1
      %v1060 = vsel %vm1052, %v1058, %v1059
      %v1061 = vrot.slane %v628, 1
      %v1062 = vsel %vm1052, %v1059, %v1061
      %v1063 = vrot.slane %v629, 1
      %v1064 = vrot.slane %v630, 1
      %v1065 = vsel %vm1052, %v1063, %v1064
      %v1066 = vrot.slane %v631, 1
      %v1067 = vsel %vm1052, %v1064, %v1066
      %v1068 = vrot.slane %v632, 1
      %v1069 = vrot.slane %v633, 1
      %v1070 = vsel %vm1052, %v1068, %v1069
      %v1071 = vrot.slane %v634, 1
      %v1072 = vsel %vm1052, %v1069, %v1071
      %v1073 = vrot.slane %v635, 1
      %v1074 = vrot.slane %v636, 1
      %v1075 = vsel %vm1052, %v1073, %v1074
      %v1076 = vrot.slane %v637, 1
      %v1077 = vsel %vm1052, %v1074, %v1076
      %v1078 = vrot.slane %v638, 1
      %v1079 = vrot.slane %v639, 1
      %v1080 = vsel %vm1052, %v1078, %v1079
      %v1081 = vrot.slane %v640, 1
      %v1082 = vsel %vm1052, %v1079, %v1081
      %v1083 = vrot.slane %v641, 1
      %v1084 = vrot.slane %v642, 1
      %v1085 = vsel %vm1052, %v1083, %v1084
      %v1086 = vrot.slane %v643, 1
      %v1087 = vsel %vm1052, %v1084, %v1086
      %v1088 = vrot.slane %v644, 1
      %v1089 = vrot.slane %v645, 1
      %v1090 = vsel %vm1052, %v1088, %v1089
      %v1091 = vrot.slane %v646, 1
      %v1092 = vsel %vm1052, %v1089, %v1091
      %v1093 = vrot.slane %v647, 1
      %v1094 = vrot.slane %v648, 1
      %v1095 = vsel %vm1052, %v1093, %v1094
      %v1096 = vrot.slane %v649, 1
      %v1097 = vsel %vm1052, %v1094, %v1096
      %v1098 = vrot.slane %v650, 1
      %v1099 = vrot.slane %v651, 1
      %v1100 = vsel %vm1052, %v1098, %v1099
      %v1101 = vrot.slane %v652, 1
      %v1102 = vsel %vm1052, %v1099, %v1101
      %v1103 = vrot.slane %v653, 1
      %v1104 = vrot.slane %v654, 1
      %v1105 = vsel %vm1052, %v1103, %v1104
      %v1106 = vrot.slane %v655, 1
      %v1107 = vsel %vm1052, %v1104, %v1106
      %v1108 = vrot.slane %v656, 1
      %v1109 = vrot.slane %v657, 1
      %v1110 = vsel %vm1052, %v1108, %v1109
      %v1111 = vrot.slane %v658, 1
      %v1112 = vsel %vm1052, %v1109, %v1111
      %v1113 = vrot.slane %v659, 1
      %v1114 = vrot.slane %v660, 1
      %v1115 = vsel %vm1052, %v1113, %v1114
      %v1116 = vrot.slane %v661, 1
      %v1117 = vsel %vm1052, %v1114, %v1116
      %v1118 = vrot.slane %v662, 1
      %v1119 = vrot.slane %v663, 1
      %v1120 = vsel %vm1052, %v1118, %v1119
      %v1121 = vrot.slane %v664, 1
      %v1122 = vsel %vm1052, %v1119, %v1121
      %v1123 = vrot.slane %v665, 1
      %v1124 = vrot.slane %v666, 1
      %v1125 = vsel %vm1052, %v1123, %v1124
      %v1126 = vrot.slane %v667, 1
      %v1127 = vsel %vm1052, %v1124, %v1126
      %v1128 = vrot.slane %v668, 1
      %v1129 = vrot.slane %v669, 1
      %v1130 = vsel %vm1052, %v1128, %v1129
      %v1131 = vrot.slane %v670, 1
      %v1132 = vsel %vm1052, %v1129, %v1131
      %s1133 = scalar_lea.vmem %s2, 4
      %v1134 = vld [vmem:[%s1133] sm:$0xf]
      %v1135 = vsel %vm678, %v1055, 0
      %v1137 = vsel %vm678, %v1057, 0
      %v1139 = vsel %vm678, %v1060, 0
      %v1141 = vsel %vm678, %v1062, 0
      %v1143 = vsel %vm678, %v1065, 0
      %v1145 = vsel %vm678, %v1067, 0
      %v1147 = vsel %vm678, %v1070, 0
      %v1149 = vsel %vm678, %v1072, 0
      %v1151 = vsel %vm678, %v1075, 0
      %v1153 = vsel %vm678, %v1077, 0
      %v1155 = vsel %vm678, %v1080, 0
      %v1157 = vsel %vm678, %v1082, 0
      %v1159 = vsel %vm678, %v1085, 0
      %v1161 = vsel %vm678, %v1087, 0
      %v1163 = vsel %vm678, %v1090, 0
      %v1165 = vsel %vm678, %v1092, 0
      %v1167 = vsel %vm678, %v1095, 0
      %v1169 = vsel %vm678, %v1097, 0
      %v1171 = vsel %vm678, %v1100, 0
      %v1173 = vsel %vm678, %v1102, 0
      %v1175 = vsel %vm678, %v1105, 0
      %v1177 = vsel %vm678, %v1107, 0
      %v1179 = vsel %vm678, %v1110, 0
      %v1181 = vsel %vm678, %v1112, 0
      %v1183 = vsel %vm678, %v1115, 0
      %v1185 = vsel %vm678, %v1117, 0
      %v1187 = vsel %vm678, %v1120, 0
      %v1189 = vsel %vm678, %v1122, 0
      %v1191 = vsel %vm678, %v1125, 0
      %v1193 = vsel %vm678, %v1127, 0
      %v1195 = vsel %vm678, %v1130, 0
      %v1197 = vsel %vm678, %v1132, 0
      %v1200 = vsel %vm775, %v1134, 0
      %1202 = vmatprep.subr.mxu0 0.0
      %1203 = vmatpush1.msra.mxu0 %v1200
      %1204 = vmatprep.subr.mxu0 0.0
      %1205 = vmatpush1.msra.mxu0 0.0
      %1206 = vmatprep.subr.mxu0 0.0
      %1207 = vmatpush1.msra.mxu0 0.0
      %1208 = vmatprep.subr.mxu0 0.0
      %1209 = vmatpush1.msra.mxu0 0.0
      %1210 = vmatprep.subr.mxu0 0.0
      %1211 = vmatpush1.msra.mxu0 0.0
      %1212 = vmatprep.subr.mxu0 0.0
      %1213 = vmatpush1.msra.mxu0 0.0
      %1214 = vmatprep.subr.mxu0 0.0
      %1215 = vmatpush1.msra.mxu0 0.0
      %1216 = vmatprep.subr.mxu0 0.0
      %1217 = vmatpush1.msra.mxu0 0.0
      %1218 = vmatprep.subr.mxu0 0.0
      %1219 = vmatpush1.msra.mxu0 0.0
      %1220 = vmatprep.subr.mxu0 0.0
      %1221 = vmatpush1.msra.mxu0 0.0
      %1222 = vmatprep.subr.mxu0 0.0
      %1223 = vmatpush1.msra.mxu0 0.0
      %1224 = vmatprep.subr.mxu0 0.0
      %1225 = vmatpush1.msra.mxu0 0.0
      %1226 = vmatprep.subr.mxu0 0.0
      %1227 = vmatpush1.msra.mxu0 0.0
      %1228 = vmatprep.subr.mxu0 0.0
      %1229 = vmatpush1.msra.mxu0 0.0
      %1230 = vmatprep.subr.mxu0 0.0
      %1231 = vmatpush1.msra.mxu0 0.0
      %1232 = vmatprep.subr.mxu0 0.0
      %1233 = vmatpush1.msra.mxu0 0.0
      %1234 = vmatprep.subr.mxu0 0.0
      %1235 = vmatpush1.msra.mxu0 0.0
      %1236 = vmatprep.subr.mxu0 0.0
      %1237 = vmatpush1.msra.mxu0 0.0
      %1238 = vmatprep.subr.mxu0 0.0
      %1239 = vmatpush1.msra.mxu0 0.0
      %1240 = vmatprep.subr.mxu0 0.0
      %1241 = vmatpush1.msra.mxu0 0.0
      %1242 = vmatprep.subr.mxu0 0.0
      %1243 = vmatpush1.msra.mxu0 0.0
      %1244 = vmatprep.subr.mxu0 0.0
      %1245 = vmatpush1.msra.mxu0 0.0
      %1246 = vmatprep.subr.mxu0 0.0
      %1247 = vmatpush1.msra.mxu0 0.0
      %1248 = vmatprep.subr.mxu0 0.0
      %1249 = vmatpush1.msra.mxu0 0.0
      %1250 = vmatprep.subr.mxu0 0.0
      %1251 = vmatpush1.msra.mxu0 0.0
      %1252 = vmatprep.subr.mxu0 0.0
      %1253 = vmatpush1.msra.mxu0 0.0
      %1254 = vmatprep.subr.mxu0 0.0
      %1255 = vmatpush1.msra.mxu0 0.0
      %1256 = vmatprep.subr.mxu0 0.0
      %1257 = vmatpush1.msra.mxu0 0.0
      %1258 = vmatprep.subr.mxu0 0.0
      %1259 = vmatpush1.msra.mxu0 0.0
      %1260 = vmatprep.subr.mxu0 0.0
      %1261 = vmatpush1.msra.mxu0 0.0
      %1262 = vmatprep.subr.mxu0 0.0
      %1263 = vmatpush1.msra.mxu0 0.0
      %1264 = vmatprep.subr.mxu0 0.0
      %1265 = vmatpush1.msra.mxu0 0.0
      %1266 = vmatprep.mubr.f32.mxu0 0.0
      %1267 = vmatmul.mubr.f32.gmra.mrb[0].mxu0 %v1135
      %v1268 = vpop.f32.mrb[0].mxu0
      %v1269 = vadd.f32 0.0, %v1268
      %v1270 = vpop.f32.mrb[0].mxu0
      %1271 = vmatprep.mubr.f32.mxu0 0.0
      %1272 = vmatmul.mubr.f32.gmra.mrb[0].mxu0 %v1137
      %v1273 = vpop.f32.mrb[0].mxu0
      %v1274 = vadd.f32 0.0, %v1273
      %v1275 = vpop.f32.mrb[0].mxu0
      %1276 = vmatprep.mubr.f32.mxu0 0.0
      %1277 = vmatmul.mubr.f32.gmra.mrb[0].mxu0 %v1139
      %v1278 = vpop.f32.mrb[0].mxu0
      %v1279 = vadd.f32 0.0, %v1278
      %v1280 = vpop.f32.mrb[0].mxu0
      %1281 = vmatprep.mubr.f32.mxu0 0.0
      %1282 = vmatmul.mubr.f32.gmra.mrb[0].mxu0 %v1141
      %v1283 = vpop.f32.mrb[0].mxu0
      %v1284 = vadd.f32 0.0, %v1283
      %v1285 = vpop.f32.mrb[0].mxu0
      %1286 = vmatprep.mubr.f32.mxu0 0.0
      %1287 = vmatmul.mubr.f32.gmra.mrb[0].mxu0 %v1143
      %v1288 = vpop.f32.mrb[0].mxu0
      %v1289 = vadd.f32 0.0, %v1288
      %v1290 = vpop.f32.mrb[0].mxu0
      %1291 = vmatprep.mubr.f32.mxu0 0.0
      %1292 = vmatmul.mubr.f32.gmra.mrb[0].mxu0 %v1145
      %v1293 = vpop.f32.mrb[0].mxu0
      %v1294 = vadd.f32 0.0, %v1293
      %v1295 = vpop.f32.mrb[0].mxu0
      %1296 = vmatprep.mubr.f32.mxu0 0.0
      %1297 = vmatmul.mubr.f32.gmra.mrb[0].mxu0 %v1147
      %v1298 = vpop.f32.mrb[0].mxu0
      %v1299 = vadd.f32 0.0, %v1298
      %v1300 = vpop.f32.mrb[0].mxu0
      %1301 = vmatprep.mubr.f32.mxu0 0.0
      %1302 = vmatmul.mubr.f32.gmra.mrb[0].mxu0 %v1149
      %v1303 = vpop.f32.mrb[0].mxu0
      %v1304 = vadd.f32 0.0, %v1303
      %v1305 = vpop.f32.mrb[0].mxu0
      %1306 = vmatprep.mubr.f32.mxu0 0.0
      %1307 = vmatmul.mubr.f32.gmra.mrb[0].mxu0 %v1151
      %v1308 = vpop.f32.mrb[0].mxu0
      %v1309 = vadd.f32 0.0, %v1308
      %v1310 = vpop.f32.mrb[0].mxu0
      %1311 = vmatprep.mubr.f32.mxu0 0.0
      %1312 = vmatmul.mubr.f32.gmra.mrb[0].mxu0 %v1153
      %v1313 = vpop.f32.mrb[0].mxu0
      %v1314 = vadd.f32 0.0, %v1313
      %v1315 = vpop.f32.mrb[0].mxu0
      %1316 = vmatprep.mubr.f32.mxu0 0.0
      %1317 = vmatmul.mubr.f32.gmra.mrb[0].mxu0 %v1155
      %v1318 = vpop.f32.mrb[0].mxu0
      %v1319 = vadd.f32 0.0, %v1318
      %v1320 = vpop.f32.mrb[0].mxu0
      %1321 = vmatprep.mubr.f32.mxu0 0.0
      %1322 = vmatmul.mubr.f32.gmra.mrb[0].mxu0 %v1157
      %v1323 = vpop.f32.mrb[0].mxu0
      %v1324 = vadd.f32 0.0, %v1323
      %v1325 = vpop.f32.mrb[0].mxu0
      %1326 = vmatprep.mubr.f32.mxu0 0.0
      %1327 = vmatmul.mubr.f32.gmra.mrb[0].mxu0 %v1159
      %v1328 = vpop.f32.mrb[0].mxu0
      %v1329 = vadd.f32 0.0, %v1328
      %v1330 = vpop.f32.mrb[0].mxu0
      %1331 = vmatprep.mubr.f32.mxu0 0.0
      %1332 = vmatmul.mubr.f32.gmra.mrb[0].mxu0 %v1161
      %v1333 = vpop.f32.mrb[0].mxu0
      %v1334 = vadd.f32 0.0, %v1333
      %v1335 = vpop.f32.mrb[0].mxu0
      %1336 = vmatprep.mubr.f32.mxu0 0.0
      %1337 = vmatmul.mubr.f32.gmra.mrb[0].mxu0 %v1163
      %v1338 = vpop.f32.mrb[0].mxu0
      %v1339 = vadd.f32 0.0, %v1338
      %v1340 = vpop.f32.mrb[0].mxu0
      %1341 = vmatprep.mubr.f32.mxu0 0.0
      %1342 = vmatmul.mubr.f32.gmra.mrb[0].mxu0 %v1165
      %v1343 = vpop.f32.mrb[0].mxu0
      %v1344 = vadd.f32 0.0, %v1343
      %v1345 = vpop.f32.mrb[0].mxu0
      %1346 = vmatprep.mubr.f32.mxu0 0.0
      %1347 = vmatmul.mubr.f32.gmra.mrb[0].mxu0 %v1167
      %v1348 = vpop.f32.mrb[0].mxu0
      %v1349 = vadd.f32 0.0, %v1348
      %v1350 = vpop.f32.mrb[0].mxu0
      %1351 = vmatprep.mubr.f32.mxu0 0.0
      %1352 = vmatmul.mubr.f32.gmra.mrb[0].mxu0 %v1169
      %v1353 = vpop.f32.mrb[0].mxu0
      %v1354 = vadd.f32 0.0, %v1353
      %v1355 = vpop.f32.mrb[0].mxu0
      %1356 = vmatprep.mubr.f32.mxu0 0.0
      %1357 = vmatmul.mubr.f32.gmra.mrb[0].mxu0 %v1171
      %v1358 = vpop.f32.mrb[0].mxu0
      %v1359 = vadd.f32 0.0, %v1358
      %v1360 = vpop.f32.mrb[0].mxu0
      %1361 = vmatprep.mubr.f32.mxu0 0.0
      %1362 = vmatmul.mubr.f32.gmra.mrb[0].mxu0 %v1173
      %v1363 = vpop.f32.mrb[0].mxu0
      %v1364 = vadd.f32 0.0, %v1363
      %v1365 = vpop.f32.mrb[0].mxu0
      %1366 = vmatprep.mubr.f32.mxu0 0.0
      %1367 = vmatmul.mubr.f32.gmra.mrb[0].mxu0 %v1175
      %v1368 = vpop.f32.mrb[0].mxu0
      %v1369 = vadd.f32 0.0, %v1368
      %v1370 = vpop.f32.mrb[0].mxu0
      %1371 = vmatprep.mubr.f32.mxu0 0.0
      %1372 = vmatmul.mubr.f32.gmra.mrb[0].mxu0 %v1177
      %v1373 = vpop.f32.mrb[0].mxu0
      %v1374 = vadd.f32 0.0, %v1373
      %v1375 = vpop.f32.mrb[0].mxu0
      %1376 = vmatprep.mubr.f32.mxu0 0.0
      %1377 = vmatmul.mubr.f32.gmra.mrb[0].mxu0 %v1179
      %v1378 = vpop.f32.mrb[0].mxu0
      %v1379 = vadd.f32 0.0, %v1378
      %v1380 = vpop.f32.mrb[0].mxu0
      %1381 = vmatprep.mubr.f32.mxu0 0.0
      %1382 = vmatmul.mubr.f32.gmra.mrb[0].mxu0 %v1181
      %v1383 = vpop.f32.mrb[0].mxu0
      %v1384 = vadd.f32 0.0, %v1383
      %v1385 = vpop.f32.mrb[0].mxu0
      %1386 = vmatprep.mubr.f32.mxu0 0.0
      %1387 = vmatmul.mubr.f32.gmra.mrb[0].mxu0 %v1183
      %v1388 = vpop.f32.mrb[0].mxu0
      %v1389 = vadd.f32 0.0, %v1388
      %v1390 = vpop.f32.mrb[0].mxu0
      %1391 = vmatprep.mubr.f32.mxu0 0.0
      %1392 = vmatmul.mubr.f32.gmra.mrb[0].mxu0 %v1185
      %v1393 = vpop.f32.mrb[0].mxu0
      %v1394 = vadd.f32 0.0, %v1393
      %v1395 = vpop.f32.mrb[0].mxu0
      %1396 = vmatprep.mubr.f32.mxu0 0.0
      %1397 = vmatmul.mubr.f32.gmra.mrb[0].mxu0 %v1187
      %v1398 = vpop.f32.mrb[0].mxu0
      %v1399 = vadd.f32 0.0, %v1398
      %v1400 = vpop.f32.mrb[0].mxu0
      %1401 = vmatprep.mubr.f32.mxu0 0.0
      %1402 = vmatmul.mubr.f32.gmra.mrb[0].mxu0 %v1189
      %v1403 = vpop.f32.mrb[0].mxu0
      %v1404 = vadd.f32 0.0, %v1403
      %v1405 = vpop.f32.mrb[0].mxu0
      %1406 = vmatprep.mubr.f32.mxu0 0.0
      %1407 = vmatmul.mubr.f32.gmra.mrb[0].mxu0 %v1191
      %v1408 = vpop.f32.mrb[0].mxu0
      %v1409 = vadd.f32 0.0, %v1408
      %v1410 = vpop.f32.mrb[0].mxu0
      %1411 = vmatprep.mubr.f32.mxu0 0.0
      %1412 = vmatmul.mubr.f32.gmra.mrb[0].mxu0 %v1193
      %v1413 = vpop.f32.mrb[0].mxu0
      %v1414 = vadd.f32 0.0, %v1413
      %v1415 = vpop.f32.mrb[0].mxu0
      %1416 = vmatprep.mubr.f32.mxu0 0.0
      %1417 = vmatmul.mubr.f32.gmra.mrb[0].mxu0 %v1195
      %v1418 = vpop.f32.mrb[0].mxu0
      %v1419 = vadd.f32 0.0, %v1418
      %v1420 = vpop.f32.mrb[0].mxu0
      %1421 = vmatprep.mubr.f32.mxu0 0.0
      %1422 = vmatmul.mubr.f32.gmra.mrb[0].mxu0 %v1197
      %v1423 = vpop.f32.mrb[0].mxu0
      %v1424 = vadd.f32 0.0, %v1423
      %v1425 = vpop.f32.mrb[0].mxu0
      %1426 = vdwg.mxu0
      %v1427 = vld [vmem:[#allocation2] sm:$0xff]
      %v1428 = vld [vmem:[#allocation2 + $0x8] sm:$0xff]
      %v1429 = vld [vmem:[#allocation2 + $0x10] sm:$0xff]
      %v1430 = vld [vmem:[#allocation2 + $0x18] sm:$0xff]
      %v1431 = vld [vmem:[#allocation2 + $0x20] sm:$0xff]
      %v1432 = vld [vmem:[#allocation2 + $0x28] sm:$0xff]
      %v1433 = vld [vmem:[#allocation2 + $0x30] sm:$0xff]
      %v1434 = vld [vmem:[#allocation2 + $0x38] sm:$0xff]
      %v1435 = vld [vmem:[#allocation2 + $0x40] sm:$0xff]
      %v1436 = vld [vmem:[#allocation2 + $0x48] sm:$0xff]
      %v1437 = vld [vmem:[#allocation2 + $0x50] sm:$0xff]
      %v1438 = vld [vmem:[#allocation2 + $0x58] sm:$0xff]
      %v1439 = vld [vmem:[#allocation2 + $0x60] sm:$0xff]
      %v1440 = vld [vmem:[#allocation2 + $0x68] sm:$0xff]
      %v1441 = vld [vmem:[#allocation2 + $0x70] sm:$0xff]
      %v1442 = vld [vmem:[#allocation2 + $0x78] sm:$0xff]
      %v1443 = vld [vmem:[#allocation2 + $0x80] sm:$0xff]
      %v1444 = vld [vmem:[#allocation2 + $0x88] sm:$0xff]
      %v1445 = vld [vmem:[#allocation2 + $0x90] sm:$0xff]
      %v1446 = vld [vmem:[#allocation2 + $0x98] sm:$0xff]
      %v1447 = vld [vmem:[#allocation2 + $0xa0] sm:$0xff]
      %v1448 = vld [vmem:[#allocation2 + $0xa8] sm:$0xff]
      %v1449 = vld [vmem:[#allocation2 + $0xb0] sm:$0xff]
      %v1450 = vld [vmem:[#allocation2 + $0xb8] sm:$0xff]
      %v1451 = vld [vmem:[#allocation2 + $0xc0] sm:$0xff]
      %v1452 = vld [vmem:[#allocation2 + $0xc8] sm:$0xff]
      %v1453 = vld [vmem:[#allocation2 + $0xd0] sm:$0xff]
      %v1454 = vld [vmem:[#allocation2 + $0xd8] sm:$0xff]
      %v1455 = vld [vmem:[#allocation2 + $0xe0] sm:$0xff]
      %v1456 = vld [vmem:[#allocation2 + $0xe8] sm:$0xff]
      %v1457 = vld [vmem:[#allocation2 + $0xf0] sm:$0xff]
      %v1458 = vld [vmem:[#allocation2 + $0xf8] sm:$0xff]
      %v1459 = vadd.f32 %v1427, %v1269
      %v1460 = vadd.f32 %v1428, %v1274
      %v1461 = vadd.f32 %v1429, %v1279
      %v1462 = vadd.f32 %v1430, %v1284
      %v1463 = vadd.f32 %v1431, %v1289
      %v1464 = vadd.f32 %v1432, %v1294
      %v1465 = vadd.f32 %v1433, %v1299
      %v1466 = vadd.f32 %v1434, %v1304
      %v1467 = vadd.f32 %v1435, %v1309
      %v1468 = vadd.f32 %v1436, %v1314
      %v1469 = vadd.f32 %v1437, %v1319
      %v1470 = vadd.f32 %v1438, %v1324
      %v1471 = vadd.f32 %v1439, %v1329
      %v1472 = vadd.f32 %v1440, %v1334
      %v1473 = vadd.f32 %v1441, %v1339
      %v1474 = vadd.f32 %v1442, %v1344
      %v1475 = vadd.f32 %v1443, %v1349
      %v1476 = vadd.f32 %v1444, %v1354
      %v1477 = vadd.f32 %v1445, %v1359
      %v1478 = vadd.f32 %v1446, %v1364
      %v1479 = vadd.f32 %v1447, %v1369
      %v1480 = vadd.f32 %v1448, %v1374
      %v1481 = vadd.f32 %v1449, %v1379
      %v1482 = vadd.f32 %v1450, %v1384
      %v1483 = vadd.f32 %v1451, %v1389
      %v1484 = vadd.f32 %v1452, %v1394
      %v1485 = vadd.f32 %v1453, %v1399
      %v1486 = vadd.f32 %v1454, %v1404
      %v1487 = vadd.f32 %v1455, %v1409
      %v1488 = vadd.f32 %v1456, %v1414
      %v1489 = vadd.f32 %v1457, %v1419
      %v1490 = vadd.f32 %v1458, %v1424
      %1491 = vst.msk [vmem:[#allocation2] sm:$0xff] %vm678, %v1459
      %1492 = vst.msk [vmem:[#allocation2 + $0x8] sm:$0xff] %vm678, %v1460
      %1493 = vst.msk [vmem:[#allocation2 + $0x10] sm:$0xff] %vm678, %v1461
      %1494 = vst.msk [vmem:[#allocation2 + $0x18] sm:$0xff] %vm678, %v1462
      %1495 = vst.msk [vmem:[#allocation2 + $0x20] sm:$0xff] %vm678, %v1463
      %1496 = vst.msk [vmem:[#allocation2 + $0x28] sm:$0xff] %vm678, %v1464
      %1497 = vst.msk [vmem:[#allocation2 + $0x30] sm:$0xff] %vm678, %v1465
      %1498 = vst.msk [vmem:[#allocation2 + $0x38] sm:$0xff] %vm678, %v1466
      %1499 = vst.msk [vmem:[#allocation2 + $0x40] sm:$0xff] %vm678, %v1467
      %1500 = vst.msk [vmem:[#allocation2 + $0x48] sm:$0xff] %vm678, %v1468
      %1501 = vst.msk [vmem:[#allocation2 + $0x50] sm:$0xff] %vm678, %v1469
      %1502 = vst.msk [vmem:[#allocation2 + $0x58] sm:$0xff] %vm678, %v1470
      %1503 = vst.msk [vmem:[#allocation2 + $0x60] sm:$0xff] %vm678, %v1471
      %1504 = vst.msk [vmem:[#allocation2 + $0x68] sm:$0xff] %vm678, %v1472
      %1505 = vst.msk [vmem:[#allocation2 + $0x70] sm:$0xff] %vm678, %v1473
      %1506 = vst.msk [vmem:[#allocation2 + $0x78] sm:$0xff] %vm678, %v1474
      %1507 = vst.msk [vmem:[#allocation2 + $0x80] sm:$0xff] %vm678, %v1475
      %1508 = vst.msk [vmem:[#allocation2 + $0x88] sm:$0xff] %vm678, %v1476
      %1509 = vst.msk [vmem:[#allocation2 + $0x90] sm:$0xff] %vm678, %v1477
      %1510 = vst.msk [vmem:[#allocation2 + $0x98] sm:$0xff] %vm678, %v1478
      %1511 = vst.msk [vmem:[#allocation2 + $0xa0] sm:$0xff] %vm678, %v1479
      %1512 = vst.msk [vmem:[#allocation2 + $0xa8] sm:$0xff] %vm678, %v1480
      %1513 = vst.msk [vmem:[#allocation2 + $0xb0] sm:$0xff] %vm678, %v1481
      %1514 = vst.msk [vmem:[#allocation2 + $0xb8] sm:$0xff] %vm678, %v1482
      %1515 = vst.msk [vmem:[#allocation2 + $0xc0] sm:$0xff] %vm678, %v1483
      %1516 = vst.msk [vmem:[#allocation2 + $0xc8] sm:$0xff] %vm678, %v1484
      %1517 = vst.msk [vmem:[#allocation2 + $0xd0] sm:$0xff] %vm678, %v1485
      %1518 = vst.msk [vmem:[#allocation2 + $0xd8] sm:$0xff] %vm678, %v1486
      %1519 = vst.msk [vmem:[#allocation2 + $0xe0] sm:$0xff] %vm678, %v1487
      %1520 = vst.msk [vmem:[#allocation2 + $0xe8] sm:$0xff] %vm678, %v1488
      %1521 = vst.msk [vmem:[#allocation2 + $0xf0] sm:$0xff] %vm678, %v1489
      %1522 = vst.msk [vmem:[#allocation2 + $0xf8] sm:$0xff] %vm678, %v1490
      %vm1523 = vcmask 1045504
      %v1524 = vrot.slane %v623, 2
      %v1525 = vrot.slane %v624, 2
      %v1526 = vsel %vm1523, %v1524, %v1525
      %v1527 = vrot.slane %v625, 2
      %v1528 = vsel %vm1523, %v1525, %v1527
      %v1529 = vrot.slane %v626, 2
      %v1530 = vrot.slane %v627, 2
      %v1531 = vsel %vm1523, %v1529, %v1530
      %v1532 = vrot.slane %v628, 2
      %v1533 = vsel %vm1523, %v1530, %v1532
      %v1534 = vrot.slane %v629, 2
      %v1535 = vrot.slane %v630, 2
      %v1536 = vsel %vm1523, %v1534, %v1535
      %v1537 = vrot.slane %v631, 2
      %v1538 = vsel %vm1523, %v1535, %v1537
      %v1539 = vrot.slane %v632, 2
      %v1540 = vrot.slane %v633, 2
      %v1541 = vsel %vm1523, %v1539, %v1540
      %v1542 = vrot.slane %v634, 2
      %v1543 = vsel %vm1523, %v1540, %v1542
      %v1544 = vrot.slane %v635, 2
      %v1545 = vrot.slane %v636, 2
      %v1546 = vsel %vm1523, %v1544, %v1545
      %v1547 = vrot.slane %v637, 2
      %v1548 = vsel %vm1523, %v1545, %v1547
      %v1549 = vrot.slane %v638, 2
      %v1550 = vrot.slane %v639, 2
      %v1551 = vsel %vm1523, %v1549, %v1550
      %v1552 = vrot.slane %v640, 2
      %v1553 = vsel %vm1523, %v1550, %v1552
      %v1554 = vrot.slane %v641, 2
      %v1555 = vrot.slane %v642, 2
      %v1556 = vsel %vm1523, %v1554, %v1555
      %v1557 = vrot.slane %v643, 2
      %v1558 = vsel %vm1523, %v1555, %v1557
      %v1559 = vrot.slane %v644, 2
      %v1560 = vrot.slane %v645, 2
      %v1561 = vsel %vm1523, %v1559, %v1560
      %v1562 = vrot.slane %v646, 2
      %v1563 = vsel %vm1523, %v1560, %v1562
      %v1564 = vrot.slane %v647, 2
      %v1565 = vrot.slane %v648, 2
      %v1566 = vsel %vm1523, %v1564, %v1565
      %v1567 = vrot.slane %v649, 2
      %v1568 = vsel %vm1523, %v1565, %v1567
      %v1569 = vrot.slane %v650, 2
      %v1570 = vrot.slane %v651, 2
      %v1571 = vsel %vm1523, %v1569, %v1570
      %v1572 = vrot.slane %v652, 2
      %v1573 = vsel %vm1523, %v1570, %v1572
      %v1574 = vrot.slane %v653, 2
      %v1575 = vrot.slane %v654, 2
      %v1576 = vsel %vm1523, %v1574, %v1575
      %v1577 = vrot.slane %v655, 2
      %v1578 = vsel %vm1523, %v1575, %v1577
      %v1579 = vrot.slane %v656, 2
      %v1580 = vrot.slane %v657, 2
      %v1581 = vsel %vm1523, %v1579, %v1580
      %v1582 = vrot.slane %v658, 2
      %v1583 = vsel %vm1523, %v1580, %v1582
      %v1584 = vrot.slane %v659, 2
      %v1585 = vrot.slane %v660, 2
      %v1586 = vsel %vm1523, %v1584, %v1585
      %v1587 = vrot.slane %v661, 2
      %v1588 = vsel %vm1523, %v1585, %v1587
      %v1589 = vrot.slane %v662, 2
      %v1590 = vrot.slane %v663, 2
      %v1591 = vsel %vm1523, %v1589, %v1590
      %v1592 = vrot.slane %v664, 2
      %v1593 = vsel %vm1523, %v1590, %v1592
      %v1594 = vrot.slane %v665, 2
      %v1595 = vrot.slane %v666, 2
      %v1596 = vsel %vm1523, %v1594, %v1595
      %v1597 = vrot.slane %v667, 2
      %v1598 = vsel %vm1523, %v1595, %v1597
      %v1599 = vrot.slane %v668, 2
      %v1600 = vrot.slane %v669, 2
      %v1601 = vsel %vm1523, %v1599, %v1600
      %v1602 = vrot.slane %v670, 2
      %v1603 = vsel %vm1523, %v1600, %v1602
      %s1604 = scalar_lea.vmem %s2, 8
      %v1605 = vld [vmem:[%s1604] sm:$0xf]
      %v1606 = vsel %vm678, %v1526, 0
      %v1608 = vsel %vm678, %v1528, 0
      %v1610 = vsel %vm678, %v1531, 0
      %v1612 = vsel %vm678, %v1533, 0
      %v1614 = vsel %vm678, %v1536, 0
      %v1616 = vsel %vm678, %v1538, 0
      %v1618 = vsel %vm678, %v1541, 0
      %v1620 = vsel %vm678, %v1543, 0
      %v1622 = vsel %vm678, %v1546, 0
      %v1624 = vsel %vm678, %v1548, 0
      %v1626 = vsel %vm678, %v1551, 0
      %v1628 = vsel %vm678, %v1553, 0
      %v1630 = vsel %vm678, %v1556, 0
      %v1632 = vsel %vm678, %v1558, 0
      %v1634 = vsel %vm678, %v1561, 0
      %v1636 = vsel %vm678, %v1563, 0
      %v1638 = vsel %vm678, %v1566, 0
      %v1640 = vsel %vm678, %v1568, 0
      %v1642 = vsel %vm678, %v1571, 0
      %v1644 = vsel %vm678, %v1573, 0
      %v1646 = vsel %vm678, %v1576, 0
      %v1648 = vsel %vm678, %v1578, 0
      %v1650 = vsel %vm678, %v1581, 0
      %v1652 = vsel %vm678, %v1583, 0
      %v1654 = vsel %vm678, %v1586, 0
      %v1656 = vsel %vm678, %v1588, 0
      %v1658 = vsel %vm678, %v1591, 0
      %v1660 = vsel %vm678, %v1593, 0
      %v1662 = vsel %vm678, %v1596, 0
      %v1664 = vsel %vm678, %v1598, 0
      %v1666 = vsel %vm678, %v1601, 0
      %v1668 = vsel %vm678, %v1603, 0
      %v1671 = vsel %vm775, %v1605, 0
      %1673 = vmatprep.subr.mxu0 0.0
      %1674 = vmatpush1.msra.mxu0 %v1671
      %1675 = vmatprep.subr.mxu0 0.0
      %1676 = vmatpush1.msra.mxu0 0.0
      %1677 = vmatprep.subr.mxu0 0.0
      %1678 = vmatpush1.msra.mxu0 0.0
      %1679 = vmatprep.subr.mxu0 0.0
      %1680 = vmatpush1.msra.mxu0 0.0
      %1681 = vmatprep.subr.mxu0 0.0
      %1682 = vmatpush1.msra.mxu0 0.0
      %1683 = vmatprep.subr.mxu0 0.0
      %1684 = vmatpush1.msra.mxu0 0.0
      %1685 = vmatprep.subr.mxu0 0.0
      %1686 = vmatpush1.msra.mxu0 0.0
      %1687 = vmatprep.subr.mxu0 0.0
      %1688 = vmatpush1.msra.mxu0 0.0
      %1689 = vmatprep.subr.mxu0 0.0
      %1690 = vmatpush1.msra.mxu0 0.0
      %1691 = vmatprep.subr.mxu0 0.0
      %1692 = vmatpush1.msra.mxu0 0.0
      %1693 = vmatprep.subr.mxu0 0.0
      %1694 = vmatpush1.msra.mxu0 0.0
      %1695 = vmatprep.subr.mxu0 0.0
      %1696 = vmatpush1.msra.mxu0 0.0
      %1697 = vmatprep.subr.mxu0 0.0
      %1698 = vmatpush1.msra.mxu0 0.0
      %1699 = vmatprep.subr.mxu0 0.0
      %1700 = vmatpush1.msra.mxu0 0.0
      %1701 = vmatprep.subr.mxu0 0.0
      %1702 = vmatpush1.msra.mxu0 0.0
      %1703 = vmatprep.subr.mxu0 0.0
      %1704 = vmatpush1.msra.mxu0 0.0
      %1705 = vmatprep.subr.mxu0 0.0
      %1706 = vmatpush1.msra.mxu0 0.0
      %1707 = vmatprep.subr.mxu0 0.0
      %1708 = vmatpush1.msra.mxu0 0.0
      %1709 = vmatprep.subr.mxu0 0.0
      %1710 = vmatpush1.msra.mxu0 0.0
      %1711 = vmatprep.subr.mxu0 0.0
      %1712 = vmatpush1.msra.mxu0 0.0
      %1713 = vmatprep.subr.mxu0 0.0
      %1714 = vmatpush1.msra.mxu0 0.0
      %1715 = vmatprep.subr.mxu0 0.0
      %1716 = vmatpush1.msra.mxu0 0.0
      %1717 = vmatprep.subr.mxu0 0.0
      %1718 = vmatpush1.msra.mxu0 0.0
      %1719 = vmatprep.subr.mxu0 0.0
      %1720 = vmatpush1.msra.mxu0 0.0
      %1721 = vmatprep.subr.mxu0 0.0
      %1722 = vmatpush1.msra.mxu0 0.0
      %1723 = vmatprep.subr.mxu0 0.0
      %1724 = vmatpush1.msra.mxu0 0.0
      %1725 = vmatprep.subr.mxu0 0.0
      %1726 = vmatpush1.msra.mxu0 0.0
      %1727 = vmatprep.subr.mxu0 0.0
      %1728 = vmatpush1.msra.mxu0 0.0
      %1729 = vmatprep.subr.mxu0 0.0
      %1730 = vmatpush1.msra.mxu0 0.0
      %1731 = vmatprep.subr.mxu0 0.0
      %1732 = vmatpush1.msra.mxu0 0.0
      %1733 = vmatprep.subr.mxu0 0.0
      %1734 = vmatpush1.msra.mxu0 0.0
      %1735 = vmatprep.subr.mxu0 0.0
      %1736 = vmatpush1.msra.mxu0 0.0
      %1737 = vmatprep.mubr.f32.mxu0 0.0
      %1738 = vmatmul.mubr.f32.gmra.mrb[0].mxu0 %v1606
      %v1739 = vpop.f32.mrb[0].mxu0
      %v1740 = vadd.f32 0.0, %v1739
      %v1741 = vpop.f32.mrb[0].mxu0
      %1742 = vmatprep.mubr.f32.mxu0 0.0
      %1743 = vmatmul.mubr.f32.gmra.mrb[0].mxu0 %v1608
      %v1744 = vpop.f32.mrb[0].mxu0
      %v1745 = vadd.f32 0.0, %v1744
      %v1746 = vpop.f32.mrb[0].mxu0
      %1747 = vmatprep.mubr.f32.mxu0 0.0
      %1748 = vmatmul.mubr.f32.gmra.mrb[0].mxu0 %v1610
      %v1749 = vpop.f32.mrb[0].mxu0
      %v1750 = vadd.f32 0.0, %v1749
      %v1751 = vpop.f32.mrb[0].mxu0
      %1752 = vmatprep.mubr.f32.mxu0 0.0
      %1753 = vmatmul.mubr.f32.gmra.mrb[0].mxu0 %v1612
      %v1754 = vpop.f32.mrb[0].mxu0
      %v1755 = vadd.f32 0.0, %v1754
      %v1756 = vpop.f32.mrb[0].mxu0
      %1757 = vmatprep.mubr.f32.mxu0 0.0
      %1758 = vmatmul.mubr.f32.gmra.mrb[0].mxu0 %v1614
      %v1759 = vpop.f32.mrb[0].mxu0
      %v1760 = vadd.f32 0.0, %v1759
      %v1761 = vpop.f32.mrb[0].mxu0
      %1762 = vmatprep.mubr.f32.mxu0 0.0
      %1763 = vmatmul.mubr.f32.gmra.mrb[0].mxu0 %v1616
      %v1764 = vpop.f32.mrb[0].mxu0
      %v1765 = vadd.f32 0.0, %v1764
      %v1766 = vpop.f32.mrb[0].mxu0
      %1767 = vmatprep.mubr.f32.mxu0 0.0
      %1768 = vmatmul.mubr.f32.gmra.mrb[0].mxu0 %v1618
      %v1769 = vpop.f32.mrb[0].mxu0
      %v1770 = vadd.f32 0.0, %v1769
      %v1771 = vpop.f32.mrb[0].mxu0
      %1772 = vmatprep.mubr.f32.mxu0 0.0
      %1773 = vmatmul.mubr.f32.gmra.mrb[0].mxu0 %v1620
      %v1774 = vpop.f32.mrb[0].mxu0
      %v1775 = vadd.f32 0.0, %v1774
      %v1776 = vpop.f32.mrb[0].mxu0
      %1777 = vmatprep.mubr.f32.mxu0 0.0
      %1778 = vmatmul.mubr.f32.gmra.mrb[0].mxu0 %v1622
      %v1779 = vpop.f32.mrb[0].mxu0
      %v1780 = vadd.f32 0.0, %v1779
      %v1781 = vpop.f32.mrb[0].mxu0
      %1782 = vmatprep.mubr.f32.mxu0 0.0
      %1783 = vmatmul.mubr.f32.gmra.mrb[0].mxu0 %v1624
      %v1784 = vpop.f32.mrb[0].mxu0
      %v1785 = vadd.f32 0.0, %v1784
      %v1786 = vpop.f32.mrb[0].mxu0
      %1787 = vmatprep.mubr.f32.mxu0 0.0
      %1788 = vmatmul.mubr.f32.gmra.mrb[0].mxu0 %v1626
      %v1789 = vpop.f32.mrb[0].mxu0
      %v1790 = vadd.f32 0.0, %v1789
      %v1791 = vpop.f32.mrb[0].mxu0
      %1792 = vmatprep.mubr.f32.mxu0 0.0
      %1793 = vmatmul.mubr.f32.gmra.mrb[0].mxu0 %v1628
      %v1794 = vpop.f32.mrb[0].mxu0
      %v1795 = vadd.f32 0.0, %v1794
      %v1796 = vpop.f32.mrb[0].mxu0
      %1797 = vmatprep.mubr.f32.mxu0 0.0
      %1798 = vmatmul.mubr.f32.gmra.mrb[0].mxu0 %v1630
      %v1799 = vpop.f32.mrb[0].mxu0
      %v1800 = vadd.f32 0.0, %v1799
      %v1801 = vpop.f32.mrb[0].mxu0
      %1802 = vmatprep.mubr.f32.mxu0 0.0
      %1803 = vmatmul.mubr.f32.gmra.mrb[0].mxu0 %v1632
      %v1804 = vpop.f32.mrb[0].mxu0
      %v1805 = vadd.f32 0.0, %v1804
      %v1806 = vpop.f32.mrb[0].mxu0
      %1807 = vmatprep.mubr.f32.mxu0 0.0
      %1808 = vmatmul.mubr.f32.gmra.mrb[0].mxu0 %v1634
      %v1809 = vpop.f32.mrb[0].mxu0
      %v1810 = vadd.f32 0.0, %v1809
      %v1811 = vpop.f32.mrb[0].mxu0
      %1812 = vmatprep.mubr.f32.mxu0 0.0
      %1813 = vmatmul.mubr.f32.gmra.mrb[0].mxu0 %v1636
      %v1814 = vpop.f32.mrb[0].mxu0
      %v1815 = vadd.f32 0.0, %v1814
      %v1816 = vpop.f32.mrb[0].mxu0
      %1817 = vmatprep.mubr.f32.mxu0 0.0
      %1818 = vmatmul.mubr.f32.gmra.mrb[0].mxu0 %v1638
      %v1819 = vpop.f32.mrb[0].mxu0
      %v1820 = vadd.f32 0.0, %v1819
      %v1821 = vpop.f32.mrb[0].mxu0
      %1822 = vmatprep.mubr.f32.mxu0 0.0
      %1823 = vmatmul.mubr.f32.gmra.mrb[0].mxu0 %v1640
      %v1824 = vpop.f32.mrb[0].mxu0
      %v1825 = vadd.f32 0.0, %v1824
      %v1826 = vpop.f32.mrb[0].mxu0
      %1827 = vmatprep.mubr.f32.mxu0 0.0
      %1828 = vmatmul.mubr.f32.gmra.mrb[0].mxu0 %v1642
      %v1829 = vpop.f32.mrb[0].mxu0
      %v1830 = vadd.f32 0.0, %v1829
      %v1831 = vpop.f32.mrb[0].mxu0
      %1832 = vmatprep.mubr.f32.mxu0 0.0
      %1833 = vmatmul.mubr.f32.gmra.mrb[0].mxu0 %v1644
      %v1834 = vpop.f32.mrb[0].mxu0
      %v1835 = vadd.f32 0.0, %v1834
      %v1836 = vpop.f32.mrb[0].mxu0
      %1837 = vmatprep.mubr.f32.mxu0 0.0
      %1838 = vmatmul.mubr.f32.gmra.mrb[0].mxu0 %v1646
      %v1839 = vpop.f32.mrb[0].mxu0
      %v1840 = vadd.f32 0.0, %v1839
      %v1841 = vpop.f32.mrb[0].mxu0
      %1842 = vmatprep.mubr.f32.mxu0 0.0
      %1843 = vmatmul.mubr.f32.gmra.mrb[0].mxu0 %v1648
      %v1844 = vpop.f32.mrb[0].mxu0
      %v1845 = vadd.f32 0.0, %v1844
      %v1846 = vpop.f32.mrb[0].mxu0
      %1847 = vmatprep.mubr.f32.mxu0 0.0
      %1848 = vmatmul.mubr.f32.gmra.mrb[0].mxu0 %v1650
      %v1849 = vpop.f32.mrb[0].mxu0
      %v1850 = vadd.f32 0.0, %v1849
      %v1851 = vpop.f32.mrb[0].mxu0
      %1852 = vmatprep.mubr.f32.mxu0 0.0
      %1853 = vmatmul.mubr.f32.gmra.mrb[0].mxu0 %v1652
      %v1854 = vpop.f32.mrb[0].mxu0
      %v1855 = vadd.f32 0.0, %v1854
      %v1856 = vpop.f32.mrb[0].mxu0
      %1857 = vmatprep.mubr.f32.mxu0 0.0
      %1858 = vmatmul.mubr.f32.gmra.mrb[0].mxu0 %v1654
      %v1859 = vpop.f32.mrb[0].mxu0
      %v1860 = vadd.f32 0.0, %v1859
      %v1861 = vpop.f32.mrb[0].mxu0
      %1862 = vmatprep.mubr.f32.mxu0 0.0
      %1863 = vmatmul.mubr.f32.gmra.mrb[0].mxu0 %v1656
      %v1864 = vpop.f32.mrb[0].mxu0
      %v1865 = vadd.f32 0.0, %v1864
      %v1866 = vpop.f32.mrb[0].mxu0
      %1867 = vmatprep.mubr.f32.mxu0 0.0
      %1868 = vmatmul.mubr.f32.gmra.mrb[0].mxu0 %v1658
      %v1869 = vpop.f32.mrb[0].mxu0
      %v1870 = vadd.f32 0.0, %v1869
      %v1871 = vpop.f32.mrb[0].mxu0
      %1872 = vmatprep.mubr.f32.mxu0 0.0
      %1873 = vmatmul.mubr.f32.gmra.mrb[0].mxu0 %v1660
      %v1874 = vpop.f32.mrb[0].mxu0
      %v1875 = vadd.f32 0.0, %v1874
      %v1876 = vpop.f32.mrb[0].mxu0
      %1877 = vmatprep.mubr.f32.mxu0 0.0
      %1878 = vmatmul.mubr.f32.gmra.mrb[0].mxu0 %v1662
      %v1879 = vpop.f32.mrb[0].mxu0
      %v1880 = vadd.f32 0.0, %v1879
      %v1881 = vpop.f32.mrb[0].mxu0
      %1882 = vmatprep.mubr.f32.mxu0 0.0
      %1883 = vmatmul.mubr.f32.gmra.mrb[0].mxu0 %v1664
      %v1884 = vpop.f32.mrb[0].mxu0
      %v1885 = vadd.f32 0.0, %v1884
      %v1886 = vpop.f32.mrb[0].mxu0
      %1887 = vmatprep.mubr.f32.mxu0 0.0
      %1888 = vmatmul.mubr.f32.gmra.mrb[0].mxu0 %v1666
      %v1889 = vpop.f32.mrb[0].mxu0
      %v1890 = vadd.f32 0.0, %v1889
      %v1891 = vpop.f32.mrb[0].mxu0
      %1892 = vmatprep.mubr.f32.mxu0 0.0
      %1893 = vmatmul.mubr.f32.gmra.mrb[0].mxu0 %v1668
      %v1894 = vpop.f32.mrb[0].mxu0
      %v1895 = vadd.f32 0.0, %v1894
      %v1896 = vpop.f32.mrb[0].mxu0
      %1897 = vdwg.mxu0
      %v1898 = vld [vmem:[#allocation2] sm:$0xff]
      %v1899 = vld [vmem:[#allocation2 + $0x8] sm:$0xff]
      %v1900 = vld [vmem:[#allocation2 + $0x10] sm:$0xff]
      %v1901 = vld [vmem:[#allocation2 + $0x18] sm:$0xff]
      %v1902 = vld [vmem:[#allocation2 + $0x20] sm:$0xff]
      %v1903 = vld [vmem:[#allocation2 + $0x28] sm:$0xff]
      %v1904 = vld [vmem:[#allocation2 + $0x30] sm:$0xff]
      %v1905 = vld [vmem:[#allocation2 + $0x38] sm:$0xff]
      %v1906 = vld [vmem:[#allocation2 + $0x40] sm:$0xff]
      %v1907 = vld [vmem:[#allocation2 + $0x48] sm:$0xff]
      %v1908 = vld [vmem:[#allocation2 + $0x50] sm:$0xff]
      %v1909 = vld [vmem:[#allocation2 + $0x58] sm:$0xff]
      %v1910 = vld [vmem:[#allocation2 + $0x60] sm:$0xff]
      %v1911 = vld [vmem:[#allocation2 + $0x68] sm:$0xff]
      %v1912 = vld [vmem:[#allocation2 + $0x70] sm:$0xff]
      %v1913 = vld [vmem:[#allocation2 + $0x78] sm:$0xff]
      %v1914 = vld [vmem:[#allocation2 + $0x80] sm:$0xff]
      %v1915 = vld [vmem:[#allocation2 + $0x88] sm:$0xff]
      %v1916 = vld [vmem:[#allocation2 + $0x90] sm:$0xff]
      %v1917 = vld [vmem:[#allocation2 + $0x98] sm:$0xff]
      %v1918 = vld [vmem:[#allocation2 + $0xa0] sm:$0xff]
      %v1919 = vld [vmem:[#allocation2 + $0xa8] sm:$0xff]
      %v1920 = vld [vmem:[#allocation2 + $0xb0] sm:$0xff]
      %v1921 = vld [vmem:[#allocation2 + $0xb8] sm:$0xff]
      %v1922 = vld [vmem:[#allocation2 + $0xc0] sm:$0xff]
      %v1923 = vld [vmem:[#allocation2 + $0xc8] sm:$0xff]
      %v1924 = vld [vmem:[#allocation2 + $0xd0] sm:$0xff]
      %v1925 = vld [vmem:[#allocation2 + $0xd8] sm:$0xff]
      %v1926 = vld [vmem:[#allocation2 + $0xe0] sm:$0xff]
      %v1927 = vld [vmem:[#allocation2 + $0xe8] sm:$0xff]
      %v1928 = vld [vmem:[#allocation2 + $0xf0] sm:$0xff]
      %v1929 = vld [vmem:[#allocation2 + $0xf8] sm:$0xff]
      %v1930 = vadd.f32 %v1898, %v1740
      %v1931 = vadd.f32 %v1899, %v1745
      %v1932 = vadd.f32 %v1900, %v1750
      %v1933 = vadd.f32 %v1901, %v1755
      %v1934 = vadd.f32 %v1902, %v1760
      %v1935 = vadd.f32 %v1903, %v1765
      %v1936 = vadd.f32 %v1904, %v1770
      %v1937 = vadd.f32 %v1905, %v1775
      %v1938 = vadd.f32 %v1906, %v1780
      %v1939 = vadd.f32 %v1907, %v1785
      %v1940 = vadd.f32 %v1908, %v1790
      %v1941 = vadd.f32 %v1909, %v1795
      %v1942 = vadd.f32 %v1910, %v1800
      %v1943 = vadd.f32 %v1911, %v1805
      %v1944 = vadd.f32 %v1912, %v1810
      %v1945 = vadd.f32 %v1913, %v1815
      %v1946 = vadd.f32 %v1914, %v1820
      %v1947 = vadd.f32 %v1915, %v1825
      %v1948 = vadd.f32 %v1916, %v1830
      %v1949 = vadd.f32 %v1917, %v1835
      %v1950 = vadd.f32 %v1918, %v1840
      %v1951 = vadd.f32 %v1919, %v1845
      %v1952 = vadd.f32 %v1920, %v1850
      %v1953 = vadd.f32 %v1921, %v1855
      %v1954 = vadd.f32 %v1922, %v1860
      %v1955 = vadd.f32 %v1923, %v1865
      %v1956 = vadd.f32 %v1924, %v1870
      %v1957 = vadd.f32 %v1925, %v1875
      %v1958 = vadd.f32 %v1926, %v1880
      %v1959 = vadd.f32 %v1927, %v1885
      %v1960 = vadd.f32 %v1928, %v1890
      %v1961 = vadd.f32 %v1929, %v1895
      %1962 = vst.msk [vmem:[#allocation2] sm:$0xff] %vm678, %v1930
      %1963 = vst.msk [vmem:[#allocation2 + $0x8] sm:$0xff] %vm678, %v1931
      %1964 = vst.msk [vmem:[#allocation2 + $0x10] sm:$0xff] %vm678, %v1932
      %1965 = vst.msk [vmem:[#allocation2 + $0x18] sm:$0xff] %vm678, %v1933
      %1966 = vst.msk [vmem:[#allocation2 + $0x20] sm:$0xff] %vm678, %v1934
      %1967 = vst.msk [vmem:[#allocation2 + $0x28] sm:$0xff] %vm678, %v1935
      %1968 = vst.msk [vmem:[#allocation2 + $0x30] sm:$0xff] %vm678, %v1936
      %1969 = vst.msk [vmem:[#allocation2 + $0x38] sm:$0xff] %vm678, %v1937
      %1970 = vst.msk [vmem:[#allocation2 + $0x40] sm:$0xff] %vm678, %v1938
      %1971 = vst.msk [vmem:[#allocation2 + $0x48] sm:$0xff] %vm678, %v1939
      %1972 = vst.msk [vmem:[#allocation2 + $0x50] sm:$0xff] %vm678, %v1940
      %1973 = vst.msk [vmem:[#allocation2 + $0x58] sm:$0xff] %vm678, %v1941
      %1974 = vst.msk [vmem:[#allocation2 + $0x60] sm:$0xff] %vm678, %v1942
      %1975 = vst.msk [vmem:[#allocation2 + $0x68] sm:$0xff] %vm678, %v1943
      %1976 = vst.msk [vmem:[#allocation2 + $0x70] sm:$0xff] %vm678, %v1944
      %1977 = vst.msk [vmem:[#allocation2 + $0x78] sm:$0xff] %vm678, %v1945
      %1978 = vst.msk [vmem:[#allocation2 + $0x80] sm:$0xff] %vm678, %v1946
      %1979 = vst.msk [vmem:[#allocation2 + $0x88] sm:$0xff] %vm678, %v1947
      %1980 = vst.msk [vmem:[#allocation2 + $0x90] sm:$0xff] %vm678, %v1948
      %1981 = vst.msk [vmem:[#allocation2 + $0x98] sm:$0xff] %vm678, %v1949
      %1982 = vst.msk [vmem:[#allocation2 + $0xa0] sm:$0xff] %vm678, %v1950
      %1983 = vst.msk [vmem:[#allocation2 + $0xa8] sm:$0xff] %vm678, %v1951
      %1984 = vst.msk [vmem:[#allocation2 + $0xb0] sm:$0xff] %vm678, %v1952
      %1985 = vst.msk [vmem:[#allocation2 + $0xb8] sm:$0xff] %vm678, %v1953
      %1986 = vst.msk [vmem:[#allocation2 + $0xc0] sm:$0xff] %vm678, %v1954
      %1987 = vst.msk [vmem:[#allocation2 + $0xc8] sm:$0xff] %vm678, %v1955
      %1988 = vst.msk [vmem:[#allocation2 + $0xd0] sm:$0xff] %vm678, %v1956
      %1989 = vst.msk [vmem:[#allocation2 + $0xd8] sm:$0xff] %vm678, %v1957
      %1990 = vst.msk [vmem:[#allocation2 + $0xe0] sm:$0xff] %vm678, %v1958
      %1991 = vst.msk [vmem:[#allocation2 + $0xe8] sm:$0xff] %vm678, %v1959
      %1992 = vst.msk [vmem:[#allocation2 + $0xf0] sm:$0xff] %vm678, %v1960
      %1993 = vst.msk [vmem:[#allocation2 + $0xf8] sm:$0xff] %vm678, %v1961
      %s1994 = scalar_lea.vmem %s2, 12
      %v1995 = vld [vmem:[%s1994] sm:$0xf]
      %v1997 = vsel %vm678, %v671, 0
      %v2000 = vsel %vm678, %v672, 0
      %v2003 = vsel %vm775, %v1995, 0
      %2005 = vmatprep.subr.mxu0 0.0
      %2006 = vmatpush1.msra.mxu0 %v2003
      %2007 = vmatprep.subr.mxu0 0.0
      %2008 = vmatpush1.msra.mxu0 0.0
      %2009 = vmatprep.subr.mxu0 0.0
      %2010 = vmatpush1.msra.mxu0 0.0
      %2011 = vmatprep.subr.mxu0 0.0
      %2012 = vmatpush1.msra.mxu0 0.0
      %2013 = vmatprep.subr.mxu0 0.0
      %2014 = vmatpush1.msra.mxu0 0.0
      %2015 = vmatprep.subr.mxu0 0.0
      %2016 = vmatpush1.msra.mxu0 0.0
      %2017 = vmatprep.subr.mxu0 0.0
      %2018 = vmatpush1.msra.mxu0 0.0
      %2019 = vmatprep.subr.mxu0 0.0
      %2020 = vmatpush1.msra.mxu0 0.0
      %2021 = vmatprep.subr.mxu0 0.0
      %2022 = vmatpush1.msra.mxu0 0.0
      %2023 = vmatprep.subr.mxu0 0.0
      %2024 = vmatpush1.msra.mxu0 0.0
      %2025 = vmatprep.subr.mxu0 0.0
      %2026 = vmatpush1.msra.mxu0 0.0
      %2027 = vmatprep.subr.mxu0 0.0
      %2028 = vmatpush1.msra.mxu0 0.0
      %2029 = vmatprep.subr.mxu0 0.0
      %2030 = vmatpush1.msra.mxu0 0.0
      %2031 = vmatprep.subr.mxu0 0.0
      %2032 = vmatpush1.msra.mxu0 0.0
      %2033 = vmatprep.subr.mxu0 0.0
      %2034 = vmatpush1.msra.mxu0 0.0
      %2035 = vmatprep.subr.mxu0 0.0
      %2036 = vmatpush1.msra.mxu0 0.0
      %2037 = vmatprep.subr.mxu0 0.0
      %2038 = vmatpush1.msra.mxu0 0.0
      %2039 = vmatprep.subr.mxu0 0.0
      %2040 = vmatpush1.msra.mxu0 0.0
      %2041 = vmatprep.subr.mxu0 0.0
      %2042 = vmatpush1.msra.mxu0 0.0
      %2043 = vmatprep.subr.mxu0 0.0
      %2044 = vmatpush1.msra.mxu0 0.0
      %2045 = vmatprep.subr.mxu0 0.0
      %2046 = vmatpush1.msra.mxu0 0.0
      %2047 = vmatprep.subr.mxu0 0.0
      %2048 = vmatpush1.msra.mxu0 0.0
      %2049 = vmatprep.subr.mxu0 0.0
      %2050 = vmatpush1.msra.mxu0 0.0
      %2051 = vmatprep.subr.mxu0 0.0
      %2052 = vmatpush1.msra.mxu0 0.0
      %2053 = vmatprep.subr.mxu0 0.0
      %2054 = vmatpush1.msra.mxu0 0.0
      %2055 = vmatprep.subr.mxu0 0.0
      %2056 = vmatpush1.msra.mxu0 0.0
      %2057 = vmatprep.subr.mxu0 0.0
      %2058 = vmatpush1.msra.mxu0 0.0
      %2059 = vmatprep.subr.mxu0 0.0
      %2060 = vmatpush1.msra.mxu0 0.0
      %2061 = vmatprep.subr.mxu0 0.0
      %2062 = vmatpush1.msra.mxu0 0.0
      %2063 = vmatprep.subr.mxu0 0.0
      %2064 = vmatpush1.msra.mxu0 0.0
      %2065 = vmatprep.subr.mxu0 0.0
      %2066 = vmatpush1.msra.mxu0 0.0
      %2067 = vmatprep.subr.mxu0 0.0
      %2068 = vmatpush1.msra.mxu0 0.0
      %2069 = vmatprep.mubr.f32.mxu0 0.0
      %2070 = vmatmul.mubr.f32.gmra.mrb[0].mxu0 %v686
      %v2071 = vpop.f32.mrb[0].mxu0
      %v2072 = vadd.f32 0.0, %v2071
      %v2073 = vpop.f32.mrb[0].mxu0
      %2074 = vmatprep.mubr.f32.mxu0 0.0
      %2075 = vmatmul.mubr.f32.gmra.mrb[0].mxu0 %v689
      %v2076 = vpop.f32.mrb[0].mxu0
      %v2077 = vadd.f32 0.0, %v2076
      %v2078 = vpop.f32.mrb[0].mxu0
      %2079 = vmatprep.mubr.f32.mxu0 0.0
      %2080 = vmatmul.mubr.f32.gmra.mrb[0].mxu0 %v692
      %v2081 = vpop.f32.mrb[0].mxu0
      %v2082 = vadd.f32 0.0, %v2081
      %v2083 = vpop.f32.mrb[0].mxu0
      %2084 = vmatprep.mubr.f32.mxu0 0.0
      %2085 = vmatmul.mubr.f32.gmra.mrb[0].mxu0 %v695
      %v2086 = vpop.f32.mrb[0].mxu0
      %v2087 = vadd.f32 0.0, %v2086
      %v2088 = vpop.f32.mrb[0].mxu0
      %2089 = vmatprep.mubr.f32.mxu0 0.0
      %2090 = vmatmul.mubr.f32.gmra.mrb[0].mxu0 %v698
      %v2091 = vpop.f32.mrb[0].mxu0
      %v2092 = vadd.f32 0.0, %v2091
      %v2093 = vpop.f32.mrb[0].mxu0
      %2094 = vmatprep.mubr.f32.mxu0 0.0
      %2095 = vmatmul.mubr.f32.gmra.mrb[0].mxu0 %v701
      %v2096 = vpop.f32.mrb[0].mxu0
      %v2097 = vadd.f32 0.0, %v2096
      %v2098 = vpop.f32.mrb[0].mxu0
      %2099 = vmatprep.mubr.f32.mxu0 0.0
      %2100 = vmatmul.mubr.f32.gmra.mrb[0].mxu0 %v704
      %v2101 = vpop.f32.mrb[0].mxu0
      %v2102 = vadd.f32 0.0, %v2101
      %v2103 = vpop.f32.mrb[0].mxu0
      %2104 = vmatprep.mubr.f32.mxu0 0.0
      %2105 = vmatmul.mubr.f32.gmra.mrb[0].mxu0 %v707
      %v2106 = vpop.f32.mrb[0].mxu0
      %v2107 = vadd.f32 0.0, %v2106
      %v2108 = vpop.f32.mrb[0].mxu0
      %2109 = vmatprep.mubr.f32.mxu0 0.0
      %2110 = vmatmul.mubr.f32.gmra.mrb[0].mxu0 %v710
      %v2111 = vpop.f32.mrb[0].mxu0
      %v2112 = vadd.f32 0.0, %v2111
      %v2113 = vpop.f32.mrb[0].mxu0
      %2114 = vmatprep.mubr.f32.mxu0 0.0
      %2115 = vmatmul.mubr.f32.gmra.mrb[0].mxu0 %v713
      %v2116 = vpop.f32.mrb[0].mxu0
      %v2117 = vadd.f32 0.0, %v2116
      %v2118 = vpop.f32.mrb[0].mxu0
      %2119 = vmatprep.mubr.f32.mxu0 0.0
      %2120 = vmatmul.mubr.f32.gmra.mrb[0].mxu0 %v716
      %v2121 = vpop.f32.mrb[0].mxu0
      %v2122 = vadd.f32 0.0, %v2121
      %v2123 = vpop.f32.mrb[0].mxu0
      %2124 = vmatprep.mubr.f32.mxu0 0.0
      %2125 = vmatmul.mubr.f32.gmra.mrb[0].mxu0 %v719
      %v2126 = vpop.f32.mrb[0].mxu0
      %v2127 = vadd.f32 0.0, %v2126
      %v2128 = vpop.f32.mrb[0].mxu0
      %2129 = vmatprep.mubr.f32.mxu0 0.0
      %2130 = vmatmul.mubr.f32.gmra.mrb[0].mxu0 %v722
      %v2131 = vpop.f32.mrb[0].mxu0
      %v2132 = vadd.f32 0.0, %v2131
      %v2133 = vpop.f32.mrb[0].mxu0
      %2134 = vmatprep.mubr.f32.mxu0 0.0
      %2135 = vmatmul.mubr.f32.gmra.mrb[0].mxu0 %v725
      %v2136 = vpop.f32.mrb[0].mxu0
      %v2137 = vadd.f32 0.0, %v2136
      %v2138 = vpop.f32.mrb[0].mxu0
      %2139 = vmatprep.mubr.f32.mxu0 0.0
      %2140 = vmatmul.mubr.f32.gmra.mrb[0].mxu0 %v728
      %v2141 = vpop.f32.mrb[0].mxu0
      %v2142 = vadd.f32 0.0, %v2141
      %v2143 = vpop.f32.mrb[0].mxu0
      %2144 = vmatprep.mubr.f32.mxu0 0.0
      %2145 = vmatmul.mubr.f32.gmra.mrb[0].mxu0 %v731
      %v2146 = vpop.f32.mrb[0].mxu0
      %v2147 = vadd.f32 0.0, %v2146
      %v2148 = vpop.f32.mrb[0].mxu0
      %2149 = vmatprep.mubr.f32.mxu0 0.0
      %2150 = vmatmul.mubr.f32.gmra.mrb[0].mxu0 %v734
      %v2151 = vpop.f32.mrb[0].mxu0
      %v2152 = vadd.f32 0.0, %v2151
      %v2153 = vpop.f32.mrb[0].mxu0
      %2154 = vmatprep.mubr.f32.mxu0 0.0
      %2155 = vmatmul.mubr.f32.gmra.mrb[0].mxu0 %v737
      %v2156 = vpop.f32.mrb[0].mxu0
      %v2157 = vadd.f32 0.0, %v2156
      %v2158 = vpop.f32.mrb[0].mxu0
      %2159 = vmatprep.mubr.f32.mxu0 0.0
      %2160 = vmatmul.mubr.f32.gmra.mrb[0].mxu0 %v740
      %v2161 = vpop.f32.mrb[0].mxu0
      %v2162 = vadd.f32 0.0, %v2161
      %v2163 = vpop.f32.mrb[0].mxu0
      %2164 = vmatprep.mubr.f32.mxu0 0.0
      %2165 = vmatmul.mubr.f32.gmra.mrb[0].mxu0 %v743
      %v2166 = vpop.f32.mrb[0].mxu0
      %v2167 = vadd.f32 0.0, %v2166
      %v2168 = vpop.f32.mrb[0].mxu0
      %2169 = vmatprep.mubr.f32.mxu0 0.0
      %2170 = vmatmul.mubr.f32.gmra.mrb[0].mxu0 %v746
      %v2171 = vpop.f32.mrb[0].mxu0
      %v2172 = vadd.f32 0.0, %v2171
      %v2173 = vpop.f32.mrb[0].mxu0
      %2174 = vmatprep.mubr.f32.mxu0 0.0
      %2175 = vmatmul.mubr.f32.gmra.mrb[0].mxu0 %v749
      %v2176 = vpop.f32.mrb[0].mxu0
      %v2177 = vadd.f32 0.0, %v2176
      %v2178 = vpop.f32.mrb[0].mxu0
      %2179 = vmatprep.mubr.f32.mxu0 0.0
      %2180 = vmatmul.mubr.f32.gmra.mrb[0].mxu0 %v752
      %v2181 = vpop.f32.mrb[0].mxu0
      %v2182 = vadd.f32 0.0, %v2181
      %v2183 = vpop.f32.mrb[0].mxu0
      %2184 = vmatprep.mubr.f32.mxu0 0.0
      %2185 = vmatmul.mubr.f32.gmra.mrb[0].mxu0 %v755
      %v2186 = vpop.f32.mrb[0].mxu0
      %v2187 = vadd.f32 0.0, %v2186
      %v2188 = vpop.f32.mrb[0].mxu0
      %2189 = vmatprep.mubr.f32.mxu0 0.0
      %2190 = vmatmul.mubr.f32.gmra.mrb[0].mxu0 %v758
      %v2191 = vpop.f32.mrb[0].mxu0
      %v2192 = vadd.f32 0.0, %v2191
      %v2193 = vpop.f32.mrb[0].mxu0
      %2194 = vmatprep.mubr.f32.mxu0 0.0
      %2195 = vmatmul.mubr.f32.gmra.mrb[0].mxu0 %v761
      %v2196 = vpop.f32.mrb[0].mxu0
      %v2197 = vadd.f32 0.0, %v2196
      %v2198 = vpop.f32.mrb[0].mxu0
      %2199 = vmatprep.mubr.f32.mxu0 0.0
      %2200 = vmatmul.mubr.f32.gmra.mrb[0].mxu0 %v764
      %v2201 = vpop.f32.mrb[0].mxu0
      %v2202 = vadd.f32 0.0, %v2201
      %v2203 = vpop.f32.mrb[0].mxu0
      %2204 = vmatprep.mubr.f32.mxu0 0.0
      %2205 = vmatmul.mubr.f32.gmra.mrb[0].mxu0 %v767
      %v2206 = vpop.f32.mrb[0].mxu0
      %v2207 = vadd.f32 0.0, %v2206
      %v2208 = vpop.f32.mrb[0].mxu0
      %2209 = vmatprep.mubr.f32.mxu0 0.0
      %2210 = vmatmul.mubr.f32.gmra.mrb[0].mxu0 %v770
      %v2211 = vpop.f32.mrb[0].mxu0
      %v2212 = vadd.f32 0.0, %v2211
      %v2213 = vpop.f32.mrb[0].mxu0
      %2214 = vmatprep.mubr.f32.mxu0 0.0
      %2215 = vmatmul.mubr.f32.gmra.mrb[0].mxu0 %v773
      %v2216 = vpop.f32.mrb[0].mxu0
      %v2217 = vadd.f32 0.0, %v2216
      %v2218 = vpop.f32.mrb[0].mxu0
      %2219 = vmatprep.mubr.f32.mxu0 0.0
      %2220 = vmatmul.mubr.f32.gmra.mrb[0].mxu0 %v1997
      %v2221 = vpop.f32.mrb[0].mxu0
      %v2222 = vadd.f32 0.0, %v2221
      %v2223 = vpop.f32.mrb[0].mxu0
      %2224 = vmatprep.mubr.f32.mxu0 0.0
      %2225 = vmatmul.mubr.f32.gmra.mrb[0].mxu0 %v2000
      %v2226 = vpop.f32.mrb[0].mxu0
      %v2227 = vadd.f32 0.0, %v2226
      %v2228 = vpop.f32.mrb[0].mxu0
      %2229 = vdwg.mxu0
      %v2230 = vld [vmem:[#allocation2] sm:$0xff]
      %v2231 = vld [vmem:[#allocation2 + $0x8] sm:$0xff]
      %v2232 = vld [vmem:[#allocation2 + $0x10] sm:$0xff]
      %v2233 = vld [vmem:[#allocation2 + $0x18] sm:$0xff]
      %v2234 = vld [vmem:[#allocation2 + $0x20] sm:$0xff]
      %v2235 = vld [vmem:[#allocation2 + $0x28] sm:$0xff]
      %v2236 = vld [vmem:[#allocation2 + $0x30] sm:$0xff]
      %v2237 = vld [vmem:[#allocation2 + $0x38] sm:$0xff]
      %v2238 = vld [vmem:[#allocation2 + $0x40] sm:$0xff]
      %v2239 = vld [vmem:[#allocation2 + $0x48] sm:$0xff]
      %v2240 = vld [vmem:[#allocation2 + $0x50] sm:$0xff]
      %v2241 = vld [vmem:[#allocation2 + $0x58] sm:$0xff]
      %v2242 = vld [vmem:[#allocation2 + $0x60] sm:$0xff]
      %v2243 = vld [vmem:[#allocation2 + $0x68] sm:$0xff]
      %v2244 = vld [vmem:[#allocation2 + $0x70] sm:$0xff]
      %v2245 = vld [vmem:[#allocation2 + $0x78] sm:$0xff]
      %v2246 = vld [vmem:[#allocation2 + $0x80] sm:$0xff]
      %v2247 = vld [vmem:[#allocation2 + $0x88] sm:$0xff]
      %v2248 = vld [vmem:[#allocation2 + $0x90] sm:$0xff]
      %v2249 = vld [vmem:[#allocation2 + $0x98] sm:$0xff]
      %v2250 = vld [vmem:[#allocation2 + $0xa0] sm:$0xff]
      %v2251 = vld [vmem:[#allocation2 + $0xa8] sm:$0xff]
      %v2252 = vld [vmem:[#allocation2 + $0xb0] sm:$0xff]
      %v2253 = vld [vmem:[#allocation2 + $0xb8] sm:$0xff]
      %v2254 = vld [vmem:[#allocation2 + $0xc0] sm:$0xff]
      %v2255 = vld [vmem:[#allocation2 + $0xc8] sm:$0xff]
      %v2256 = vld [vmem:[#allocation2 + $0xd0] sm:$0xff]
      %v2257 = vld [vmem:[#allocation2 + $0xd8] sm:$0xff]
      %v2258 = vld [vmem:[#allocation2 + $0xe0] sm:$0xff]
      %v2259 = vld [vmem:[#allocation2 + $0xe8] sm:$0xff]
      %v2260 = vld [vmem:[#allocation2 + $0xf0] sm:$0xff]
      %v2261 = vld [vmem:[#allocation2 + $0xf8] sm:$0xff]
      %v2262 = vadd.f32 %v2230, %v2072
      %v2263 = vadd.f32 %v2231, %v2077
      %v2264 = vadd.f32 %v2232, %v2082
      %v2265 = vadd.f32 %v2233, %v2087
      %v2266 = vadd.f32 %v2234, %v2092
      %v2267 = vadd.f32 %v2235, %v2097
      %v2268 = vadd.f32 %v2236, %v2102
      %v2269 = vadd.f32 %v2237, %v2107
      %v2270 = vadd.f32 %v2238, %v2112
      %v2271 = vadd.f32 %v2239, %v2117
      %v2272 = vadd.f32 %v2240, %v2122
      %v2273 = vadd.f32 %v2241, %v2127
      %v2274 = vadd.f32 %v2242, %v2132
      %v2275 = vadd.f32 %v2243, %v2137
      %v2276 = vadd.f32 %v2244, %v2142
      %v2277 = vadd.f32 %v2245, %v2147
      %v2278 = vadd.f32 %v2246, %v2152
      %v2279 = vadd.f32 %v2247, %v2157
      %v2280 = vadd.f32 %v2248, %v2162
      %v2281 = vadd.f32 %v2249, %v2167
      %v2282 = vadd.f32 %v2250, %v2172
      %v2283 = vadd.f32 %v2251, %v2177
      %v2284 = vadd.f32 %v2252, %v2182
      %v2285 = vadd.f32 %v2253, %v2187
      %v2286 = vadd.f32 %v2254, %v2192
      %v2287 = vadd.f32 %v2255, %v2197
      %v2288 = vadd.f32 %v2256, %v2202
      %v2289 = vadd.f32 %v2257, %v2207
      %v2290 = vadd.f32 %v2258, %v2212
      %v2291 = vadd.f32 %v2259, %v2217
      %v2292 = vadd.f32 %v2260, %v2222
      %v2293 = vadd.f32 %v2261, %v2227
      %2294 = vst.msk [vmem:[#allocation2] sm:$0xff] %vm678, %v2262
      %2295 = vst.msk [vmem:[#allocation2 + $0x8] sm:$0xff] %vm678, %v2263
      %2296 = vst.msk [vmem:[#allocation2 + $0x10] sm:$0xff] %vm678, %v2264
      %2297 = vst.msk [vmem:[#allocation2 + $0x18] sm:$0xff] %vm678, %v2265
      %2298 = vst.msk [vmem:[#allocation2 + $0x20] sm:$0xff] %vm678, %v2266
      %2299 = vst.msk [vmem:[#allocation2 + $0x28] sm:$0xff] %vm678, %v2267
      %2300 = vst.msk [vmem:[#allocation2 + $0x30] sm:$0xff] %vm678, %v2268
      %2301 = vst.msk [vmem:[#allocation2 + $0x38] sm:$0xff] %vm678, %v2269
      %2302 = vst.msk [vmem:[#allocation2 + $0x40] sm:$0xff] %vm678, %v2270
      %2303 = vst.msk [vmem:[#allocation2 + $0x48] sm:$0xff] %vm678, %v2271
      %2304 = vst.msk [vmem:[#allocation2 + $0x50] sm:$0xff] %vm678, %v2272
      %2305 = vst.msk [vmem:[#allocation2 + $0x58] sm:$0xff] %vm678, %v2273
      %2306 = vst.msk [vmem:[#allocation2 + $0x60] sm:$0xff] %vm678, %v2274
      %2307 = vst.msk [vmem:[#allocation2 + $0x68] sm:$0xff] %vm678, %v2275
      %2308 = vst.msk [vmem:[#allocation2 + $0x70] sm:$0xff] %vm678, %v2276
      %2309 = vst.msk [vmem:[#allocation2 + $0x78] sm:$0xff] %vm678, %v2277
      %2310 = vst.msk [vmem:[#allocation2 + $0x80] sm:$0xff] %vm678, %v2278
      %2311 = vst.msk [vmem:[#allocation2 + $0x88] sm:$0xff] %vm678, %v2279
      %2312 = vst.msk [vmem:[#allocation2 + $0x90] sm:$0xff] %vm678, %v2280
      %2313 = vst.msk [vmem:[#allocation2 + $0x98] sm:$0xff] %vm678, %v2281
      %2314 = vst.msk [vmem:[#allocation2 + $0xa0] sm:$0xff] %vm678, %v2282
      %2315 = vst.msk [vmem:[#allocation2 + $0xa8] sm:$0xff] %vm678, %v2283
      %2316 = vst.msk [vmem:[#allocation2 + $0xb0] sm:$0xff] %vm678, %v2284
      %2317 = vst.msk [vmem:[#allocation2 + $0xb8] sm:$0xff] %vm678, %v2285
      %2318 = vst.msk [vmem:[#allocation2 + $0xc0] sm:$0xff] %vm678, %v2286
      %2319 = vst.msk [vmem:[#allocation2 + $0xc8] sm:$0xff] %vm678, %v2287
      %2320 = vst.msk [vmem:[#allocation2 + $0xd0] sm:$0xff] %vm678, %v2288
      %2321 = vst.msk [vmem:[#allocation2 + $0xd8] sm:$0xff] %vm678, %v2289
      %2322 = vst.msk [vmem:[#allocation2 + $0xe0] sm:$0xff] %vm678, %v2290
      %2323 = vst.msk [vmem:[#allocation2 + $0xe8] sm:$0xff] %vm678, %v2291
      %2324 = vst.msk [vmem:[#allocation2 + $0xf0] sm:$0xff] %vm678, %v2292
      %2325 = vst.msk [vmem:[#allocation2 + $0xf8] sm:$0xff] %vm678, %v2293
      %v2327 = vrot.slane %v671, 1
      %v2328 = vrot.slane %v672, 1
      %v2329 = vsel %vm1052, %v2327, %v2328
      %v2330 = vrot.slane %v673, 1
      %v2331 = vsel %vm1052, %v2328, %v2330
      %s2332 = scalar_lea.vmem %s2, 16
      %v2333 = vld [vmem:[%s2332] sm:$0xf]
      %v2334 = vsel %vm678, %v2329, 0
      %v2336 = vsel %vm678, %v2331, 0
      %v2339 = vsel %vm775, %v2333, 0
      %2341 = vmatprep.subr.mxu0 0.0
      %2342 = vmatpush1.msra.mxu0 %v2339
      %2343 = vmatprep.subr.mxu0 0.0
      %2344 = vmatpush1.msra.mxu0 0.0
      %2345 = vmatprep.subr.mxu0 0.0
      %2346 = vmatpush1.msra.mxu0 0.0
      %2347 = vmatprep.subr.mxu0 0.0
      %2348 = vmatpush1.msra.mxu0 0.0
      %2349 = vmatprep.subr.mxu0 0.0
      %2350 = vmatpush1.msra.mxu0 0.0
      %2351 = vmatprep.subr.mxu0 0.0
      %2352 = vmatpush1.msra.mxu0 0.0
      %2353 = vmatprep.subr.mxu0 0.0
      %2354 = vmatpush1.msra.mxu0 0.0
      %2355 = vmatprep.subr.mxu0 0.0
      %2356 = vmatpush1.msra.mxu0 0.0
      %2357 = vmatprep.subr.mxu0 0.0
      %2358 = vmatpush1.msra.mxu0 0.0
      %2359 = vmatprep.subr.mxu0 0.0
      %2360 = vmatpush1.msra.mxu0 0.0
      %2361 = vmatprep.subr.mxu0 0.0
      %2362 = vmatpush1.msra.mxu0 0.0
      %2363 = vmatprep.subr.mxu0 0.0
      %2364 = vmatpush1.msra.mxu0 0.0
      %2365 = vmatprep.subr.mxu0 0.0
      %2366 = vmatpush1.msra.mxu0 0.0
      %2367 = vmatprep.subr.mxu0 0.0
      %2368 = vmatpush1.msra.mxu0 0.0
      %2369 = vmatprep.subr.mxu0 0.0
      %2370 = vmatpush1.msra.mxu0 0.0
      %2371 = vmatprep.subr.mxu0 0.0
      %2372 = vmatpush1.msra.mxu0 0.0
      %2373 = vmatprep.subr.mxu0 0.0
      %2374 = vmatpush1.msra.mxu0 0.0
      %2375 = vmatprep.subr.mxu0 0.0
      %2376 = vmatpush1.msra.mxu0 0.0
      %2377 = vmatprep.subr.mxu0 0.0
      %2378 = vmatpush1.msra.mxu0 0.0
      %2379 = vmatprep.subr.mxu0 0.0
      %2380 = vmatpush1.msra.mxu0 0.0
      %2381 = vmatprep.subr.mxu0 0.0
      %2382 = vmatpush1.msra.mxu0 0.0
      %2383 = vmatprep.subr.mxu0 0.0
      %2384 = vmatpush1.msra.mxu0 0.0
      %2385 = vmatprep.subr.mxu0 0.0
      %2386 = vmatpush1.msra.mxu0 0.0
      %2387 = vmatprep.subr.mxu0 0.0
      %2388 = vmatpush1.msra.mxu0 0.0
      %2389 = vmatprep.subr.mxu0 0.0
      %2390 = vmatpush1.msra.mxu0 0.0
      %2391 = vmatprep.subr.mxu0 0.0
      %2392 = vmatpush1.msra.mxu0 0.0
      %2393 = vmatprep.subr.mxu0 0.0
      %2394 = vmatpush1.msra.mxu0 0.0
      %2395 = vmatprep.subr.mxu0 0.0
      %2396 = vmatpush1.msra.mxu0 0.0
      %2397 = vmatprep.subr.mxu0 0.0
      %2398 = vmatpush1.msra.mxu0 0.0
      %2399 = vmatprep.subr.mxu0 0.0
      %2400 = vmatpush1.msra.mxu0 0.0
      %2401 = vmatprep.subr.mxu0 0.0
      %2402 = vmatpush1.msra.mxu0 0.0
      %2403 = vmatprep.subr.mxu0 0.0
      %2404 = vmatpush1.msra.mxu0 0.0
      %2405 = vmatprep.mubr.f32.mxu0 0.0
      %2406 = vmatmul.mubr.f32.gmra.mrb[0].mxu0 %v1139
      %v2407 = vpop.f32.mrb[0].mxu0
      %v2408 = vadd.f32 0.0, %v2407
      %v2409 = vpop.f32.mrb[0].mxu0
      %2410 = vmatprep.mubr.f32.mxu0 0.0
      %2411 = vmatmul.mubr.f32.gmra.mrb[0].mxu0 %v1141
      %v2412 = vpop.f32.mrb[0].mxu0
      %v2413 = vadd.f32 0.0, %v2412
      %v2414 = vpop.f32.mrb[0].mxu0
      %2415 = vmatprep.mubr.f32.mxu0 0.0
      %2416 = vmatmul.mubr.f32.gmra.mrb[0].mxu0 %v1143
      %v2417 = vpop.f32.mrb[0].mxu0
      %v2418 = vadd.f32 0.0, %v2417
      %v2419 = vpop.f32.mrb[0].mxu0
      %2420 = vmatprep.mubr.f32.mxu0 0.0
      %2421 = vmatmul.mubr.f32.gmra.mrb[0].mxu0 %v1145
      %v2422 = vpop.f32.mrb[0].mxu0
      %v2423 = vadd.f32 0.0, %v2422
      %v2424 = vpop.f32.mrb[0].mxu0
      %2425 = vmatprep.mubr.f32.mxu0 0.0
      %2426 = vmatmul.mubr.f32.gmra.mrb[0].mxu0 %v1147
      %v2427 = vpop.f32.mrb[0].mxu0
      %v2428 = vadd.f32 0.0, %v2427
      %v2429 = vpop.f32.mrb[0].mxu0
      %2430 = vmatprep.mubr.f32.mxu0 0.0
      %2431 = vmatmul.mubr.f32.gmra.mrb[0].mxu0 %v1149
      %v2432 = vpop.f32.mrb[0].mxu0
      %v2433 = vadd.f32 0.0, %v2432
      %v2434 = vpop.f32.mrb[0].mxu0
      %2435 = vmatprep.mubr.f32.mxu0 0.0
      %2436 = vmatmul.mubr.f32.gmra.mrb[0].mxu0 %v1151
      %v2437 = vpop.f32.mrb[0].mxu0
      %v2438 = vadd.f32 0.0, %v2437
      %v2439 = vpop.f32.mrb[0].mxu0
      %2440 = vmatprep.mubr.f32.mxu0 0.0
      %2441 = vmatmul.mubr.f32.gmra.mrb[0].mxu0 %v1153
      %v2442 = vpop.f32.mrb[0].mxu0
      %v2443 = vadd.f32 0.0, %v2442
      %v2444 = vpop.f32.mrb[0].mxu0
      %2445 = vmatprep.mubr.f32.mxu0 0.0
      %2446 = vmatmul.mubr.f32.gmra.mrb[0].mxu0 %v1155
      %v2447 = vpop.f32.mrb[0].mxu0
      %v2448 = vadd.f32 0.0, %v2447
      %v2449 = vpop.f32.mrb[0].mxu0
      %2450 = vmatprep.mubr.f32.mxu0 0.0
      %2451 = vmatmul.mubr.f32.gmra.mrb[0].mxu0 %v1157
      %v2452 = vpop.f32.mrb[0].mxu0
      %v2453 = vadd.f32 0.0, %v2452
      %v2454 = vpop.f32.mrb[0].mxu0
      %2455 = vmatprep.mubr.f32.mxu0 0.0
      %2456 = vmatmul.mubr.f32.gmra.mrb[0].mxu0 %v1159
      %v2457 = vpop.f32.mrb[0].mxu0
      %v2458 = vadd.f32 0.0, %v2457
      %v2459 = vpop.f32.mrb[0].mxu0
      %2460 = vmatprep.mubr.f32.mxu0 0.0
      %2461 = vmatmul.mubr.f32.gmra.mrb[0].mxu0 %v1161
      %v2462 = vpop.f32.mrb[0].mxu0
      %v2463 = vadd.f32 0.0, %v2462
      %v2464 = vpop.f32.mrb[0].mxu0
      %2465 = vmatprep.mubr.f32.mxu0 0.0
      %2466 = vmatmul.mubr.f32.gmra.mrb[0].mxu0 %v1163
      %v2467 = vpop.f32.mrb[0].mxu0
      %v2468 = vadd.f32 0.0, %v2467
      %v2469 = vpop.f32.mrb[0].mxu0
      %2470 = vmatprep.mubr.f32.mxu0 0.0
      %2471 = vmatmul.mubr.f32.gmra.mrb[0].mxu0 %v1165
      %v2472 = vpop.f32.mrb[0].mxu0
      %v2473 = vadd.f32 0.0, %v2472
      %v2474 = vpop.f32.mrb[0].mxu0
      %2475 = vmatprep.mubr.f32.mxu0 0.0
      %2476 = vmatmul.mubr.f32.gmra.mrb[0].mxu0 %v1167
      %v2477 = vpop.f32.mrb[0].mxu0
      %v2478 = vadd.f32 0.0, %v2477
      %v2479 = vpop.f32.mrb[0].mxu0
      %2480 = vmatprep.mubr.f32.mxu0 0.0
      %2481 = vmatmul.mubr.f32.gmra.mrb[0].mxu0 %v1169
      %v2482 = vpop.f32.mrb[0].mxu0
      %v2483 = vadd.f32 0.0, %v2482
      %v2484 = vpop.f32.mrb[0].mxu0
      %2485 = vmatprep.mubr.f32.mxu0 0.0
      %2486 = vmatmul.mubr.f32.gmra.mrb[0].mxu0 %v1171
      %v2487 = vpop.f32.mrb[0].mxu0
      %v2488 = vadd.f32 0.0, %v2487
      %v2489 = vpop.f32.mrb[0].mxu0
      %2490 = vmatprep.mubr.f32.mxu0 0.0
      %2491 = vmatmul.mubr.f32.gmra.mrb[0].mxu0 %v1173
      %v2492 = vpop.f32.mrb[0].mxu0
      %v2493 = vadd.f32 0.0, %v2492
      %v2494 = vpop.f32.mrb[0].mxu0
      %2495 = vmatprep.mubr.f32.mxu0 0.0
      %2496 = vmatmul.mubr.f32.gmra.mrb[0].mxu0 %v1175
      %v2497 = vpop.f32.mrb[0].mxu0
      %v2498 = vadd.f32 0.0, %v2497
      %v2499 = vpop.f32.mrb[0].mxu0
      %2500 = vmatprep.mubr.f32.mxu0 0.0
      %2501 = vmatmul.mubr.f32.gmra.mrb[0].mxu0 %v1177
      %v2502 = vpop.f32.mrb[0].mxu0
      %v2503 = vadd.f32 0.0, %v2502
      %v2504 = vpop.f32.mrb[0].mxu0
      %2505 = vmatprep.mubr.f32.mxu0 0.0
      %2506 = vmatmul.mubr.f32.gmra.mrb[0].mxu0 %v1179
      %v2507 = vpop.f32.mrb[0].mxu0
      %v2508 = vadd.f32 0.0, %v2507
      %v2509 = vpop.f32.mrb[0].mxu0
      %2510 = vmatprep.mubr.f32.mxu0 0.0
      %2511 = vmatmul.mubr.f32.gmra.mrb[0].mxu0 %v1181
      %v2512 = vpop.f32.mrb[0].mxu0
      %v2513 = vadd.f32 0.0, %v2512
      %v2514 = vpop.f32.mrb[0].mxu0
      %2515 = vmatprep.mubr.f32.mxu0 0.0
      %2516 = vmatmul.mubr.f32.gmra.mrb[0].mxu0 %v1183
      %v2517 = vpop.f32.mrb[0].mxu0
      %v2518 = vadd.f32 0.0, %v2517
      %v2519 = vpop.f32.mrb[0].mxu0
      %2520 = vmatprep.mubr.f32.mxu0 0.0
      %2521 = vmatmul.mubr.f32.gmra.mrb[0].mxu0 %v1185
      %v2522 = vpop.f32.mrb[0].mxu0
      %v2523 = vadd.f32 0.0, %v2522
      %v2524 = vpop.f32.mrb[0].mxu0
      %2525 = vmatprep.mubr.f32.mxu0 0.0
      %2526 = vmatmul.mubr.f32.gmra.mrb[0].mxu0 %v1187
      %v2527 = vpop.f32.mrb[0].mxu0
      %v2528 = vadd.f32 0.0, %v2527
      %v2529 = vpop.f32.mrb[0].mxu0
      %2530 = vmatprep.mubr.f32.mxu0 0.0
      %2531 = vmatmul.mubr.f32.gmra.mrb[0].mxu0 %v1189
      %v2532 = vpop.f32.mrb[0].mxu0
      %v2533 = vadd.f32 0.0, %v2532
      %v2534 = vpop.f32.mrb[0].mxu0
      %2535 = vmatprep.mubr.f32.mxu0 0.0
      %2536 = vmatmul.mubr.f32.gmra.mrb[0].mxu0 %v1191
      %v2537 = vpop.f32.mrb[0].mxu0
      %v2538 = vadd.f32 0.0, %v2537
      %v2539 = vpop.f32.mrb[0].mxu0
      %2540 = vmatprep.mubr.f32.mxu0 0.0
      %2541 = vmatmul.mubr.f32.gmra.mrb[0].mxu0 %v1193
      %v2542 = vpop.f32.mrb[0].mxu0
      %v2543 = vadd.f32 0.0, %v2542
      %v2544 = vpop.f32.mrb[0].mxu0
      %2545 = vmatprep.mubr.f32.mxu0 0.0
      %2546 = vmatmul.mubr.f32.gmra.mrb[0].mxu0 %v1195
      %v2547 = vpop.f32.mrb[0].mxu0
      %v2548 = vadd.f32 0.0, %v2547
      %v2549 = vpop.f32.mrb[0].mxu0
      %2550 = vmatprep.mubr.f32.mxu0 0.0
      %2551 = vmatmul.mubr.f32.gmra.mrb[0].mxu0 %v1197
      %v2552 = vpop.f32.mrb[0].mxu0
      %v2553 = vadd.f32 0.0, %v2552
      %v2554 = vpop.f32.mrb[0].mxu0
      %2555 = vmatprep.mubr.f32.mxu0 0.0
      %2556 = vmatmul.mubr.f32.gmra.mrb[0].mxu0 %v2334
      %v2557 = vpop.f32.mrb[0].mxu0
      %v2558 = vadd.f32 0.0, %v2557
      %v2559 = vpop.f32.mrb[0].mxu0
      %2560 = vmatprep.mubr.f32.mxu0 0.0
      %2561 = vmatmul.mubr.f32.gmra.mrb[0].mxu0 %v2336
      %v2562 = vpop.f32.mrb[0].mxu0
      %v2563 = vadd.f32 0.0, %v2562
      %v2564 = vpop.f32.mrb[0].mxu0
      %2565 = vdwg.mxu0
      %v2566 = vld [vmem:[#allocation2] sm:$0xff]
      %v2567 = vld [vmem:[#allocation2 + $0x8] sm:$0xff]
      %v2568 = vld [vmem:[#allocation2 + $0x10] sm:$0xff]
      %v2569 = vld [vmem:[#allocation2 + $0x18] sm:$0xff]
      %v2570 = vld [vmem:[#allocation2 + $0x20] sm:$0xff]
      %v2571 = vld [vmem:[#allocation2 + $0x28] sm:$0xff]
      %v2572 = vld [vmem:[#allocation2 + $0x30] sm:$0xff]
      %v2573 = vld [vmem:[#allocation2 + $0x38] sm:$0xff]
      %v2574 = vld [vmem:[#allocation2 + $0x40] sm:$0xff]
      %v2575 = vld [vmem:[#allocation2 + $0x48] sm:$0xff]
      %v2576 = vld [vmem:[#allocation2 + $0x50] sm:$0xff]
      %v2577 = vld [vmem:[#allocation2 + $0x58] sm:$0xff]
      %v2578 = vld [vmem:[#allocation2 + $0x60] sm:$0xff]
      %v2579 = vld [vmem:[#allocation2 + $0x68] sm:$0xff]
      %v2580 = vld [vmem:[#allocation2 + $0x70] sm:$0xff]
      %v2581 = vld [vmem:[#allocation2 + $0x78] sm:$0xff]
      %v2582 = vld [vmem:[#allocation2 + $0x80] sm:$0xff]
      %v2583 = vld [vmem:[#allocation2 + $0x88] sm:$0xff]
      %v2584 = vld [vmem:[#allocation2 + $0x90] sm:$0xff]
      %v2585 = vld [vmem:[#allocation2 + $0x98] sm:$0xff]
      %v2586 = vld [vmem:[#allocation2 + $0xa0] sm:$0xff]
      %v2587 = vld [vmem:[#allocation2 + $0xa8] sm:$0xff]
      %v2588 = vld [vmem:[#allocation2 + $0xb0] sm:$0xff]
      %v2589 = vld [vmem:[#allocation2 + $0xb8] sm:$0xff]
      %v2590 = vld [vmem:[#allocation2 + $0xc0] sm:$0xff]
      %v2591 = vld [vmem:[#allocation2 + $0xc8] sm:$0xff]
      %v2592 = vld [vmem:[#allocation2 + $0xd0] sm:$0xff]
      %v2593 = vld [vmem:[#allocation2 + $0xd8] sm:$0xff]
      %v2594 = vld [vmem:[#allocation2 + $0xe0] sm:$0xff]
      %v2595 = vld [vmem:[#allocation2 + $0xe8] sm:$0xff]
      %v2596 = vld [vmem:[#allocation2 + $0xf0] sm:$0xff]
      %v2597 = vld [vmem:[#allocation2 + $0xf8] sm:$0xff]
      %v2598 = vadd.f32 %v2566, %v2408
      %v2599 = vadd.f32 %v2567, %v2413
      %v2600 = vadd.f32 %v2568, %v2418
      %v2601 = vadd.f32 %v2569, %v2423
      %v2602 = vadd.f32 %v2570, %v2428
      %v2603 = vadd.f32 %v2571, %v2433
      %v2604 = vadd.f32 %v2572, %v2438
      %v2605 = vadd.f32 %v2573, %v2443
      %v2606 = vadd.f32 %v2574, %v2448
      %v2607 = vadd.f32 %v2575, %v2453
      %v2608 = vadd.f32 %v2576, %v2458
      %v2609 = vadd.f32 %v2577, %v2463
      %v2610 = vadd.f32 %v2578, %v2468
      %v2611 = vadd.f32 %v2579, %v2473
      %v2612 = vadd.f32 %v2580, %v2478
      %v2613 = vadd.f32 %v2581, %v2483
      %v2614 = vadd.f32 %v2582, %v2488
      %v2615 = vadd.f32 %v2583, %v2493
      %v2616 = vadd.f32 %v2584, %v2498
      %v2617 = vadd.f32 %v2585, %v2503
      %v2618 = vadd.f32 %v2586, %v2508
      %v2619 = vadd.f32 %v2587, %v2513
      %v2620 = vadd.f32 %v2588, %v2518
      %v2621 = vadd.f32 %v2589, %v2523
      %v2622 = vadd.f32 %v2590, %v2528
      %v2623 = vadd.f32 %v2591, %v2533
      %v2624 = vadd.f32 %v2592, %v2538
      %v2625 = vadd.f32 %v2593, %v2543
      %v2626 = vadd.f32 %v2594, %v2548
      %v2627 = vadd.f32 %v2595, %v2553
      %v2628 = vadd.f32 %v2596, %v2558
      %v2629 = vadd.f32 %v2597, %v2563
      %2630 = vst.msk [vmem:[#allocation2] sm:$0xff] %vm678, %v2598
      %2631 = vst.msk [vmem:[#allocation2 + $0x8] sm:$0xff] %vm678, %v2599
      %2632 = vst.msk [vmem:[#allocation2 + $0x10] sm:$0xff] %vm678, %v2600
      %2633 = vst.msk [vmem:[#allocation2 + $0x18] sm:$0xff] %vm678, %v2601
      %2634 = vst.msk [vmem:[#allocation2 + $0x20] sm:$0xff] %vm678, %v2602
      %2635 = vst.msk [vmem:[#allocation2 + $0x28] sm:$0xff] %vm678, %v2603
      %2636 = vst.msk [vmem:[#allocation2 + $0x30] sm:$0xff] %vm678, %v2604
      %2637 = vst.msk [vmem:[#allocation2 + $0x38] sm:$0xff] %vm678, %v2605
      %2638 = vst.msk [vmem:[#allocation2 + $0x40] sm:$0xff] %vm678, %v2606
      %2639 = vst.msk [vmem:[#allocation2 + $0x48] sm:$0xff] %vm678, %v2607
      %2640 = vst.msk [vmem:[#allocation2 + $0x50] sm:$0xff] %vm678, %v2608
      %2641 = vst.msk [vmem:[#allocation2 + $0x58] sm:$0xff] %vm678, %v2609
      %2642 = vst.msk [vmem:[#allocation2 + $0x60] sm:$0xff] %vm678, %v2610
      %2643 = vst.msk [vmem:[#allocation2 + $0x68] sm:$0xff] %vm678, %v2611
      %2644 = vst.msk [vmem:[#allocation2 + $0x70] sm:$0xff] %vm678, %v2612
      %2645 = vst.msk [vmem:[#allocation2 + $0x78] sm:$0xff] %vm678, %v2613
      %2646 = vst.msk [vmem:[#allocation2 + $0x80] sm:$0xff] %vm678, %v2614
      %2647 = vst.msk [vmem:[#allocation2 + $0x88] sm:$0xff] %vm678, %v2615
      %2648 = vst.msk [vmem:[#allocation2 + $0x90] sm:$0xff] %vm678, %v2616
      %2649 = vst.msk [vmem:[#allocation2 + $0x98] sm:$0xff] %vm678, %v2617
      %2650 = vst.msk [vmem:[#allocation2 + $0xa0] sm:$0xff] %vm678, %v2618
      %2651 = vst.msk [vmem:[#allocation2 + $0xa8] sm:$0xff] %vm678, %v2619
      %2652 = vst.msk [vmem:[#allocation2 + $0xb0] sm:$0xff] %vm678, %v2620
      %2653 = vst.msk [vmem:[#allocation2 + $0xb8] sm:$0xff] %vm678, %v2621
      %2654 = vst.msk [vmem:[#allocation2 + $0xc0] sm:$0xff] %vm678, %v2622
      %2655 = vst.msk [vmem:[#allocation2 + $0xc8] sm:$0xff] %vm678, %v2623
      %2656 = vst.msk [vmem:[#allocation2 + $0xd0] sm:$0xff] %vm678, %v2624
      %2657 = vst.msk [vmem:[#allocation2 + $0xd8] sm:$0xff] %vm678, %v2625
      %2658 = vst.msk [vmem:[#allocation2 + $0xe0] sm:$0xff] %vm678, %v2626
      %2659 = vst.msk [vmem:[#allocation2 + $0xe8] sm:$0xff] %vm678, %v2627
      %2660 = vst.msk [vmem:[#allocation2 + $0xf0] sm:$0xff] %vm678, %v2628
      %2661 = vst.msk [vmem:[#allocation2 + $0xf8] sm:$0xff] %vm678, %v2629
      %v2662 = vrot.slane %v671, 2
      %v2663 = vrot.slane %v672, 2
      %v2664 = vsel %vm1523, %v2662, %v2663
      %v2665 = vrot.slane %v673, 2
      %v2666 = vsel %vm1523, %v2663, %v2665
      %s2667 = scalar_lea.vmem %s2, 20
      %v2668 = vld [vmem:[%s2667] sm:$0xf]
      %v2669 = vsel %vm678, %v2664, 0
      %v2671 = vsel %vm678, %v2666, 0
      %v2674 = vsel %vm775, %v2668, 0
      %2676 = vmatprep.subr.mxu0 0.0
      %2677 = vmatpush1.msra.mxu0 %v2674
      %2678 = vmatprep.subr.mxu0 0.0
      %2679 = vmatpush1.msra.mxu0 0.0
      %2680 = vmatprep.subr.mxu0 0.0
      %2681 = vmatpush1.msra.mxu0 0.0
      %2682 = vmatprep.subr.mxu0 0.0
      %2683 = vmatpush1.msra.mxu0 0.0
      %2684 = vmatprep.subr.mxu0 0.0
      %2685 = vmatpush1.msra.mxu0 0.0
      %2686 = vmatprep.subr.mxu0 0.0
      %2687 = vmatpush1.msra.mxu0 0.0
      %2688 = vmatprep.subr.mxu0 0.0
      %2689 = vmatpush1.msra.mxu0 0.0
      %2690 = vmatprep.subr.mxu0 0.0
      %2691 = vmatpush1.msra.mxu0 0.0
      %2692 = vmatprep.subr.mxu0 0.0
      %2693 = vmatpush1.msra.mxu0 0.0
      %2694 = vmatprep.subr.mxu0 0.0
      %2695 = vmatpush1.msra.mxu0 0.0
      %2696 = vmatprep.subr.mxu0 0.0
      %2697 = vmatpush1.msra.mxu0 0.0
      %2698 = vmatprep.subr.mxu0 0.0
      %2699 = vmatpush1.msra.mxu0 0.0
      %2700 = vmatprep.subr.mxu0 0.0
      %2701 = vmatpush1.msra.mxu0 0.0
      %2702 = vmatprep.subr.mxu0 0.0
      %2703 = vmatpush1.msra.mxu0 0.0
      %2704 = vmatprep.subr.mxu0 0.0
      %2705 = vmatpush1.msra.mxu0 0.0
      %2706 = vmatprep.subr.mxu0 0.0
      %2707 = vmatpush1.msra.mxu0 0.0
      %2708 = vmatprep.subr.mxu0 0.0
      %2709 = vmatpush1.msra.mxu0 0.0
      %2710 = vmatprep.subr.mxu0 0.0
      %2711 = vmatpush1.msra.mxu0 0.0
      %2712 = vmatprep.subr.mxu0 0.0
      %2713 = vmatpush1.msra.mxu0 0.0
      %2714 = vmatprep.subr.mxu0 0.0
      %2715 = vmatpush1.msra.mxu0 0.0
      %2716 = vmatprep.subr.mxu0 0.0
      %2717 = vmatpush1.msra.mxu0 0.0
      %2718 = vmatprep.subr.mxu0 0.0
      %2719 = vmatpush1.msra.mxu0 0.0
      %2720 = vmatprep.subr.mxu0 0.0
      %2721 = vmatpush1.msra.mxu0 0.0
      %2722 = vmatprep.subr.mxu0 0.0
      %2723 = vmatpush1.msra.mxu0 0.0
      %2724 = vmatprep.subr.mxu0 0.0
      %2725 = vmatpush1.msra.mxu0 0.0
      %2726 = vmatprep.subr.mxu0 0.0
      %2727 = vmatpush1.msra.mxu0 0.0
      %2728 = vmatprep.subr.mxu0 0.0
      %2729 = vmatpush1.msra.mxu0 0.0
      %2730 = vmatprep.subr.mxu0 0.0
      %2731 = vmatpush1.msra.mxu0 0.0
      %2732 = vmatprep.subr.mxu0 0.0
      %2733 = vmatpush1.msra.mxu0 0.0
      %2734 = vmatprep.subr.mxu0 0.0
      %2735 = vmatpush1.msra.mxu0 0.0
      %2736 = vmatprep.subr.mxu0 0.0
      %2737 = vmatpush1.msra.mxu0 0.0
      %2738 = vmatprep.subr.mxu0 0.0
      %2739 = vmatpush1.msra.mxu0 0.0
      %2740 = vmatprep.mubr.f32.mxu0 0.0
      %2741 = vmatmul.mubr.f32.gmra.mrb[0].mxu0 %v1610
      %v2742 = vpop.f32.mrb[0].mxu0
      %v2743 = vadd.f32 0.0, %v2742
      %v2744 = vpop.f32.mrb[0].mxu0
      %2745 = vmatprep.mubr.f32.mxu0 0.0
      %2746 = vmatmul.mubr.f32.gmra.mrb[0].mxu0 %v1612
      %v2747 = vpop.f32.mrb[0].mxu0
      %v2748 = vadd.f32 0.0, %v2747
      %v2749 = vpop.f32.mrb[0].mxu0
      %2750 = vmatprep.mubr.f32.mxu0 0.0
      %2751 = vmatmul.mubr.f32.gmra.mrb[0].mxu0 %v1614
      %v2752 = vpop.f32.mrb[0].mxu0
      %v2753 = vadd.f32 0.0, %v2752
      %v2754 = vpop.f32.mrb[0].mxu0
      %2755 = vmatprep.mubr.f32.mxu0 0.0
      %2756 = vmatmul.mubr.f32.gmra.mrb[0].mxu0 %v1616
      %v2757 = vpop.f32.mrb[0].mxu0
      %v2758 = vadd.f32 0.0, %v2757
      %v2759 = vpop.f32.mrb[0].mxu0
      %2760 = vmatprep.mubr.f32.mxu0 0.0
      %2761 = vmatmul.mubr.f32.gmra.mrb[0].mxu0 %v1618
      %v2762 = vpop.f32.mrb[0].mxu0
      %v2763 = vadd.f32 0.0, %v2762
      %v2764 = vpop.f32.mrb[0].mxu0
      %2765 = vmatprep.mubr.f32.mxu0 0.0
      %2766 = vmatmul.mubr.f32.gmra.mrb[0].mxu0 %v1620
      %v2767 = vpop.f32.mrb[0].mxu0
      %v2768 = vadd.f32 0.0, %v2767
      %v2769 = vpop.f32.mrb[0].mxu0
      %2770 = vmatprep.mubr.f32.mxu0 0.0
      %2771 = vmatmul.mubr.f32.gmra.mrb[0].mxu0 %v1622
      %v2772 = vpop.f32.mrb[0].mxu0
      %v2773 = vadd.f32 0.0, %v2772
      %v2774 = vpop.f32.mrb[0].mxu0
      %2775 = vmatprep.mubr.f32.mxu0 0.0
      %2776 = vmatmul.mubr.f32.gmra.mrb[0].mxu0 %v1624
      %v2777 = vpop.f32.mrb[0].mxu0
      %v2778 = vadd.f32 0.0, %v2777
      %v2779 = vpop.f32.mrb[0].mxu0
      %2780 = vmatprep.mubr.f32.mxu0 0.0
      %2781 = vmatmul.mubr.f32.gmra.mrb[0].mxu0 %v1626
      %v2782 = vpop.f32.mrb[0].mxu0
      %v2783 = vadd.f32 0.0, %v2782
      %v2784 = vpop.f32.mrb[0].mxu0
      %2785 = vmatprep.mubr.f32.mxu0 0.0
      %2786 = vmatmul.mubr.f32.gmra.mrb[0].mxu0 %v1628
      %v2787 = vpop.f32.mrb[0].mxu0
      %v2788 = vadd.f32 0.0, %v2787
      %v2789 = vpop.f32.mrb[0].mxu0
      %2790 = vmatprep.mubr.f32.mxu0 0.0
      %2791 = vmatmul.mubr.f32.gmra.mrb[0].mxu0 %v1630
      %v2792 = vpop.f32.mrb[0].mxu0
      %v2793 = vadd.f32 0.0, %v2792
      %v2794 = vpop.f32.mrb[0].mxu0
      %2795 = vmatprep.mubr.f32.mxu0 0.0
      %2796 = vmatmul.mubr.f32.gmra.mrb[0].mxu0 %v1632
      %v2797 = vpop.f32.mrb[0].mxu0
      %v2798 = vadd.f32 0.0, %v2797
      %v2799 = vpop.f32.mrb[0].mxu0
      %2800 = vmatprep.mubr.f32.mxu0 0.0
      %2801 = vmatmul.mubr.f32.gmra.mrb[0].mxu0 %v1634
      %v2802 = vpop.f32.mrb[0].mxu0
      %v2803 = vadd.f32 0.0, %v2802
      %v2804 = vpop.f32.mrb[0].mxu0
      %2805 = vmatprep.mubr.f32.mxu0 0.0
      %2806 = vmatmul.mubr.f32.gmra.mrb[0].mxu0 %v1636
      %v2807 = vpop.f32.mrb[0].mxu0
      %v2808 = vadd.f32 0.0, %v2807
      %v2809 = vpop.f32.mrb[0].mxu0
      %2810 = vmatprep.mubr.f32.mxu0 0.0
      %2811 = vmatmul.mubr.f32.gmra.mrb[0].mxu0 %v1638
      %v2812 = vpop.f32.mrb[0].mxu0
      %v2813 = vadd.f32 0.0, %v2812
      %v2814 = vpop.f32.mrb[0].mxu0
      %2815 = vmatprep.mubr.f32.mxu0 0.0
      %2816 = vmatmul.mubr.f32.gmra.mrb[0].mxu0 %v1640
      %v2817 = vpop.f32.mrb[0].mxu0
      %v2818 = vadd.f32 0.0, %v2817
      %v2819 = vpop.f32.mrb[0].mxu0
      %2820 = vmatprep.mubr.f32.mxu0 0.0
      %2821 = vmatmul.mubr.f32.gmra.mrb[0].mxu0 %v1642
      %v2822 = vpop.f32.mrb[0].mxu0
      %v2823 = vadd.f32 0.0, %v2822
      %v2824 = vpop.f32.mrb[0].mxu0
      %2825 = vmatprep.mubr.f32.mxu0 0.0
      %2826 = vmatmul.mubr.f32.gmra.mrb[0].mxu0 %v1644
      %v2827 = vpop.f32.mrb[0].mxu0
      %v2828 = vadd.f32 0.0, %v2827
      %v2829 = vpop.f32.mrb[0].mxu0
      %2830 = vmatprep.mubr.f32.mxu0 0.0
      %2831 = vmatmul.mubr.f32.gmra.mrb[0].mxu0 %v1646
      %v2832 = vpop.f32.mrb[0].mxu0
      %v2833 = vadd.f32 0.0, %v2832
      %v2834 = vpop.f32.mrb[0].mxu0
      %2835 = vmatprep.mubr.f32.mxu0 0.0
      %2836 = vmatmul.mubr.f32.gmra.mrb[0].mxu0 %v1648
      %v2837 = vpop.f32.mrb[0].mxu0
      %v2838 = vadd.f32 0.0, %v2837
      %v2839 = vpop.f32.mrb[0].mxu0
      %2840 = vmatprep.mubr.f32.mxu0 0.0
      %2841 = vmatmul.mubr.f32.gmra.mrb[0].mxu0 %v1650
      %v2842 = vpop.f32.mrb[0].mxu0
      %v2843 = vadd.f32 0.0, %v2842
      %v2844 = vpop.f32.mrb[0].mxu0
      %2845 = vmatprep.mubr.f32.mxu0 0.0
      %2846 = vmatmul.mubr.f32.gmra.mrb[0].mxu0 %v1652
      %v2847 = vpop.f32.mrb[0].mxu0
      %v2848 = vadd.f32 0.0, %v2847
      %v2849 = vpop.f32.mrb[0].mxu0
      %2850 = vmatprep.mubr.f32.mxu0 0.0
      %2851 = vmatmul.mubr.f32.gmra.mrb[0].mxu0 %v1654
      %v2852 = vpop.f32.mrb[0].mxu0
      %v2853 = vadd.f32 0.0, %v2852
      %v2854 = vpop.f32.mrb[0].mxu0
      %2855 = vmatprep.mubr.f32.mxu0 0.0
      %2856 = vmatmul.mubr.f32.gmra.mrb[0].mxu0 %v1656
      %v2857 = vpop.f32.mrb[0].mxu0
      %v2858 = vadd.f32 0.0, %v2857
      %v2859 = vpop.f32.mrb[0].mxu0
      %2860 = vmatprep.mubr.f32.mxu0 0.0
      %2861 = vmatmul.mubr.f32.gmra.mrb[0].mxu0 %v1658
      %v2862 = vpop.f32.mrb[0].mxu0
      %v2863 = vadd.f32 0.0, %v2862
      %v2864 = vpop.f32.mrb[0].mxu0
      %2865 = vmatprep.mubr.f32.mxu0 0.0
      %2866 = vmatmul.mubr.f32.gmra.mrb[0].mxu0 %v1660
      %v2867 = vpop.f32.mrb[0].mxu0
      %v2868 = vadd.f32 0.0, %v2867
      %v2869 = vpop.f32.mrb[0].mxu0
      %2870 = vmatprep.mubr.f32.mxu0 0.0
      %2871 = vmatmul.mubr.f32.gmra.mrb[0].mxu0 %v1662
      %v2872 = vpop.f32.mrb[0].mxu0
      %v2873 = vadd.f32 0.0, %v2872
      %v2874 = vpop.f32.mrb[0].mxu0
      %2875 = vmatprep.mubr.f32.mxu0 0.0
      %2876 = vmatmul.mubr.f32.gmra.mrb[0].mxu0 %v1664
      %v2877 = vpop.f32.mrb[0].mxu0
      %v2878 = vadd.f32 0.0, %v2877
      %v2879 = vpop.f32.mrb[0].mxu0
      %2880 = vmatprep.mubr.f32.mxu0 0.0
      %2881 = vmatmul.mubr.f32.gmra.mrb[0].mxu0 %v1666
      %v2882 = vpop.f32.mrb[0].mxu0
      %v2883 = vadd.f32 0.0, %v2882
      %v2884 = vpop.f32.mrb[0].mxu0
      %2885 = vmatprep.mubr.f32.mxu0 0.0
      %2886 = vmatmul.mubr.f32.gmra.mrb[0].mxu0 %v1668
      %v2887 = vpop.f32.mrb[0].mxu0
      %v2888 = vadd.f32 0.0, %v2887
      %v2889 = vpop.f32.mrb[0].mxu0
      %2890 = vmatprep.mubr.f32.mxu0 0.0
      %2891 = vmatmul.mubr.f32.gmra.mrb[0].mxu0 %v2669
      %v2892 = vpop.f32.mrb[0].mxu0
      %v2893 = vadd.f32 0.0, %v2892
      %v2894 = vpop.f32.mrb[0].mxu0
      %2895 = vmatprep.mubr.f32.mxu0 0.0
      %2896 = vmatmul.mubr.f32.gmra.mrb[0].mxu0 %v2671
      %v2897 = vpop.f32.mrb[0].mxu0
      %v2898 = vadd.f32 0.0, %v2897
      %v2899 = vpop.f32.mrb[0].mxu0
      %2900 = vdwg.mxu0
      %v2901 = vld [vmem:[#allocation2] sm:$0xff]
      %v2902 = vld [vmem:[#allocation2 + $0x8] sm:$0xff]
      %v2903 = vld [vmem:[#allocation2 + $0x10] sm:$0xff]
      %v2904 = vld [vmem:[#allocation2 + $0x18] sm:$0xff]
      %v2905 = vld [vmem:[#allocation2 + $0x20] sm:$0xff]
      %v2906 = vld [vmem:[#allocation2 + $0x28] sm:$0xff]
      %v2907 = vld [vmem:[#allocation2 + $0x30] sm:$0xff]
      %v2908 = vld [vmem:[#allocation2 + $0x38] sm:$0xff]
      %v2909 = vld [vmem:[#allocation2 + $0x40] sm:$0xff]
      %v2910 = vld [vmem:[#allocation2 + $0x48] sm:$0xff]
      %v2911 = vld [vmem:[#allocation2 + $0x50] sm:$0xff]
      %v2912 = vld [vmem:[#allocation2 + $0x58] sm:$0xff]
      %v2913 = vld [vmem:[#allocation2 + $0x60] sm:$0xff]
      %v2914 = vld [vmem:[#allocation2 + $0x68] sm:$0xff]
      %v2915 = vld [vmem:[#allocation2 + $0x70] sm:$0xff]
      %v2916 = vld [vmem:[#allocation2 + $0x78] sm:$0xff]
      %v2917 = vld [vmem:[#allocation2 + $0x80] sm:$0xff]
      %v2918 = vld [vmem:[#allocation2 + $0x88] sm:$0xff]
      %v2919 = vld [vmem:[#allocation2 + $0x90] sm:$0xff]
      %v2920 = vld [vmem:[#allocation2 + $0x98] sm:$0xff]
      %v2921 = vld [vmem:[#allocation2 + $0xa0] sm:$0xff]
      %v2922 = vld [vmem:[#allocation2 + $0xa8] sm:$0xff]
      %v2923 = vld [vmem:[#allocation2 + $0xb0] sm:$0xff]
      %v2924 = vld [vmem:[#allocation2 + $0xb8] sm:$0xff]
      %v2925 = vld [vmem:[#allocation2 + $0xc0] sm:$0xff]
      %v2926 = vld [vmem:[#allocation2 + $0xc8] sm:$0xff]
      %v2927 = vld [vmem:[#allocation2 + $0xd0] sm:$0xff]
      %v2928 = vld [vmem:[#allocation2 + $0xd8] sm:$0xff]
      %v2929 = vld [vmem:[#allocation2 + $0xe0] sm:$0xff]
      %v2930 = vld [vmem:[#allocation2 + $0xe8] sm:$0xff]
      %v2931 = vld [vmem:[#allocation2 + $0xf0] sm:$0xff]
      %v2932 = vld [vmem:[#allocation2 + $0xf8] sm:$0xff]
      %v2933 = vadd.f32 %v2901, %v2743
      %v2934 = vadd.f32 %v2902, %v2748
      %v2935 = vadd.f32 %v2903, %v2753
      %v2936 = vadd.f32 %v2904, %v2758
      %v2937 = vadd.f32 %v2905, %v2763
      %v2938 = vadd.f32 %v2906, %v2768
      %v2939 = vadd.f32 %v2907, %v2773
      %v2940 = vadd.f32 %v2908, %v2778
      %v2941 = vadd.f32 %v2909, %v2783
      %v2942 = vadd.f32 %v2910, %v2788
      %v2943 = vadd.f32 %v2911, %v2793
      %v2944 = vadd.f32 %v2912, %v2798
      %v2945 = vadd.f32 %v2913, %v2803
      %v2946 = vadd.f32 %v2914, %v2808
      %v2947 = vadd.f32 %v2915, %v2813
      %v2948 = vadd.f32 %v2916, %v2818
      %v2949 = vadd.f32 %v2917, %v2823
      %v2950 = vadd.f32 %v2918, %v2828
      %v2951 = vadd.f32 %v2919, %v2833
      %v2952 = vadd.f32 %v2920, %v2838
      %v2953 = vadd.f32 %v2921, %v2843
      %v2954 = vadd.f32 %v2922, %v2848
      %v2955 = vadd.f32 %v2923, %v2853
      %v2956 = vadd.f32 %v2924, %v2858
      %v2957 = vadd.f32 %v2925, %v2863
      %v2958 = vadd.f32 %v2926, %v2868
      %v2959 = vadd.f32 %v2927, %v2873
      %v2960 = vadd.f32 %v2928, %v2878
      %v2961 = vadd.f32 %v2929, %v2883
      %v2962 = vadd.f32 %v2930, %v2888
      %v2963 = vadd.f32 %v2931, %v2893
      %v2964 = vadd.f32 %v2932, %v2898
      %2965 = vst.msk [vmem:[#allocation2] sm:$0xff] %vm678, %v2933
      %2966 = vst.msk [vmem:[#allocation2 + $0x8] sm:$0xff] %vm678, %v2934
      %2967 = vst.msk [vmem:[#allocation2 + $0x10] sm:$0xff] %vm678, %v2935
      %2968 = vst.msk [vmem:[#allocation2 + $0x18] sm:$0xff] %vm678, %v2936
      %2969 = vst.msk [vmem:[#allocation2 + $0x20] sm:$0xff] %vm678, %v2937
      %2970 = vst.msk [vmem:[#allocation2 + $0x28] sm:$0xff] %vm678, %v2938
      %2971 = vst.msk [vmem:[#allocation2 + $0x30] sm:$0xff] %vm678, %v2939
      %2972 = vst.msk [vmem:[#allocation2 + $0x38] sm:$0xff] %vm678, %v2940
      %2973 = vst.msk [vmem:[#allocation2 + $0x40] sm:$0xff] %vm678, %v2941
      %2974 = vst.msk [vmem:[#allocation2 + $0x48] sm:$0xff] %vm678, %v2942
      %2975 = vst.msk [vmem:[#allocation2 + $0x50] sm:$0xff] %vm678, %v2943
      %2976 = vst.msk [vmem:[#allocation2 + $0x58] sm:$0xff] %vm678, %v2944
      %2977 = vst.msk [vmem:[#allocation2 + $0x60] sm:$0xff] %vm678, %v2945
      %2978 = vst.msk [vmem:[#allocation2 + $0x68] sm:$0xff] %vm678, %v2946
      %2979 = vst.msk [vmem:[#allocation2 + $0x70] sm:$0xff] %vm678, %v2947
      %2980 = vst.msk [vmem:[#allocation2 + $0x78] sm:$0xff] %vm678, %v2948
      %2981 = vst.msk [vmem:[#allocation2 + $0x80] sm:$0xff] %vm678, %v2949
      %2982 = vst.msk [vmem:[#allocation2 + $0x88] sm:$0xff] %vm678, %v2950
      %2983 = vst.msk [vmem:[#allocation2 + $0x90] sm:$0xff] %vm678, %v2951
      %2984 = vst.msk [vmem:[#allocation2 + $0x98] sm:$0xff] %vm678, %v2952
      %2985 = vst.msk [vmem:[#allocation2 + $0xa0] sm:$0xff] %vm678, %v2953
      %2986 = vst.msk [vmem:[#allocation2 + $0xa8] sm:$0xff] %vm678, %v2954
      %2987 = vst.msk [vmem:[#allocation2 + $0xb0] sm:$0xff] %vm678, %v2955
      %2988 = vst.msk [vmem:[#allocation2 + $0xb8] sm:$0xff] %vm678, %v2956
      %2989 = vst.msk [vmem:[#allocation2 + $0xc0] sm:$0xff] %vm678, %v2957
      %2990 = vst.msk [vmem:[#allocation2 + $0xc8] sm:$0xff] %vm678, %v2958
      %2991 = vst.msk [vmem:[#allocation2 + $0xd0] sm:$0xff] %vm678, %v2959
      %2992 = vst.msk [vmem:[#allocation2 + $0xd8] sm:$0xff] %vm678, %v2960
      %2993 = vst.msk [vmem:[#allocation2 + $0xe0] sm:$0xff] %vm678, %v2961
      %2994 = vst.msk [vmem:[#allocation2 + $0xe8] sm:$0xff] %vm678, %v2962
      %2995 = vst.msk [vmem:[#allocation2 + $0xf0] sm:$0xff] %vm678, %v2963
      %2996 = vst.msk [vmem:[#allocation2 + $0xf8] sm:$0xff] %vm678, %v2964
      %s2997 = scalar_lea.vmem %s2, 24
      %v2998 = vld [vmem:[%s2997] sm:$0xf]
      %v3000 = vsel %vm678, %v674, 0
      %v3003 = vsel %vm678, %v675, 0
      %v3006 = vsel %vm775, %v2998, 0
      %3008 = vmatprep.subr.mxu0 0.0
      %3009 = vmatpush1.msra.mxu0 %v3006
      %3010 = vmatprep.subr.mxu0 0.0
      %3011 = vmatpush1.msra.mxu0 0.0
      %3012 = vmatprep.subr.mxu0 0.0
      %3013 = vmatpush1.msra.mxu0 0.0
      %3014 = vmatprep.subr.mxu0 0.0
      %3015 = vmatpush1.msra.mxu0 0.0
      %3016 = vmatprep.subr.mxu0 0.0
      %3017 = vmatpush1.msra.mxu0 0.0
      %3018 = vmatprep.subr.mxu0 0.0
      %3019 = vmatpush1.msra.mxu0 0.0
      %3020 = vmatprep.subr.mxu0 0.0
      %3021 = vmatpush1.msra.mxu0 0.0
      %3022 = vmatprep.subr.mxu0 0.0
      %3023 = vmatpush1.msra.mxu0 0.0
      %3024 = vmatprep.subr.mxu0 0.0
      %3025 = vmatpush1.msra.mxu0 0.0
      %3026 = vmatprep.subr.mxu0 0.0
      %3027 = vmatpush1.msra.mxu0 0.0
      %3028 = vmatprep.subr.mxu0 0.0
      %3029 = vmatpush1.msra.mxu0 0.0
      %3030 = vmatprep.subr.mxu0 0.0
      %3031 = vmatpush1.msra.mxu0 0.0
      %3032 = vmatprep.subr.mxu0 0.0
      %3033 = vmatpush1.msra.mxu0 0.0
      %3034 = vmatprep.subr.mxu0 0.0
      %3035 = vmatpush1.msra.mxu0 0.0
      %3036 = vmatprep.subr.mxu0 0.0
      %3037 = vmatpush1.msra.mxu0 0.0
      %3038 = vmatprep.subr.mxu0 0.0
      %3039 = vmatpush1.msra.mxu0 0.0
      %3040 = vmatprep.subr.mxu0 0.0
      %3041 = vmatpush1.msra.mxu0 0.0
      %3042 = vmatprep.subr.mxu0 0.0
      %3043 = vmatpush1.msra.mxu0 0.0
      %3044 = vmatprep.subr.mxu0 0.0
      %3045 = vmatpush1.msra.mxu0 0.0
      %3046 = vmatprep.subr.mxu0 0.0
      %3047 = vmatpush1.msra.mxu0 0.0
      %3048 = vmatprep.subr.mxu0 0.0
      %3049 = vmatpush1.msra.mxu0 0.0
      %3050 = vmatprep.subr.mxu0 0.0
      %3051 = vmatpush1.msra.mxu0 0.0
      %3052 = vmatprep.subr.mxu0 0.0
      %3053 = vmatpush1.msra.mxu0 0.0
      %3054 = vmatprep.subr.mxu0 0.0
      %3055 = vmatpush1.msra.mxu0 0.0
      %3056 = vmatprep.subr.mxu0 0.0
      %3057 = vmatpush1.msra.mxu0 0.0
      %3058 = vmatprep.subr.mxu0 0.0
      %3059 = vmatpush1.msra.mxu0 0.0
      %3060 = vmatprep.subr.mxu0 0.0
      %3061 = vmatpush1.msra.mxu0 0.0
      %3062 = vmatprep.subr.mxu0 0.0
      %3063 = vmatpush1.msra.mxu0 0.0
      %3064 = vmatprep.subr.mxu0 0.0
      %3065 = vmatpush1.msra.mxu0 0.0
      %3066 = vmatprep.subr.mxu0 0.0
      %3067 = vmatpush1.msra.mxu0 0.0
      %3068 = vmatprep.subr.mxu0 0.0
      %3069 = vmatpush1.msra.mxu0 0.0
      %3070 = vmatprep.subr.mxu0 0.0
      %3071 = vmatpush1.msra.mxu0 0.0
      %3072 = vmatprep.mubr.f32.mxu0 0.0
      %3073 = vmatmul.mubr.f32.gmra.mrb[0].mxu0 %v692
      %v3074 = vpop.f32.mrb[0].mxu0
      %v3075 = vadd.f32 0.0, %v3074
      %v3076 = vpop.f32.mrb[0].mxu0
      %3077 = vmatprep.mubr.f32.mxu0 0.0
      %3078 = vmatmul.mubr.f32.gmra.mrb[0].mxu0 %v695
      %v3079 = vpop.f32.mrb[0].mxu0
      %v3080 = vadd.f32 0.0, %v3079
      %v3081 = vpop.f32.mrb[0].mxu0
      %3082 = vmatprep.mubr.f32.mxu0 0.0
      %3083 = vmatmul.mubr.f32.gmra.mrb[0].mxu0 %v698
      %v3084 = vpop.f32.mrb[0].mxu0
      %v3085 = vadd.f32 0.0, %v3084
      %v3086 = vpop.f32.mrb[0].mxu0
      %3087 = vmatprep.mubr.f32.mxu0 0.0
      %3088 = vmatmul.mubr.f32.gmra.mrb[0].mxu0 %v701
      %v3089 = vpop.f32.mrb[0].mxu0
      %v3090 = vadd.f32 0.0, %v3089
      %v3091 = vpop.f32.mrb[0].mxu0
      %3092 = vmatprep.mubr.f32.mxu0 0.0
      %3093 = vmatmul.mubr.f32.gmra.mrb[0].mxu0 %v704
      %v3094 = vpop.f32.mrb[0].mxu0
      %v3095 = vadd.f32 0.0, %v3094
      %v3096 = vpop.f32.mrb[0].mxu0
      %3097 = vmatprep.mubr.f32.mxu0 0.0
      %3098 = vmatmul.mubr.f32.gmra.mrb[0].mxu0 %v707
      %v3099 = vpop.f32.mrb[0].mxu0
      %v3100 = vadd.f32 0.0, %v3099
      %v3101 = vpop.f32.mrb[0].mxu0
      %3102 = vmatprep.mubr.f32.mxu0 0.0
      %3103 = vmatmul.mubr.f32.gmra.mrb[0].mxu0 %v710
      %v3104 = vpop.f32.mrb[0].mxu0
      %v3105 = vadd.f32 0.0, %v3104
      %v3106 = vpop.f32.mrb[0].mxu0
      %3107 = vmatprep.mubr.f32.mxu0 0.0
      %3108 = vmatmul.mubr.f32.gmra.mrb[0].mxu0 %v713
      %v3109 = vpop.f32.mrb[0].mxu0
      %v3110 = vadd.f32 0.0, %v3109
      %v3111 = vpop.f32.mrb[0].mxu0
      %3112 = vmatprep.mubr.f32.mxu0 0.0
      %3113 = vmatmul.mubr.f32.gmra.mrb[0].mxu0 %v716
      %v3114 = vpop.f32.mrb[0].mxu0
      %v3115 = vadd.f32 0.0, %v3114
      %v3116 = vpop.f32.mrb[0].mxu0
      %3117 = vmatprep.mubr.f32.mxu0 0.0
      %3118 = vmatmul.mubr.f32.gmra.mrb[0].mxu0 %v719
      %v3119 = vpop.f32.mrb[0].mxu0
      %v3120 = vadd.f32 0.0, %v3119
      %v3121 = vpop.f32.mrb[0].mxu0
      %3122 = vmatprep.mubr.f32.mxu0 0.0
      %3123 = vmatmul.mubr.f32.gmra.mrb[0].mxu0 %v722
      %v3124 = vpop.f32.mrb[0].mxu0
      %v3125 = vadd.f32 0.0, %v3124
      %v3126 = vpop.f32.mrb[0].mxu0
      %3127 = vmatprep.mubr.f32.mxu0 0.0
      %3128 = vmatmul.mubr.f32.gmra.mrb[0].mxu0 %v725
      %v3129 = vpop.f32.mrb[0].mxu0
      %v3130 = vadd.f32 0.0, %v3129
      %v3131 = vpop.f32.mrb[0].mxu0
      %3132 = vmatprep.mubr.f32.mxu0 0.0
      %3133 = vmatmul.mubr.f32.gmra.mrb[0].mxu0 %v728
      %v3134 = vpop.f32.mrb[0].mxu0
      %v3135 = vadd.f32 0.0, %v3134
      %v3136 = vpop.f32.mrb[0].mxu0
      %3137 = vmatprep.mubr.f32.mxu0 0.0
      %3138 = vmatmul.mubr.f32.gmra.mrb[0].mxu0 %v731
      %v3139 = vpop.f32.mrb[0].mxu0
      %v3140 = vadd.f32 0.0, %v3139
      %v3141 = vpop.f32.mrb[0].mxu0
      %3142 = vmatprep.mubr.f32.mxu0 0.0
      %3143 = vmatmul.mubr.f32.gmra.mrb[0].mxu0 %v734
      %v3144 = vpop.f32.mrb[0].mxu0
      %v3145 = vadd.f32 0.0, %v3144
      %v3146 = vpop.f32.mrb[0].mxu0
      %3147 = vmatprep.mubr.f32.mxu0 0.0
      %3148 = vmatmul.mubr.f32.gmra.mrb[0].mxu0 %v737
      %v3149 = vpop.f32.mrb[0].mxu0
      %v3150 = vadd.f32 0.0, %v3149
      %v3151 = vpop.f32.mrb[0].mxu0
      %3152 = vmatprep.mubr.f32.mxu0 0.0
      %3153 = vmatmul.mubr.f32.gmra.mrb[0].mxu0 %v740
      %v3154 = vpop.f32.mrb[0].mxu0
      %v3155 = vadd.f32 0.0, %v3154
      %v3156 = vpop.f32.mrb[0].mxu0
      %3157 = vmatprep.mubr.f32.mxu0 0.0
      %3158 = vmatmul.mubr.f32.gmra.mrb[0].mxu0 %v743
      %v3159 = vpop.f32.mrb[0].mxu0
      %v3160 = vadd.f32 0.0, %v3159
      %v3161 = vpop.f32.mrb[0].mxu0
      %3162 = vmatprep.mubr.f32.mxu0 0.0
      %3163 = vmatmul.mubr.f32.gmra.mrb[0].mxu0 %v746
      %v3164 = vpop.f32.mrb[0].mxu0
      %v3165 = vadd.f32 0.0, %v3164
      %v3166 = vpop.f32.mrb[0].mxu0
      %3167 = vmatprep.mubr.f32.mxu0 0.0
      %3168 = vmatmul.mubr.f32.gmra.mrb[0].mxu0 %v749
      %v3169 = vpop.f32.mrb[0].mxu0
      %v3170 = vadd.f32 0.0, %v3169
      %v3171 = vpop.f32.mrb[0].mxu0
      %3172 = vmatprep.mubr.f32.mxu0 0.0
      %3173 = vmatmul.mubr.f32.gmra.mrb[0].mxu0 %v752
      %v3174 = vpop.f32.mrb[0].mxu0
      %v3175 = vadd.f32 0.0, %v3174
      %v3176 = vpop.f32.mrb[0].mxu0
      %3177 = vmatprep.mubr.f32.mxu0 0.0
      %3178 = vmatmul.mubr.f32.gmra.mrb[0].mxu0 %v755
      %v3179 = vpop.f32.mrb[0].mxu0
      %v3180 = vadd.f32 0.0, %v3179
      %v3181 = vpop.f32.mrb[0].mxu0
      %3182 = vmatprep.mubr.f32.mxu0 0.0
      %3183 = vmatmul.mubr.f32.gmra.mrb[0].mxu0 %v758
      %v3184 = vpop.f32.mrb[0].mxu0
      %v3185 = vadd.f32 0.0, %v3184
      %v3186 = vpop.f32.mrb[0].mxu0
      %3187 = vmatprep.mubr.f32.mxu0 0.0
      %3188 = vmatmul.mubr.f32.gmra.mrb[0].mxu0 %v761
      %v3189 = vpop.f32.mrb[0].mxu0
      %v3190 = vadd.f32 0.0, %v3189
      %v3191 = vpop.f32.mrb[0].mxu0
      %3192 = vmatprep.mubr.f32.mxu0 0.0
      %3193 = vmatmul.mubr.f32.gmra.mrb[0].mxu0 %v764
      %v3194 = vpop.f32.mrb[0].mxu0
      %v3195 = vadd.f32 0.0, %v3194
      %v3196 = vpop.f32.mrb[0].mxu0
      %3197 = vmatprep.mubr.f32.mxu0 0.0
      %3198 = vmatmul.mubr.f32.gmra.mrb[0].mxu0 %v767
      %v3199 = vpop.f32.mrb[0].mxu0
      %v3200 = vadd.f32 0.0, %v3199
      %v3201 = vpop.f32.mrb[0].mxu0
      %3202 = vmatprep.mubr.f32.mxu0 0.0
      %3203 = vmatmul.mubr.f32.gmra.mrb[0].mxu0 %v770
      %v3204 = vpop.f32.mrb[0].mxu0
      %v3205 = vadd.f32 0.0, %v3204
      %v3206 = vpop.f32.mrb[0].mxu0
      %3207 = vmatprep.mubr.f32.mxu0 0.0
      %3208 = vmatmul.mubr.f32.gmra.mrb[0].mxu0 %v773
      %v3209 = vpop.f32.mrb[0].mxu0
      %v3210 = vadd.f32 0.0, %v3209
      %v3211 = vpop.f32.mrb[0].mxu0
      %3212 = vmatprep.mubr.f32.mxu0 0.0
      %3213 = vmatmul.mubr.f32.gmra.mrb[0].mxu0 %v1997
      %v3214 = vpop.f32.mrb[0].mxu0
      %v3215 = vadd.f32 0.0, %v3214
      %v3216 = vpop.f32.mrb[0].mxu0
      %3217 = vmatprep.mubr.f32.mxu0 0.0
      %3218 = vmatmul.mubr.f32.gmra.mrb[0].mxu0 %v2000
      %v3219 = vpop.f32.mrb[0].mxu0
      %v3220 = vadd.f32 0.0, %v3219
      %v3221 = vpop.f32.mrb[0].mxu0
      %3222 = vmatprep.mubr.f32.mxu0 0.0
      %3223 = vmatmul.mubr.f32.gmra.mrb[0].mxu0 %v3000
      %v3224 = vpop.f32.mrb[0].mxu0
      %v3225 = vadd.f32 0.0, %v3224
      %v3226 = vpop.f32.mrb[0].mxu0
      %3227 = vmatprep.mubr.f32.mxu0 0.0
      %3228 = vmatmul.mubr.f32.gmra.mrb[0].mxu0 %v3003
      %v3229 = vpop.f32.mrb[0].mxu0
      %v3230 = vadd.f32 0.0, %v3229
      %v3231 = vpop.f32.mrb[0].mxu0
      %3232 = vdwg.mxu0
      %v3233 = vld [vmem:[#allocation2] sm:$0xff]
      %v3234 = vld [vmem:[#allocation2 + $0x8] sm:$0xff]
      %v3235 = vld [vmem:[#allocation2 + $0x10] sm:$0xff]
      %v3236 = vld [vmem:[#allocation2 + $0x18] sm:$0xff]
      %v3237 = vld [vmem:[#allocation2 + $0x20] sm:$0xff]
      %v3238 = vld [vmem:[#allocation2 + $0x28] sm:$0xff]
      %v3239 = vld [vmem:[#allocation2 + $0x30] sm:$0xff]
      %v3240 = vld [vmem:[#allocation2 + $0x38] sm:$0xff]
      %v3241 = vld [vmem:[#allocation2 + $0x40] sm:$0xff]
      %v3242 = vld [vmem:[#allocation2 + $0x48] sm:$0xff]
      %v3243 = vld [vmem:[#allocation2 + $0x50] sm:$0xff]
      %v3244 = vld [vmem:[#allocation2 + $0x58] sm:$0xff]
      %v3245 = vld [vmem:[#allocation2 + $0x60] sm:$0xff]
      %v3246 = vld [vmem:[#allocation2 + $0x68] sm:$0xff]
      %v3247 = vld [vmem:[#allocation2 + $0x70] sm:$0xff]
      %v3248 = vld [vmem:[#allocation2 + $0x78] sm:$0xff]
      %v3249 = vld [vmem:[#allocation2 + $0x80] sm:$0xff]
      %v3250 = vld [vmem:[#allocation2 + $0x88] sm:$0xff]
      %v3251 = vld [vmem:[#allocation2 + $0x90] sm:$0xff]
      %v3252 = vld [vmem:[#allocation2 + $0x98] sm:$0xff]
      %v3253 = vld [vmem:[#allocation2 + $0xa0] sm:$0xff]
      %v3254 = vld [vmem:[#allocation2 + $0xa8] sm:$0xff]
      %v3255 = vld [vmem:[#allocation2 + $0xb0] sm:$0xff]
      %v3256 = vld [vmem:[#allocation2 + $0xb8] sm:$0xff]
      %v3257 = vld [vmem:[#allocation2 + $0xc0] sm:$0xff]
      %v3258 = vld [vmem:[#allocation2 + $0xc8] sm:$0xff]
      %v3259 = vld [vmem:[#allocation2 + $0xd0] sm:$0xff]
      %v3260 = vld [vmem:[#allocation2 + $0xd8] sm:$0xff]
      %v3261 = vld [vmem:[#allocation2 + $0xe0] sm:$0xff]
      %v3262 = vld [vmem:[#allocation2 + $0xe8] sm:$0xff]
      %v3263 = vld [vmem:[#allocation2 + $0xf0] sm:$0xff]
      %v3264 = vld [vmem:[#allocation2 + $0xf8] sm:$0xff]
      %v3265 = vadd.f32 %v3233, %v3075
      %v3266 = vadd.f32 %v3234, %v3080
      %v3267 = vadd.f32 %v3235, %v3085
      %v3268 = vadd.f32 %v3236, %v3090
      %v3269 = vadd.f32 %v3237, %v3095
      %v3270 = vadd.f32 %v3238, %v3100
      %v3271 = vadd.f32 %v3239, %v3105
      %v3272 = vadd.f32 %v3240, %v3110
      %v3273 = vadd.f32 %v3241, %v3115
      %v3274 = vadd.f32 %v3242, %v3120
      %v3275 = vadd.f32 %v3243, %v3125
      %v3276 = vadd.f32 %v3244, %v3130
      %v3277 = vadd.f32 %v3245, %v3135
      %v3278 = vadd.f32 %v3246, %v3140
      %v3279 = vadd.f32 %v3247, %v3145
      %v3280 = vadd.f32 %v3248, %v3150
      %v3281 = vadd.f32 %v3249, %v3155
      %v3282 = vadd.f32 %v3250, %v3160
      %v3283 = vadd.f32 %v3251, %v3165
      %v3284 = vadd.f32 %v3252, %v3170
      %v3285 = vadd.f32 %v3253, %v3175
      %v3286 = vadd.f32 %v3254, %v3180
      %v3287 = vadd.f32 %v3255, %v3185
      %v3288 = vadd.f32 %v3256, %v3190
      %v3289 = vadd.f32 %v3257, %v3195
      %v3290 = vadd.f32 %v3258, %v3200
      %v3291 = vadd.f32 %v3259, %v3205
      %v3292 = vadd.f32 %v3260, %v3210
      %v3293 = vadd.f32 %v3261, %v3215
      %v3294 = vadd.f32 %v3262, %v3220
      %v3295 = vadd.f32 %v3263, %v3225
      %v3296 = vadd.f32 %v3264, %v3230
      %3297 = vst.msk [vmem:[#allocation2] sm:$0xff] %vm678, %v3265
      %3298 = vst.msk [vmem:[#allocation2 + $0x8] sm:$0xff] %vm678, %v3266
      %3299 = vst.msk [vmem:[#allocation2 + $0x10] sm:$0xff] %vm678, %v3267
      %3300 = vst.msk [vmem:[#allocation2 + $0x18] sm:$0xff] %vm678, %v3268
      %3301 = vst.msk [vmem:[#allocation2 + $0x20] sm:$0xff] %vm678, %v3269
      %3302 = vst.msk [vmem:[#allocation2 + $0x28] sm:$0xff] %vm678, %v3270
      %3303 = vst.msk [vmem:[#allocation2 + $0x30] sm:$0xff] %vm678, %v3271
      %3304 = vst.msk [vmem:[#allocation2 + $0x38] sm:$0xff] %vm678, %v3272
      %3305 = vst.msk [vmem:[#allocation2 + $0x40] sm:$0xff] %vm678, %v3273
      %3306 = vst.msk [vmem:[#allocation2 + $0x48] sm:$0xff] %vm678, %v3274
      %3307 = vst.msk [vmem:[#allocation2 + $0x50] sm:$0xff] %vm678, %v3275
      %3308 = vst.msk [vmem:[#allocation2 + $0x58] sm:$0xff] %vm678, %v3276
      %3309 = vst.msk [vmem:[#allocation2 + $0x60] sm:$0xff] %vm678, %v3277
      %3310 = vst.msk [vmem:[#allocation2 + $0x68] sm:$0xff] %vm678, %v3278
      %3311 = vst.msk [vmem:[#allocation2 + $0x70] sm:$0xff] %vm678, %v3279
      %3312 = vst.msk [vmem:[#allocation2 + $0x78] sm:$0xff] %vm678, %v3280
      %3313 = vst.msk [vmem:[#allocation2 + $0x80] sm:$0xff] %vm678, %v3281
      %3314 = vst.msk [vmem:[#allocation2 + $0x88] sm:$0xff] %vm678, %v3282
      %3315 = vst.msk [vmem:[#allocation2 + $0x90] sm:$0xff] %vm678, %v3283
      %3316 = vst.msk [vmem:[#allocation2 + $0x98] sm:$0xff] %vm678, %v3284
      %3317 = vst.msk [vmem:[#allocation2 + $0xa0] sm:$0xff] %vm678, %v3285
      %3318 = vst.msk [vmem:[#allocation2 + $0xa8] sm:$0xff] %vm678, %v3286
      %3319 = vst.msk [vmem:[#allocation2 + $0xb0] sm:$0xff] %vm678, %v3287
      %3320 = vst.msk [vmem:[#allocation2 + $0xb8] sm:$0xff] %vm678, %v3288
      %3321 = vst.msk [vmem:[#allocation2 + $0xc0] sm:$0xff] %vm678, %v3289
      %3322 = vst.msk [vmem:[#allocation2 + $0xc8] sm:$0xff] %vm678, %v3290
      %3323 = vst.msk [vmem:[#allocation2 + $0xd0] sm:$0xff] %vm678, %v3291
      %3324 = vst.msk [vmem:[#allocation2 + $0xd8] sm:$0xff] %vm678, %v3292
      %3325 = vst.msk [vmem:[#allocation2 + $0xe0] sm:$0xff] %vm678, %v3293
      %3326 = vst.msk [vmem:[#allocation2 + $0xe8] sm:$0xff] %vm678, %v3294
      %3327 = vst.msk [vmem:[#allocation2 + $0xf0] sm:$0xff] %vm678, %v3295
      %3328 = vst.msk [vmem:[#allocation2 + $0xf8] sm:$0xff] %vm678, %v3296
      %v3330 = vrot.slane %v674, 1
      %v3331 = vrot.slane %v675, 1
      %v3332 = vsel %vm1052, %v3330, %v3331
      %v3333 = vrot.slane %v676, 1
      %v3334 = vsel %vm1052, %v3331, %v3333
      %s3335 = scalar_lea.vmem %s2, 28
      %v3336 = vld [vmem:[%s3335] sm:$0xf]
      %v3337 = vsel %vm678, %v3332, 0
      %v3339 = vsel %vm678, %v3334, 0
      %v3342 = vsel %vm775, %v3336, 0
      %3344 = vmatprep.subr.mxu0 0.0
      %3345 = vmatpush1.msra.mxu0 %v3342
      %3346 = vmatprep.subr.mxu0 0.0
      %3347 = vmatpush1.msra.mxu0 0.0
      %3348 = vmatprep.subr.mxu0 0.0
      %3349 = vmatpush1.msra.mxu0 0.0
      %3350 = vmatprep.subr.mxu0 0.0
      %3351 = vmatpush1.msra.mxu0 0.0
      %3352 = vmatprep.subr.mxu0 0.0
      %3353 = vmatpush1.msra.mxu0 0.0
      %3354 = vmatprep.subr.mxu0 0.0
      %3355 = vmatpush1.msra.mxu0 0.0
      %3356 = vmatprep.subr.mxu0 0.0
      %3357 = vmatpush1.msra.mxu0 0.0
      %3358 = vmatprep.subr.mxu0 0.0
      %3359 = vmatpush1.msra.mxu0 0.0
      %3360 = vmatprep.subr.mxu0 0.0
      %3361 = vmatpush1.msra.mxu0 0.0
      %3362 = vmatprep.subr.mxu0 0.0
      %3363 = vmatpush1.msra.mxu0 0.0
      %3364 = vmatprep.subr.mxu0 0.0
      %3365 = vmatpush1.msra.mxu0 0.0
      %3366 = vmatprep.subr.mxu0 0.0
      %3367 = vmatpush1.msra.mxu0 0.0
      %3368 = vmatprep.subr.mxu0 0.0
      %3369 = vmatpush1.msra.mxu0 0.0
      %3370 = vmatprep.subr.mxu0 0.0
      %3371 = vmatpush1.msra.mxu0 0.0
      %3372 = vmatprep.subr.mxu0 0.0
      %3373 = vmatpush1.msra.mxu0 0.0
      %3374 = vmatprep.subr.mxu0 0.0
      %3375 = vmatpush1.msra.mxu0 0.0
      %3376 = vmatprep.subr.mxu0 0.0
      %3377 = vmatpush1.msra.mxu0 0.0
      %3378 = vmatprep.subr.mxu0 0.0
      %3379 = vmatpush1.msra.mxu0 0.0
      %3380 = vmatprep.subr.mxu0 0.0
      %3381 = vmatpush1.msra.mxu0 0.0
      %3382 = vmatprep.subr.mxu0 0.0
      %3383 = vmatpush1.msra.mxu0 0.0
      %3384 = vmatprep.subr.mxu0 0.0
      %3385 = vmatpush1.msra.mxu0 0.0
      %3386 = vmatprep.subr.mxu0 0.0
      %3387 = vmatpush1.msra.mxu0 0.0
      %3388 = vmatprep.subr.mxu0 0.0
      %3389 = vmatpush1.msra.mxu0 0.0
      %3390 = vmatprep.subr.mxu0 0.0
      %3391 = vmatpush1.msra.mxu0 0.0
      %3392 = vmatprep.subr.mxu0 0.0
      %3393 = vmatpush1.msra.mxu0 0.0
      %3394 = vmatprep.subr.mxu0 0.0
      %3395 = vmatpush1.msra.mxu0 0.0
      %3396 = vmatprep.subr.mxu0 0.0
      %3397 = vmatpush1.msra.mxu0 0.0
      %3398 = vmatprep.subr.mxu0 0.0
      %3399 = vmatpush1.msra.mxu0 0.0
      %3400 = vmatprep.subr.mxu0 0.0
      %3401 = vmatpush1.msra.mxu0 0.0
      %3402 = vmatprep.subr.mxu0 0.0
      %3403 = vmatpush1.msra.mxu0 0.0
      %3404 = vmatprep.subr.mxu0 0.0
      %3405 = vmatpush1.msra.mxu0 0.0
      %3406 = vmatprep.subr.mxu0 0.0
      %3407 = vmatpush1.msra.mxu0 0.0
      %3408 = vmatprep.mubr.f32.mxu0 0.0
      %3409 = vmatmul.mubr.f32.gmra.mrb[0].mxu0 %v1143
      %v3410 = vpop.f32.mrb[0].mxu0
      %v3411 = vadd.f32 0.0, %v3410
      %v3412 = vpop.f32.mrb[0].mxu0
      %3413 = vmatprep.mubr.f32.mxu0 0.0
      %3414 = vmatmul.mubr.f32.gmra.mrb[0].mxu0 %v1145
      %v3415 = vpop.f32.mrb[0].mxu0
      %v3416 = vadd.f32 0.0, %v3415
      %v3417 = vpop.f32.mrb[0].mxu0
      %3418 = vmatprep.mubr.f32.mxu0 0.0
      %3419 = vmatmul.mubr.f32.gmra.mrb[0].mxu0 %v1147
      %v3420 = vpop.f32.mrb[0].mxu0
      %v3421 = vadd.f32 0.0, %v3420
      %v3422 = vpop.f32.mrb[0].mxu0
      %3423 = vmatprep.mubr.f32.mxu0 0.0
      %3424 = vmatmul.mubr.f32.gmra.mrb[0].mxu0 %v1149
      %v3425 = vpop.f32.mrb[0].mxu0
      %v3426 = vadd.f32 0.0, %v3425
      %v3427 = vpop.f32.mrb[0].mxu0
      %3428 = vmatprep.mubr.f32.mxu0 0.0
      %3429 = vmatmul.mubr.f32.gmra.mrb[0].mxu0 %v1151
      %v3430 = vpop.f32.mrb[0].mxu0
      %v3431 = vadd.f32 0.0, %v3430
      %v3432 = vpop.f32.mrb[0].mxu0
      %3433 = vmatprep.mubr.f32.mxu0 0.0
      %3434 = vmatmul.mubr.f32.gmra.mrb[0].mxu0 %v1153
      %v3435 = vpop.f32.mrb[0].mxu0
      %v3436 = vadd.f32 0.0, %v3435
      %v3437 = vpop.f32.mrb[0].mxu0
      %3438 = vmatprep.mubr.f32.mxu0 0.0
      %3439 = vmatmul.mubr.f32.gmra.mrb[0].mxu0 %v1155
      %v3440 = vpop.f32.mrb[0].mxu0
      %v3441 = vadd.f32 0.0, %v3440
      %v3442 = vpop.f32.mrb[0].mxu0
      %3443 = vmatprep.mubr.f32.mxu0 0.0
      %3444 = vmatmul.mubr.f32.gmra.mrb[0].mxu0 %v1157
      %v3445 = vpop.f32.mrb[0].mxu0
      %v3446 = vadd.f32 0.0, %v3445
      %v3447 = vpop.f32.mrb[0].mxu0
      %3448 = vmatprep.mubr.f32.mxu0 0.0
      %3449 = vmatmul.mubr.f32.gmra.mrb[0].mxu0 %v1159
      %v3450 = vpop.f32.mrb[0].mxu0
      %v3451 = vadd.f32 0.0, %v3450
      %v3452 = vpop.f32.mrb[0].mxu0
      %3453 = vmatprep.mubr.f32.mxu0 0.0
      %3454 = vmatmul.mubr.f32.gmra.mrb[0].mxu0 %v1161
      %v3455 = vpop.f32.mrb[0].mxu0
      %v3456 = vadd.f32 0.0, %v3455
      %v3457 = vpop.f32.mrb[0].mxu0
      %3458 = vmatprep.mubr.f32.mxu0 0.0
      %3459 = vmatmul.mubr.f32.gmra.mrb[0].mxu0 %v1163
      %v3460 = vpop.f32.mrb[0].mxu0
      %v3461 = vadd.f32 0.0, %v3460
      %v3462 = vpop.f32.mrb[0].mxu0
      %3463 = vmatprep.mubr.f32.mxu0 0.0
      %3464 = vmatmul.mubr.f32.gmra.mrb[0].mxu0 %v1165
      %v3465 = vpop.f32.mrb[0].mxu0
      %v3466 = vadd.f32 0.0, %v3465
      %v3467 = vpop.f32.mrb[0].mxu0
      %3468 = vmatprep.mubr.f32.mxu0 0.0
      %3469 = vmatmul.mubr.f32.gmra.mrb[0].mxu0 %v1167
      %v3470 = vpop.f32.mrb[0].mxu0
      %v3471 = vadd.f32 0.0, %v3470
      %v3472 = vpop.f32.mrb[0].mxu0
      %3473 = vmatprep.mubr.f32.mxu0 0.0
      %3474 = vmatmul.mubr.f32.gmra.mrb[0].mxu0 %v1169
      %v3475 = vpop.f32.mrb[0].mxu0
      %v3476 = vadd.f32 0.0, %v3475
      %v3477 = vpop.f32.mrb[0].mxu0
      %3478 = vmatprep.mubr.f32.mxu0 0.0
      %3479 = vmatmul.mubr.f32.gmra.mrb[0].mxu0 %v1171
      %v3480 = vpop.f32.mrb[0].mxu0
      %v3481 = vadd.f32 0.0, %v3480
      %v3482 = vpop.f32.mrb[0].mxu0
      %3483 = vmatprep.mubr.f32.mxu0 0.0
      %3484 = vmatmul.mubr.f32.gmra.mrb[0].mxu0 %v1173
      %v3485 = vpop.f32.mrb[0].mxu0
      %v3486 = vadd.f32 0.0, %v3485
      %v3487 = vpop.f32.mrb[0].mxu0
      %3488 = vmatprep.mubr.f32.mxu0 0.0
      %3489 = vmatmul.mubr.f32.gmra.mrb[0].mxu0 %v1175
      %v3490 = vpop.f32.mrb[0].mxu0
      %v3491 = vadd.f32 0.0, %v3490
      %v3492 = vpop.f32.mrb[0].mxu0
      %3493 = vmatprep.mubr.f32.mxu0 0.0
      %3494 = vmatmul.mubr.f32.gmra.mrb[0].mxu0 %v1177
      %v3495 = vpop.f32.mrb[0].mxu0
      %v3496 = vadd.f32 0.0, %v3495
      %v3497 = vpop.f32.mrb[0].mxu0
      %3498 = vmatprep.mubr.f32.mxu0 0.0
      %3499 = vmatmul.mubr.f32.gmra.mrb[0].mxu0 %v1179
      %v3500 = vpop.f32.mrb[0].mxu0
      %v3501 = vadd.f32 0.0, %v3500
      %v3502 = vpop.f32.mrb[0].mxu0
      %3503 = vmatprep.mubr.f32.mxu0 0.0
      %3504 = vmatmul.mubr.f32.gmra.mrb[0].mxu0 %v1181
      %v3505 = vpop.f32.mrb[0].mxu0
      %v3506 = vadd.f32 0.0, %v3505
      %v3507 = vpop.f32.mrb[0].mxu0
      %3508 = vmatprep.mubr.f32.mxu0 0.0
      %3509 = vmatmul.mubr.f32.gmra.mrb[0].mxu0 %v1183
      %v3510 = vpop.f32.mrb[0].mxu0
      %v3511 = vadd.f32 0.0, %v3510
      %v3512 = vpop.f32.mrb[0].mxu0
      %3513 = vmatprep.mubr.f32.mxu0 0.0
      %3514 = vmatmul.mubr.f32.gmra.mrb[0].mxu0 %v1185
      %v3515 = vpop.f32.mrb[0].mxu0
      %v3516 = vadd.f32 0.0, %v3515
      %v3517 = vpop.f32.mrb[0].mxu0
      %3518 = vmatprep.mubr.f32.mxu0 0.0
      %3519 = vmatmul.mubr.f32.gmra.mrb[0].mxu0 %v1187
      %v3520 = vpop.f32.mrb[0].mxu0
      %v3521 = vadd.f32 0.0, %v3520
      %v3522 = vpop.f32.mrb[0].mxu0
      %3523 = vmatprep.mubr.f32.mxu0 0.0
      %3524 = vmatmul.mubr.f32.gmra.mrb[0].mxu0 %v1189
      %v3525 = vpop.f32.mrb[0].mxu0
      %v3526 = vadd.f32 0.0, %v3525
      %v3527 = vpop.f32.mrb[0].mxu0
      %3528 = vmatprep.mubr.f32.mxu0 0.0
      %3529 = vmatmul.mubr.f32.gmra.mrb[0].mxu0 %v1191
      %v3530 = vpop.f32.mrb[0].mxu0
      %v3531 = vadd.f32 0.0, %v3530
      %v3532 = vpop.f32.mrb[0].mxu0
      %3533 = vmatprep.mubr.f32.mxu0 0.0
      %3534 = vmatmul.mubr.f32.gmra.mrb[0].mxu0 %v1193
      %v3535 = vpop.f32.mrb[0].mxu0
      %v3536 = vadd.f32 0.0, %v3535
      %v3537 = vpop.f32.mrb[0].mxu0
      %3538 = vmatprep.mubr.f32.mxu0 0.0
      %3539 = vmatmul.mubr.f32.gmra.mrb[0].mxu0 %v1195
      %v3540 = vpop.f32.mrb[0].mxu0
      %v3541 = vadd.f32 0.0, %v3540
      %v3542 = vpop.f32.mrb[0].mxu0
      %3543 = vmatprep.mubr.f32.mxu0 0.0
      %3544 = vmatmul.mubr.f32.gmra.mrb[0].mxu0 %v1197
      %v3545 = vpop.f32.mrb[0].mxu0
      %v3546 = vadd.f32 0.0, %v3545
      %v3547 = vpop.f32.mrb[0].mxu0
      %3548 = vmatprep.mubr.f32.mxu0 0.0
      %3549 = vmatmul.mubr.f32.gmra.mrb[0].mxu0 %v2334
      %v3550 = vpop.f32.mrb[0].mxu0
      %v3551 = vadd.f32 0.0, %v3550
      %v3552 = vpop.f32.mrb[0].mxu0
      %3553 = vmatprep.mubr.f32.mxu0 0.0
      %3554 = vmatmul.mubr.f32.gmra.mrb[0].mxu0 %v2336
      %v3555 = vpop.f32.mrb[0].mxu0
      %v3556 = vadd.f32 0.0, %v3555
      %v3557 = vpop.f32.mrb[0].mxu0
      %3558 = vmatprep.mubr.f32.mxu0 0.0
      %3559 = vmatmul.mubr.f32.gmra.mrb[0].mxu0 %v3337
      %v3560 = vpop.f32.mrb[0].mxu0
      %v3561 = vadd.f32 0.0, %v3560
      %v3562 = vpop.f32.mrb[0].mxu0
      %3563 = vmatprep.mubr.f32.mxu0 0.0
      %3564 = vmatmul.mubr.f32.gmra.mrb[0].mxu0 %v3339
      %v3565 = vpop.f32.mrb[0].mxu0
      %v3566 = vadd.f32 0.0, %v3565
      %v3567 = vpop.f32.mrb[0].mxu0
      %3568 = vdwg.mxu0
      %v3569 = vld [vmem:[#allocation2] sm:$0xff]
      %v3570 = vld [vmem:[#allocation2 + $0x8] sm:$0xff]
      %v3571 = vld [vmem:[#allocation2 + $0x10] sm:$0xff]
      %v3572 = vld [vmem:[#allocation2 + $0x18] sm:$0xff]
      %v3573 = vld [vmem:[#allocation2 + $0x20] sm:$0xff]
      %v3574 = vld [vmem:[#allocation2 + $0x28] sm:$0xff]
      %v3575 = vld [vmem:[#allocation2 + $0x30] sm:$0xff]
      %v3576 = vld [vmem:[#allocation2 + $0x38] sm:$0xff]
      %v3577 = vld [vmem:[#allocation2 + $0x40] sm:$0xff]
      %v3578 = vld [vmem:[#allocation2 + $0x48] sm:$0xff]
      %v3579 = vld [vmem:[#allocation2 + $0x50] sm:$0xff]
      %v3580 = vld [vmem:[#allocation2 + $0x58] sm:$0xff]
      %v3581 = vld [vmem:[#allocation2 + $0x60] sm:$0xff]
      %v3582 = vld [vmem:[#allocation2 + $0x68] sm:$0xff]
      %v3583 = vld [vmem:[#allocation2 + $0x70] sm:$0xff]
      %v3584 = vld [vmem:[#allocation2 + $0x78] sm:$0xff]
      %v3585 = vld [vmem:[#allocation2 + $0x80] sm:$0xff]
      %v3586 = vld [vmem:[#allocation2 + $0x88] sm:$0xff]
      %v3587 = vld [vmem:[#allocation2 + $0x90] sm:$0xff]
      %v3588 = vld [vmem:[#allocation2 + $0x98] sm:$0xff]
      %v3589 = vld [vmem:[#allocation2 + $0xa0] sm:$0xff]
      %v3590 = vld [vmem:[#allocation2 + $0xa8] sm:$0xff]
      %v3591 = vld [vmem:[#allocation2 + $0xb0] sm:$0xff]
      %v3592 = vld [vmem:[#allocation2 + $0xb8] sm:$0xff]
      %v3593 = vld [vmem:[#allocation2 + $0xc0] sm:$0xff]
      %v3594 = vld [vmem:[#allocation2 + $0xc8] sm:$0xff]
      %v3595 = vld [vmem:[#allocation2 + $0xd0] sm:$0xff]
      %v3596 = vld [vmem:[#allocation2 + $0xd8] sm:$0xff]
      %v3597 = vld [vmem:[#allocation2 + $0xe0] sm:$0xff]
      %v3598 = vld [vmem:[#allocation2 + $0xe8] sm:$0xff]
      %v3599 = vld [vmem:[#allocation2 + $0xf0] sm:$0xff]
      %v3600 = vld [vmem:[#allocation2 + $0xf8] sm:$0xff]
      %v3601 = vadd.f32 %v3569, %v3411
      %v3602 = vadd.f32 %v3570, %v3416
      %v3603 = vadd.f32 %v3571, %v3421
      %v3604 = vadd.f32 %v3572, %v3426
      %v3605 = vadd.f32 %v3573, %v3431
      %v3606 = vadd.f32 %v3574, %v3436
      %v3607 = vadd.f32 %v3575, %v3441
      %v3608 = vadd.f32 %v3576, %v3446
      %v3609 = vadd.f32 %v3577, %v3451
      %v3610 = vadd.f32 %v3578, %v3456
      %v3611 = vadd.f32 %v3579, %v3461
      %v3612 = vadd.f32 %v3580, %v3466
      %v3613 = vadd.f32 %v3581, %v3471
      %v3614 = vadd.f32 %v3582, %v3476
      %v3615 = vadd.f32 %v3583, %v3481
      %v3616 = vadd.f32 %v3584, %v3486
      %v3617 = vadd.f32 %v3585, %v3491
      %v3618 = vadd.f32 %v3586, %v3496
      %v3619 = vadd.f32 %v3587, %v3501
      %v3620 = vadd.f32 %v3588, %v3506
      %v3621 = vadd.f32 %v3589, %v3511
      %v3622 = vadd.f32 %v3590, %v3516
      %v3623 = vadd.f32 %v3591, %v3521
      %v3624 = vadd.f32 %v3592, %v3526
      %v3625 = vadd.f32 %v3593, %v3531
      %v3626 = vadd.f32 %v3594, %v3536
      %v3627 = vadd.f32 %v3595, %v3541
      %v3628 = vadd.f32 %v3596, %v3546
      %v3629 = vadd.f32 %v3597, %v3551
      %v3630 = vadd.f32 %v3598, %v3556
      %v3631 = vadd.f32 %v3599, %v3561
      %v3632 = vadd.f32 %v3600, %v3566
      %3633 = vst.msk [vmem:[#allocation2] sm:$0xff] %vm678, %v3601
      %3634 = vst.msk [vmem:[#allocation2 + $0x8] sm:$0xff] %vm678, %v3602
      %3635 = vst.msk [vmem:[#allocation2 + $0x10] sm:$0xff] %vm678, %v3603
      %3636 = vst.msk [vmem:[#allocation2 + $0x18] sm:$0xff] %vm678, %v3604
      %3637 = vst.msk [vmem:[#allocation2 + $0x20] sm:$0xff] %vm678, %v3605
      %3638 = vst.msk [vmem:[#allocation2 + $0x28] sm:$0xff] %vm678, %v3606
      %3639 = vst.msk [vmem:[#allocation2 + $0x30] sm:$0xff] %vm678, %v3607
      %3640 = vst.msk [vmem:[#allocation2 + $0x38] sm:$0xff] %vm678, %v3608
      %3641 = vst.msk [vmem:[#allocation2 + $0x40] sm:$0xff] %vm678, %v3609
      %3642 = vst.msk [vmem:[#allocation2 + $0x48] sm:$0xff] %vm678, %v3610
      %3643 = vst.msk [vmem:[#allocation2 + $0x50] sm:$0xff] %vm678, %v3611
      %3644 = vst.msk [vmem:[#allocation2 + $0x58] sm:$0xff] %vm678, %v3612
      %3645 = vst.msk [vmem:[#allocation2 + $0x60] sm:$0xff] %vm678, %v3613
      %3646 = vst.msk [vmem:[#allocation2 + $0x68] sm:$0xff] %vm678, %v3614
      %3647 = vst.msk [vmem:[#allocation2 + $0x70] sm:$0xff] %vm678, %v3615
      %3648 = vst.msk [vmem:[#allocation2 + $0x78] sm:$0xff] %vm678, %v3616
      %3649 = vst.msk [vmem:[#allocation2 + $0x80] sm:$0xff] %vm678, %v3617
      %3650 = vst.msk [vmem:[#allocation2 + $0x88] sm:$0xff] %vm678, %v3618
      %3651 = vst.msk [vmem:[#allocation2 + $0x90] sm:$0xff] %vm678, %v3619
      %3652 = vst.msk [vmem:[#allocation2 + $0x98] sm:$0xff] %vm678, %v3620
      %3653 = vst.msk [vmem:[#allocation2 + $0xa0] sm:$0xff] %vm678, %v3621
      %3654 = vst.msk [vmem:[#allocation2 + $0xa8] sm:$0xff] %vm678, %v3622
      %3655 = vst.msk [vmem:[#allocation2 + $0xb0] sm:$0xff] %vm678, %v3623
      %3656 = vst.msk [vmem:[#allocation2 + $0xb8] sm:$0xff] %vm678, %v3624
      %3657 = vst.msk [vmem:[#allocation2 + $0xc0] sm:$0xff] %vm678, %v3625
      %3658 = vst.msk [vmem:[#allocation2 + $0xc8] sm:$0xff] %vm678, %v3626
      %3659 = vst.msk [vmem:[#allocation2 + $0xd0] sm:$0xff] %vm678, %v3627
      %3660 = vst.msk [vmem:[#allocation2 + $0xd8] sm:$0xff] %vm678, %v3628
      %3661 = vst.msk [vmem:[#allocation2 + $0xe0] sm:$0xff] %vm678, %v3629
      %3662 = vst.msk [vmem:[#allocation2 + $0xe8] sm:$0xff] %vm678, %v3630
      %3663 = vst.msk [vmem:[#allocation2 + $0xf0] sm:$0xff] %vm678, %v3631
      %3664 = vst.msk [vmem:[#allocation2 + $0xf8] sm:$0xff] %vm678, %v3632
      %v3665 = vrot.slane %v674, 2
      %v3666 = vrot.slane %v675, 2
      %v3667 = vsel %vm1523, %v3665, %v3666
      %v3668 = vrot.slane %v676, 2
      %v3669 = vsel %vm1523, %v3666, %v3668
      %s3670 = scalar_lea.vmem %s2, 32
      %v3671 = vld [vmem:[%s3670] sm:$0xf]
      %v3672 = vsel %vm678, %v3667, 0
      %v3674 = vsel %vm678, %v3669, 0
      %v3677 = vsel %vm775, %v3671, 0
      %3679 = vmatprep.subr.mxu0 0.0
      %3680 = vmatpush1.msra.mxu0 %v3677
      %3681 = vmatprep.subr.mxu0 0.0
      %3682 = vmatpush1.msra.mxu0 0.0
      %3683 = vmatprep.subr.mxu0 0.0
      %3684 = vmatpush1.msra.mxu0 0.0
      %3685 = vmatprep.subr.mxu0 0.0
      %3686 = vmatpush1.msra.mxu0 0.0
      %3687 = vmatprep.subr.mxu0 0.0
      %3688 = vmatpush1.msra.mxu0 0.0
      %3689 = vmatprep.subr.mxu0 0.0
      %3690 = vmatpush1.msra.mxu0 0.0
      %3691 = vmatprep.subr.mxu0 0.0
      %3692 = vmatpush1.msra.mxu0 0.0
      %3693 = vmatprep.subr.mxu0 0.0
      %3694 = vmatpush1.msra.mxu0 0.0
      %3695 = vmatprep.subr.mxu0 0.0
      %3696 = vmatpush1.msra.mxu0 0.0
      %3697 = vmatprep.subr.mxu0 0.0
      %3698 = vmatpush1.msra.mxu0 0.0
      %3699 = vmatprep.subr.mxu0 0.0
      %3700 = vmatpush1.msra.mxu0 0.0
      %3701 = vmatprep.subr.mxu0 0.0
      %3702 = vmatpush1.msra.mxu0 0.0
      %3703 = vmatprep.subr.mxu0 0.0
      %3704 = vmatpush1.msra.mxu0 0.0
      %3705 = vmatprep.subr.mxu0 0.0
      %3706 = vmatpush1.msra.mxu0 0.0
      %3707 = vmatprep.subr.mxu0 0.0
      %3708 = vmatpush1.msra.mxu0 0.0
      %3709 = vmatprep.subr.mxu0 0.0
      %3710 = vmatpush1.msra.mxu0 0.0
      %3711 = vmatprep.subr.mxu0 0.0
      %3712 = vmatpush1.msra.mxu0 0.0
      %3713 = vmatprep.subr.mxu0 0.0
      %3714 = vmatpush1.msra.mxu0 0.0
      %3715 = vmatprep.subr.mxu0 0.0
      %3716 = vmatpush1.msra.mxu0 0.0
      %3717 = vmatprep.subr.mxu0 0.0
      %3718 = vmatpush1.msra.mxu0 0.0
      %3719 = vmatprep.subr.mxu0 0.0
      %3720 = vmatpush1.msra.mxu0 0.0
      %3721 = vmatprep.subr.mxu0 0.0
      %3722 = vmatpush1.msra.mxu0 0.0
      %3723 = vmatprep.subr.mxu0 0.0
      %3724 = vmatpush1.msra.mxu0 0.0
      %3725 = vmatprep.subr.mxu0 0.0
      %3726 = vmatpush1.msra.mxu0 0.0
      %3727 = vmatprep.subr.mxu0 0.0
      %3728 = vmatpush1.msra.mxu0 0.0
      %3729 = vmatprep.subr.mxu0 0.0
      %3730 = vmatpush1.msra.mxu0 0.0
      %3731 = vmatprep.subr.mxu0 0.0
      %3732 = vmatpush1.msra.mxu0 0.0
      %3733 = vmatprep.subr.mxu0 0.0
      %3734 = vmatpush1.msra.mxu0 0.0
      %3735 = vmatprep.subr.mxu0 0.0
      %3736 = vmatpush1.msra.mxu0 0.0
      %3737 = vmatprep.subr.mxu0 0.0
      %3738 = vmatpush1.msra.mxu0 0.0
      %3739 = vmatprep.subr.mxu0 0.0
      %3740 = vmatpush1.msra.mxu0 0.0
      %3741 = vmatprep.subr.mxu0 0.0
      %3742 = vmatpush1.msra.mxu0 0.0
      %3743 = vmatprep.mubr.f32.mxu0 0.0
      %3744 = vmatmul.mubr.f32.gmra.mrb[0].mxu0 %v1614
      %v3745 = vpop.f32.mrb[0].mxu0
      %v3746 = vadd.f32 0.0, %v3745
      %v3747 = vpop.f32.mrb[0].mxu0
      %3748 = vmatprep.mubr.f32.mxu0 0.0
      %3749 = vmatmul.mubr.f32.gmra.mrb[0].mxu0 %v1616
      %v3750 = vpop.f32.mrb[0].mxu0
      %v3751 = vadd.f32 0.0, %v3750
      %v3752 = vpop.f32.mrb[0].mxu0
      %3753 = vmatprep.mubr.f32.mxu0 0.0
      %3754 = vmatmul.mubr.f32.gmra.mrb[0].mxu0 %v1618
      %v3755 = vpop.f32.mrb[0].mxu0
      %v3756 = vadd.f32 0.0, %v3755
      %v3757 = vpop.f32.mrb[0].mxu0
      %3758 = vmatprep.mubr.f32.mxu0 0.0
      %3759 = vmatmul.mubr.f32.gmra.mrb[0].mxu0 %v1620
      %v3760 = vpop.f32.mrb[0].mxu0
      %v3761 = vadd.f32 0.0, %v3760
      %v3762 = vpop.f32.mrb[0].mxu0
      %3763 = vmatprep.mubr.f32.mxu0 0.0
      %3764 = vmatmul.mubr.f32.gmra.mrb[0].mxu0 %v1622
      %v3765 = vpop.f32.mrb[0].mxu0
      %v3766 = vadd.f32 0.0, %v3765
      %v3767 = vpop.f32.mrb[0].mxu0
      %3768 = vmatprep.mubr.f32.mxu0 0.0
      %3769 = vmatmul.mubr.f32.gmra.mrb[0].mxu0 %v1624
      %v3770 = vpop.f32.mrb[0].mxu0
      %v3771 = vadd.f32 0.0, %v3770
      %v3772 = vpop.f32.mrb[0].mxu0
      %3773 = vmatprep.mubr.f32.mxu0 0.0
      %3774 = vmatmul.mubr.f32.gmra.mrb[0].mxu0 %v1626
      %v3775 = vpop.f32.mrb[0].mxu0
      %v3776 = vadd.f32 0.0, %v3775
      %v3777 = vpop.f32.mrb[0].mxu0
      %3778 = vmatprep.mubr.f32.mxu0 0.0
      %3779 = vmatmul.mubr.f32.gmra.mrb[0].mxu0 %v1628
      %v3780 = vpop.f32.mrb[0].mxu0
      %v3781 = vadd.f32 0.0, %v3780
      %v3782 = vpop.f32.mrb[0].mxu0
      %3783 = vmatprep.mubr.f32.mxu0 0.0
      %3784 = vmatmul.mubr.f32.gmra.mrb[0].mxu0 %v1630
      %v3785 = vpop.f32.mrb[0].mxu0
      %v3786 = vadd.f32 0.0, %v3785
      %v3787 = vpop.f32.mrb[0].mxu0
      %3788 = vmatprep.mubr.f32.mxu0 0.0
      %3789 = vmatmul.mubr.f32.gmra.mrb[0].mxu0 %v1632
      %v3790 = vpop.f32.mrb[0].mxu0
      %v3791 = vadd.f32 0.0, %v3790
      %v3792 = vpop.f32.mrb[0].mxu0
      %3793 = vmatprep.mubr.f32.mxu0 0.0
      %3794 = vmatmul.mubr.f32.gmra.mrb[0].mxu0 %v1634
      %v3795 = vpop.f32.mrb[0].mxu0
      %v3796 = vadd.f32 0.0, %v3795
      %v3797 = vpop.f32.mrb[0].mxu0
      %3798 = vmatprep.mubr.f32.mxu0 0.0
      %3799 = vmatmul.mubr.f32.gmra.mrb[0].mxu0 %v1636
      %v3800 = vpop.f32.mrb[0].mxu0
      %v3801 = vadd.f32 0.0, %v3800
      %v3802 = vpop.f32.mrb[0].mxu0
      %3803 = vmatprep.mubr.f32.mxu0 0.0
      %3804 = vmatmul.mubr.f32.gmra.mrb[0].mxu0 %v1638
      %v3805 = vpop.f32.mrb[0].mxu0
      %v3806 = vadd.f32 0.0, %v3805
      %v3807 = vpop.f32.mrb[0].mxu0
      %3808 = vmatprep.mubr.f32.mxu0 0.0
      %3809 = vmatmul.mubr.f32.gmra.mrb[0].mxu0 %v1640
      %v3810 = vpop.f32.mrb[0].mxu0
      %v3811 = vadd.f32 0.0, %v3810
      %v3812 = vpop.f32.mrb[0].mxu0
      %3813 = vmatprep.mubr.f32.mxu0 0.0
      %3814 = vmatmul.mubr.f32.gmra.mrb[0].mxu0 %v1642
      %v3815 = vpop.f32.mrb[0].mxu0
      %v3816 = vadd.f32 0.0, %v3815
      %v3817 = vpop.f32.mrb[0].mxu0
      %3818 = vmatprep.mubr.f32.mxu0 0.0
      %3819 = vmatmul.mubr.f32.gmra.mrb[0].mxu0 %v1644
      %v3820 = vpop.f32.mrb[0].mxu0
      %v3821 = vadd.f32 0.0, %v3820
      %v3822 = vpop.f32.mrb[0].mxu0
      %3823 = vmatprep.mubr.f32.mxu0 0.0
      %3824 = vmatmul.mubr.f32.gmra.mrb[0].mxu0 %v1646
      %v3825 = vpop.f32.mrb[0].mxu0
      %v3826 = vadd.f32 0.0, %v3825
      %v3827 = vpop.f32.mrb[0].mxu0
      %3828 = vmatprep.mubr.f32.mxu0 0.0
      %3829 = vmatmul.mubr.f32.gmra.mrb[0].mxu0 %v1648
      %v3830 = vpop.f32.mrb[0].mxu0
      %v3831 = vadd.f32 0.0, %v3830
      %v3832 = vpop.f32.mrb[0].mxu0
      %3833 = vmatprep.mubr.f32.mxu0 0.0
      %3834 = vmatmul.mubr.f32.gmra.mrb[0].mxu0 %v1650
      %v3835 = vpop.f32.mrb[0].mxu0
      %v3836 = vadd.f32 0.0, %v3835
      %v3837 = vpop.f32.mrb[0].mxu0
      %3838 = vmatprep.mubr.f32.mxu0 0.0
      %3839 = vmatmul.mubr.f32.gmra.mrb[0].mxu0 %v1652
      %v3840 = vpop.f32.mrb[0].mxu0
      %v3841 = vadd.f32 0.0, %v3840
      %v3842 = vpop.f32.mrb[0].mxu0
      %3843 = vmatprep.mubr.f32.mxu0 0.0
      %3844 = vmatmul.mubr.f32.gmra.mrb[0].mxu0 %v1654
      %v3845 = vpop.f32.mrb[0].mxu0
      %v3846 = vadd.f32 0.0, %v3845
      %v3847 = vpop.f32.mrb[0].mxu0
      %3848 = vmatprep.mubr.f32.mxu0 0.0
      %3849 = vmatmul.mubr.f32.gmra.mrb[0].mxu0 %v1656
      %v3850 = vpop.f32.mrb[0].mxu0
      %v3851 = vadd.f32 0.0, %v3850
      %v3852 = vpop.f32.mrb[0].mxu0
      %3853 = vmatprep.mubr.f32.mxu0 0.0
      %3854 = vmatmul.mubr.f32.gmra.mrb[0].mxu0 %v1658
      %v3855 = vpop.f32.mrb[0].mxu0
      %v3856 = vadd.f32 0.0, %v3855
      %v3857 = vpop.f32.mrb[0].mxu0
      %3858 = vmatprep.mubr.f32.mxu0 0.0
      %3859 = vmatmul.mubr.f32.gmra.mrb[0].mxu0 %v1660
      %v3860 = vpop.f32.mrb[0].mxu0
      %v3861 = vadd.f32 0.0, %v3860
      %v3862 = vpop.f32.mrb[0].mxu0
      %3863 = vmatprep.mubr.f32.mxu0 0.0
      %3864 = vmatmul.mubr.f32.gmra.mrb[0].mxu0 %v1662
      %v3865 = vpop.f32.mrb[0].mxu0
      %v3866 = vadd.f32 0.0, %v3865
      %v3867 = vpop.f32.mrb[0].mxu0
      %3868 = vmatprep.mubr.f32.mxu0 0.0
      %3869 = vmatmul.mubr.f32.gmra.mrb[0].mxu0 %v1664
      %v3870 = vpop.f32.mrb[0].mxu0
      %v3871 = vadd.f32 0.0, %v3870
      %v3872 = vpop.f32.mrb[0].mxu0
      %3873 = vmatprep.mubr.f32.mxu0 0.0
      %3874 = vmatmul.mubr.f32.gmra.mrb[0].mxu0 %v1666
      %v3875 = vpop.f32.mrb[0].mxu0
      %v3876 = vadd.f32 0.0, %v3875
      %v3877 = vpop.f32.mrb[0].mxu0
      %3878 = vmatprep.mubr.f32.mxu0 0.0
      %3879 = vmatmul.mubr.f32.gmra.mrb[0].mxu0 %v1668
      %v3880 = vpop.f32.mrb[0].mxu0
      %v3881 = vadd.f32 0.0, %v3880
      %v3882 = vpop.f32.mrb[0].mxu0
      %3883 = vmatprep.mubr.f32.mxu0 0.0
      %3884 = vmatmul.mubr.f32.gmra.mrb[0].mxu0 %v2669
      %v3885 = vpop.f32.mrb[0].mxu0
      %v3886 = vadd.f32 0.0, %v3885
      %v3887 = vpop.f32.mrb[0].mxu0
      %3888 = vmatprep.mubr.f32.mxu0 0.0
      %3889 = vmatmul.mubr.f32.gmra.mrb[0].mxu0 %v2671
      %v3890 = vpop.f32.mrb[0].mxu0
      %v3891 = vadd.f32 0.0, %v3890
      %v3892 = vpop.f32.mrb[0].mxu0
      %3893 = vmatprep.mubr.f32.mxu0 0.0
      %3894 = vmatmul.mubr.f32.gmra.mrb[0].mxu0 %v3672
      %v3895 = vpop.f32.mrb[0].mxu0
      %v3896 = vadd.f32 0.0, %v3895
      %v3897 = vpop.f32.mrb[0].mxu0
      %3898 = vmatprep.mubr.f32.mxu0 0.0
      %3899 = vmatmul.mubr.f32.gmra.mrb[0].mxu0 %v3674
      %v3900 = vpop.f32.mrb[0].mxu0
      %v3901 = vadd.f32 0.0, %v3900
      %v3902 = vpop.f32.mrb[0].mxu0
      %3903 = vdwg.mxu0
      %v3904 = vld [vmem:[#allocation2] sm:$0xff]
      %v3905 = vld [vmem:[#allocation2 + $0x8] sm:$0xff]
      %v3906 = vld [vmem:[#allocation2 + $0x10] sm:$0xff]
      %v3907 = vld [vmem:[#allocation2 + $0x18] sm:$0xff]
      %v3908 = vld [vmem:[#allocation2 + $0x20] sm:$0xff]
      %v3909 = vld [vmem:[#allocation2 + $0x28] sm:$0xff]
      %v3910 = vld [vmem:[#allocation2 + $0x30] sm:$0xff]
      %v3911 = vld [vmem:[#allocation2 + $0x38] sm:$0xff]
      %v3912 = vld [vmem:[#allocation2 + $0x40] sm:$0xff]
      %v3913 = vld [vmem:[#allocation2 + $0x48] sm:$0xff]
      %v3914 = vld [vmem:[#allocation2 + $0x50] sm:$0xff]
      %v3915 = vld [vmem:[#allocation2 + $0x58] sm:$0xff]
      %v3916 = vld [vmem:[#allocation2 + $0x60] sm:$0xff]
      %v3917 = vld [vmem:[#allocation2 + $0x68] sm:$0xff]
      %v3918 = vld [vmem:[#allocation2 + $0x70] sm:$0xff]
      %v3919 = vld [vmem:[#allocation2 + $0x78] sm:$0xff]
      %v3920 = vld [vmem:[#allocation2 + $0x80] sm:$0xff]
      %v3921 = vld [vmem:[#allocation2 + $0x88] sm:$0xff]
      %v3922 = vld [vmem:[#allocation2 + $0x90] sm:$0xff]
      %v3923 = vld [vmem:[#allocation2 + $0x98] sm:$0xff]
      %v3924 = vld [vmem:[#allocation2 + $0xa0] sm:$0xff]
      %v3925 = vld [vmem:[#allocation2 + $0xa8] sm:$0xff]
      %v3926 = vld [vmem:[#allocation2 + $0xb0] sm:$0xff]
      %v3927 = vld [vmem:[#allocation2 + $0xb8] sm:$0xff]
      %v3928 = vld [vmem:[#allocation2 + $0xc0] sm:$0xff]
      %v3929 = vld [vmem:[#allocation2 + $0xc8] sm:$0xff]
      %v3930 = vld [vmem:[#allocation2 + $0xd0] sm:$0xff]
      %v3931 = vld [vmem:[#allocation2 + $0xd8] sm:$0xff]
      %v3932 = vld [vmem:[#allocation2 + $0xe0] sm:$0xff]
      %v3933 = vld [vmem:[#allocation2 + $0xe8] sm:$0xff]
      %v3934 = vld [vmem:[#allocation2 + $0xf0] sm:$0xff]
      %v3935 = vld [vmem:[#allocation2 + $0xf8] sm:$0xff]
      %v3936 = vadd.f32 %v3904, %v3746
      %v3937 = vadd.f32 %v3905, %v3751
      %v3938 = vadd.f32 %v3906, %v3756
      %v3939 = vadd.f32 %v3907, %v3761
      %v3940 = vadd.f32 %v3908, %v3766
      %v3941 = vadd.f32 %v3909, %v3771
      %v3942 = vadd.f32 %v3910, %v3776
      %v3943 = vadd.f32 %v3911, %v3781
      %v3944 = vadd.f32 %v3912, %v3786
      %v3945 = vadd.f32 %v3913, %v3791
      %v3946 = vadd.f32 %v3914, %v3796
      %v3947 = vadd.f32 %v3915, %v3801
      %v3948 = vadd.f32 %v3916, %v3806
      %v3949 = vadd.f32 %v3917, %v3811
      %v3950 = vadd.f32 %v3918, %v3816
      %v3951 = vadd.f32 %v3919, %v3821
      %v3952 = vadd.f32 %v3920, %v3826
      %v3953 = vadd.f32 %v3921, %v3831
      %v3954 = vadd.f32 %v3922, %v3836
      %v3955 = vadd.f32 %v3923, %v3841
      %v3956 = vadd.f32 %v3924, %v3846
      %v3957 = vadd.f32 %v3925, %v3851
      %v3958 = vadd.f32 %v3926, %v3856
      %v3959 = vadd.f32 %v3927, %v3861
      %v3960 = vadd.f32 %v3928, %v3866
      %v3961 = vadd.f32 %v3929, %v3871
      %v3962 = vadd.f32 %v3930, %v3876
      %v3963 = vadd.f32 %v3931, %v3881
      %v3964 = vadd.f32 %v3932, %v3886
      %v3965 = vadd.f32 %v3933, %v3891
      %v3966 = vadd.f32 %v3934, %v3896
      %v3967 = vadd.f32 %v3935, %v3901
      %3968 = vst.msk [vmem:[#allocation2] sm:$0xff] %vm678, %v3936
      %3969 = vst.msk [vmem:[#allocation2 + $0x8] sm:$0xff] %vm678, %v3937
      %3970 = vst.msk [vmem:[#allocation2 + $0x10] sm:$0xff] %vm678, %v3938
      %3971 = vst.msk [vmem:[#allocation2 + $0x18] sm:$0xff] %vm678, %v3939
      %3972 = vst.msk [vmem:[#allocation2 + $0x20] sm:$0xff] %vm678, %v3940
      %3973 = vst.msk [vmem:[#allocation2 + $0x28] sm:$0xff] %vm678, %v3941
      %3974 = vst.msk [vmem:[#allocation2 + $0x30] sm:$0xff] %vm678, %v3942
      %3975 = vst.msk [vmem:[#allocation2 + $0x38] sm:$0xff] %vm678, %v3943
      %3976 = vst.msk [vmem:[#allocation2 + $0x40] sm:$0xff] %vm678, %v3944
      %3977 = vst.msk [vmem:[#allocation2 + $0x48] sm:$0xff] %vm678, %v3945
      %3978 = vst.msk [vmem:[#allocation2 + $0x50] sm:$0xff] %vm678, %v3946
      %3979 = vst.msk [vmem:[#allocation2 + $0x58] sm:$0xff] %vm678, %v3947
      %3980 = vst.msk [vmem:[#allocation2 + $0x60] sm:$0xff] %vm678, %v3948
      %3981 = vst.msk [vmem:[#allocation2 + $0x68] sm:$0xff] %vm678, %v3949
      %3982 = vst.msk [vmem:[#allocation2 + $0x70] sm:$0xff] %vm678, %v3950
      %3983 = vst.msk [vmem:[#allocation2 + $0x78] sm:$0xff] %vm678, %v3951
      %3984 = vst.msk [vmem:[#allocation2 + $0x80] sm:$0xff] %vm678, %v3952
      %3985 = vst.msk [vmem:[#allocation2 + $0x88] sm:$0xff] %vm678, %v3953
      %3986 = vst.msk [vmem:[#allocation2 + $0x90] sm:$0xff] %vm678, %v3954
      %3987 = vst.msk [vmem:[#allocation2 + $0x98] sm:$0xff] %vm678, %v3955
      %3988 = vst.msk [vmem:[#allocation2 + $0xa0] sm:$0xff] %vm678, %v3956
      %3989 = vst.msk [vmem:[#allocation2 + $0xa8] sm:$0xff] %vm678, %v3957
      %3990 = vst.msk [vmem:[#allocation2 + $0xb0] sm:$0xff] %vm678, %v3958
      %3991 = vst.msk [vmem:[#allocation2 + $0xb8] sm:$0xff] %vm678, %v3959
      %3992 = vst.msk [vmem:[#allocation2 + $0xc0] sm:$0xff] %vm678, %v3960
      %3993 = vst.msk [vmem:[#allocation2 + $0xc8] sm:$0xff] %vm678, %v3961
      %3994 = vst.msk [vmem:[#allocation2 + $0xd0] sm:$0xff] %vm678, %v3962
      %3995 = vst.msk [vmem:[#allocation2 + $0xd8] sm:$0xff] %vm678, %v3963
      %3996 = vst.msk [vmem:[#allocation2 + $0xe0] sm:$0xff] %vm678, %v3964
      %3997 = vst.msk [vmem:[#allocation2 + $0xe8] sm:$0xff] %vm678, %v3965
      %3998 = vst.msk [vmem:[#allocation2 + $0xf0] sm:$0xff] %vm678, %v3966
      %3999 = vst.msk [vmem:[#allocation2 + $0xf8] sm:$0xff] %vm678, %v3967
      %v4000 = vld [vmem:[#allocation2] sm:$0xff]
      %v4001 = vld [vmem:[#allocation2 + $0x8] sm:$0xff]
      %v4002 = vld [vmem:[#allocation2 + $0x10] sm:$0xff]
      %v4003 = vld [vmem:[#allocation2 + $0x18] sm:$0xff]
      %v4004 = vld [vmem:[#allocation2 + $0x20] sm:$0xff]
      %v4005 = vld [vmem:[#allocation2 + $0x28] sm:$0xff]
      %v4006 = vld [vmem:[#allocation2 + $0x30] sm:$0xff]
      %v4007 = vld [vmem:[#allocation2 + $0x38] sm:$0xff]
      %v4008 = vld [vmem:[#allocation2 + $0x40] sm:$0xff]
      %v4009 = vld [vmem:[#allocation2 + $0x48] sm:$0xff]
      %v4010 = vld [vmem:[#allocation2 + $0x50] sm:$0xff]
      %v4011 = vld [vmem:[#allocation2 + $0x58] sm:$0xff]
      %v4012 = vld [vmem:[#allocation2 + $0x60] sm:$0xff]
      %v4013 = vld [vmem:[#allocation2 + $0x68] sm:$0xff]
      %v4014 = vld [vmem:[#allocation2 + $0x70] sm:$0xff]
      %v4015 = vld [vmem:[#allocation2 + $0x78] sm:$0xff]
      %v4016 = vld [vmem:[#allocation2 + $0x80] sm:$0xff]
      %v4017 = vld [vmem:[#allocation2 + $0x88] sm:$0xff]
      %v4018 = vld [vmem:[#allocation2 + $0x90] sm:$0xff]
      %v4019 = vld [vmem:[#allocation2 + $0x98] sm:$0xff]
      %v4020 = vld [vmem:[#allocation2 + $0xa0] sm:$0xff]
      %v4021 = vld [vmem:[#allocation2 + $0xa8] sm:$0xff]
      %v4022 = vld [vmem:[#allocation2 + $0xb0] sm:$0xff]
      %v4023 = vld [vmem:[#allocation2 + $0xb8] sm:$0xff]
      %v4024 = vld [vmem:[#allocation2 + $0xc0] sm:$0xff]
      %v4025 = vld [vmem:[#allocation2 + $0xc8] sm:$0xff]
      %v4026 = vld [vmem:[#allocation2 + $0xd0] sm:$0xff]
      %v4027 = vld [vmem:[#allocation2 + $0xd8] sm:$0xff]
      %v4028 = vld [vmem:[#allocation2 + $0xe0] sm:$0xff]
      %v4029 = vld [vmem:[#allocation2 + $0xe8] sm:$0xff]
      %v4030 = vld [vmem:[#allocation2 + $0xf0] sm:$0xff]
      %v4031 = vld [vmem:[#allocation2 + $0xf8] sm:$0xff]
      %4032 = vst.msk [vmem:[%s190] sm:$0xff] %vm678, %v4000
      %4033 = vst.msk [vmem:[%s190 + $0x8] sm:$0xff] %vm678, %v4001
      %4034 = vst.msk [vmem:[%s190 + $0x10] sm:$0xff] %vm678, %v4002
      %4035 = vst.msk [vmem:[%s190 + $0x18] sm:$0xff] %vm678, %v4003
      %4036 = vst.msk [vmem:[%s190 + $0x20] sm:$0xff] %vm678, %v4004
      %4037 = vst.msk [vmem:[%s190 + $0x28] sm:$0xff] %vm678, %v4005
      %4038 = vst.msk [vmem:[%s190 + $0x30] sm:$0xff] %vm678, %v4006
      %4039 = vst.msk [vmem:[%s190 + $0x38] sm:$0xff] %vm678, %v4007
      %4040 = vst.msk [vmem:[%s190 + $0x40] sm:$0xff] %vm678, %v4008
      %4041 = vst.msk [vmem:[%s190 + $0x48] sm:$0xff] %vm678, %v4009
      %4042 = vst.msk [vmem:[%s190 + $0x50] sm:$0xff] %vm678, %v4010
      %4043 = vst.msk [vmem:[%s190 + $0x58] sm:$0xff] %vm678, %v4011
      %4044 = vst.msk [vmem:[%s190 + $0x60] sm:$0xff] %vm678, %v4012
      %4045 = vst.msk [vmem:[%s190 + $0x68] sm:$0xff] %vm678, %v4013
      %4046 = vst.msk [vmem:[%s190 + $0x70] sm:$0xff] %vm678, %v4014
      %4047 = vst.msk [vmem:[%s190 + $0x78] sm:$0xff] %vm678, %v4015
      %4048 = vst.msk [vmem:[%s190 + $0x80] sm:$0xff] %vm678, %v4016
      %4049 = vst.msk [vmem:[%s190 + $0x88] sm:$0xff] %vm678, %v4017
      %4050 = vst.msk [vmem:[%s190 + $0x90] sm:$0xff] %vm678, %v4018
      %4051 = vst.msk [vmem:[%s190 + $0x98] sm:$0xff] %vm678, %v4019
      %4052 = vst.msk [vmem:[%s190 + $0xa0] sm:$0xff] %vm678, %v4020
      %4053 = vst.msk [vmem:[%s190 + $0xa8] sm:$0xff] %vm678, %v4021
      %4054 = vst.msk [vmem:[%s190 + $0xb0] sm:$0xff] %vm678, %v4022
      %4055 = vst.msk [vmem:[%s190 + $0xb8] sm:$0xff] %vm678, %v4023
      %4056 = vst.msk [vmem:[%s190 + $0xc0] sm:$0xff] %vm678, %v4024
      %4057 = vst.msk [vmem:[%s190 + $0xc8] sm:$0xff] %vm678, %v4025
      %4058 = vst.msk [vmem:[%s190 + $0xd0] sm:$0xff] %vm678, %v4026
      %4059 = vst.msk [vmem:[%s190 + $0xd8] sm:$0xff] %vm678, %v4027
      %4060 = vst.msk [vmem:[%s190 + $0xe0] sm:$0xff] %vm678, %v4028
      %4061 = vst.msk [vmem:[%s190 + $0xe8] sm:$0xff] %vm678, %v4029
      %4062 = vst.msk [vmem:[%s190 + $0xf0] sm:$0xff] %vm678, %v4030
      %4063 = vst.msk [vmem:[%s190 + $0xf8] sm:$0xff] %vm678, %v4031
      %p4064 = scmp.lt.s32.totalorder %s14, 1
      %s4065 = scalar_select %p4064, %s14, 1
      %s4066 = smul.addr %s4065, 32
      %s4067 = smul.addr %s4066, 8
      %s4068 = scalar_lea.vmem %s3, %s4067
      // Predicated region
      $region33: #{mask_conv2d.1} parent=31 // pred_check
        %p4069 = pneg %p105
      $region34: #{mask_conv2d.1} parent=31 // pred_check_branch
        %4071 = sbr.rel (%p4069) target = $region36
      $region35: #{mask_conv2d.1} parent=31 // pred_region
        _
      $region36: #{mask_conv2d.1} parent=31 // pred_fallthru
        _
    $region32: #{mask_conv2d.1} parent=5 // pred_fallthru
      _
    %p4072 = scmp.le.s32.totalorder 2, %s9
    // Predicated region
    $region37: #{mask_conv2d.1} parent=5 // pred_check
      %p4073 = pneg %p4072
    $region38: #{mask_conv2d.1} parent=5 // pred_check_branch
      %4075 = sbr.rel (%p4073) target = $region40
    $region39: #{mask_conv2d.1} parent=5 // pred_region
      %s4076 = ssub.s32 %s9, 2
      // Predicated region
      $region41: #{mask_conv2d.1} parent=39 // pred_check
        %p4077 = pneg %p111
      $region42: #{mask_conv2d.1} parent=39 // pred_check_branch
        %4079 = sbr.rel (%p4077) target = $region44
      $region43: #{mask_conv2d.1} parent=39 // pred_region
        %p4080 = scmp.lt.s32.totalorder %s15, 1
        %s4081 = scalar_select %p4080, %s15, 1
        %s4082 = smul.addr %s4081, 32
        %s4083 = smul.addr %s4082, 8
        %s4084 = scalar_lea.vmem %s3, %s4083
      $region44: #{mask_conv2d.1} parent=39 // pred_fallthru
        _
    $region40: #{mask_conv2d.1} parent=5 // pred_fallthru
      _
  $region6: #{mask_conv2d.1} parent=0 // loop_footer
    %s13 = sadd.s32 1, %s9
  $region7: #{mask_conv2d.1} parent=0 // loop_footer_branch
    %8 = sbr.rel target = $region3
  $region8: #{mask_conv2d.1} parent=0 // loop_exit
    _

</llo_original>
